<compile_context>
chip_gen: v7x
topology: tpu7x:2x2x1
jax: 0.10.0
libtpu: 0.0.40
codegen_flags: <defaults>
</compile_context>

<pallas_src>
import functools

import numpy as np
import jax
import jax.numpy as jnp
from jax.experimental import pallas as pl
from jax.experimental.pallas import tpu as pltpu


def _bilateral_slice_kernel(tile_base_ref, rgb_ref, grid_ref, aff_ref, out_ref,
                            *, tp, iw, gh, gw, gl, glp, sy, sx):
    """One tile of `tp` pixels, channel-major (pixel index lives in lanes).

    tile_base_ref : SMEM (2*ntiles,) int32   -- (row, col) of each tile's first pixel
    rgb_ref       : (3, tp) f32              -- RGB in [0, 1], pixels along lanes
    grid_ref      : (12*glp, gh*gw) f32/bf16 -- grid, row = c*glp + l, col = h*gw + w
    aff_ref       : (12, tp) f32             -- sliced affine matrices (row-major 3x4)
    out_ref       : (3, tp) f32              -- affine-transformed RGB
    """
    i = pl.program_id(0)

    rgb = rgb_ref[...]                                    # (3, tp)
    r = rgb[0:1, :]
    g = rgb[1:2, :]
    b = rgb[2:3, :]
    gray = 0.299 * r + 0.587 * g + 0.114 * b              # (1, tp) guidance in [0, 1]

    # Per-pixel (row, col) from the flat raster index (exact in f32: values
    # stay far below 2**21, asserted in the wrapper).
    lane = jax.lax.broadcasted_iota(jnp.int32, (1, tp), 1)
    row0 = jnp.full((1, tp), tile_base_ref[2 * i], jnp.int32).astype(jnp.float32)
    col0 = (lane + tile_base_ref[2 * i + 1]).astype(jnp.float32)
    wrap = jnp.floor((col0 + 0.5) * (1.0 / iw))            # rows advanced inside tile
    py = row0 + wrap
    px = col0 - wrap * iw

    # Slicing positions in grid units (align_corners=True, border clamp).
    ypos = jnp.clip(py * sy, 0.0, gh - 1.0)                # (1, tp)
    xpos = jnp.clip(px * sx, 0.0, gw - 1.0)                # (1, tp)
    zpos = jnp.clip(gray, 0.0, 1.0) * (gl - 1.0)           # (1, tp)

    # Factored hat (two-hot linear interp) weights: small (gh, tp) / (gw, tp)
    # slabs, combined with a single full-size multiply.  Rows of w_xy follow
    # the grid column index h*gw + w.
    h_iota = jax.lax.broadcasted_iota(jnp.int32, (gh, tp), 0).astype(jnp.float32)
    w_y = jnp.maximum(1.0 - jnp.abs(h_iota - ypos), 0.0)   # (gh, tp)
    w_iota = jax.lax.broadcasted_iota(jnp.int32, (gw, tp), 0).astype(jnp.float32)
    w_x = jnp.maximum(1.0 - jnp.abs(w_iota - xpos), 0.0)   # (gw, tp)
    w_xy = (w_y[:, None, :] * w_x[None, :, :]).reshape(gh * gw, tp)
    w_xy = w_xy.astype(grid_ref.dtype)                     # bf16 (or f32) MXU operand

    # (y, x) slice on the MXU: (12*glp, gh*gw) @ (gh*gw, tp) -> (12*glp, tp),
    # f32 accumulation.
    mid = jnp.dot(grid_ref[...], w_xy, preferred_element_type=jnp.float32)

    # Data-dependent guidance (z) interpolation: 12 sublane-aligned weighted
    # sublane reductions (XLU), one per affine coefficient.
    l_iota = jax.lax.broadcasted_iota(jnp.int32, (glp, tp), 0).astype(jnp.float32)
    wz = jnp.maximum(1.0 - jnp.abs(l_iota - zpos), 0.0)    # (glp, tp)

    rows = []
    for c in range(12):
        seg = mid[c * glp:(c + 1) * glp, :]                # (glp, tp), 8-aligned slice
        rows.append(jnp.sum(seg * wz, axis=0, keepdims=True))   # (1, tp)

    # Single full-block stores (no per-row masked vst).
    aff_ref[...] = jnp.concatenate(rows, axis=0)           # (12, tp)
    out_ref[...] = jnp.concatenate(
        [rows[0] * r + rows[1] * g + rows[2] * b + rows[3],
         rows[4] * r + rows[5] * g + rows[6] * b + rows[7],
         rows[8] * r + rows[9] * g + rows[10] * b + rows[11]], axis=0)


def bilateral_grid_forward(grids, rgb_chw, depth=None, idx=0, tile_pixels=2048,
                           matmul_dtype=jnp.bfloat16):
    """JAX/Pallas equivalent of BilateralGrid.forward.

    grids        : (N, grid_H, grid_W, grid_L, 12) float32 parameter
    rgb_chw      : (3, H_img, W_img) float32 in [0, 1]
    depth        : unused (kept for signature parity with the PyTorch module)
    idx          : which bilateral grid (view) to slice
    tile_pixels  : pixels per grid step (multiple of 128; sweep 2048-4096)
    matmul_dtype : dtype of the MXU operands (bf16 default; f32 for bit-accuracy)

    Returns (affine_mat (P, 3, 4), res_rgb (P, 3)), P = H_img * W_img.
    """
    del depth  # unused by the reference forward as well
    grid = grids[idx]                                      # (gh, gw, gl, 12)
    gh, gw, gl, nc = grid.shape
    c, ih, iw = rgb_chw.shape
    assert c == 3 and nc == 12
    p = ih * iw

    # Pad guidance levels to a sublane multiple; coefficient-major rows
    # (row = c*glp + l) so M = 12*glp (96 for gl=8, no 25% zero-row waste).
    glp = ((gl + 7) // 8) * 8
    m = nc * glp

    g = jnp.transpose(grid, (3, 2, 0, 1)).reshape(nc, gl, gh * gw).astype(jnp.float32)
    if glp != gl:
        g = jnp.pad(g, ((0, 0), (0, glp - gl), (0, 0)))
    grid_t = g.reshape(m, gh * gw).astype(matmul_dtype)    # (96, 256) for defaults

    # Channel-major, lane-dense pixels: (3, IH, IW) -> (3, P).  Raster order
    # matches torch's .permute(1, 2, 0).reshape(-1, 3) pixel ordering.
    rgb_cp = rgb_chw.reshape(3, p).astype(jnp.float32)

    # Lane-aligned pixel tiling with padding (works for any image size).
    tp = min(int(tile_pixels), ((p + 127) // 128) * 128)
    tp = ((tp + 127) // 128) * 128
    p_pad = ((p + tp - 1) // tp) * tp
    ntiles = p_pad // tp
    if p_pad != p:
        rgb_cp = jnp.pad(rgb_cp, ((0, 0), (0, p_pad - p)))

    # f32 integer arithmetic in the kernel (row/col reconstruction) is exact
    # only while these stay well below 2**21 / 2**24.
    assert iw + tp < (1 << 21) and ih < (1 << 24), "image too large for f32 index math"

    # Tiny per-tile (row, col) table (scalar prefetch) -- avoids dividing a
    # large flat pixel index inside the kernel.
    base = np.arange(ntiles, dtype=np.int64) * tp
    tile_base = jnp.asarray(
        np.stack([base // iw, base % iw], axis=1).reshape(-1).astype(np.int32))

    sy = float(gh - 1) / float(max(ih - 1, 1))
    sx = float(gw - 1) / float(max(iw - 1, 1))

    kernel = functools.partial(_bilateral_slice_kernel, tp=tp, iw=iw, gh=gh,
                               gw=gw, gl=gl, glp=glp, sy=sy, sx=sx)

    aff_t, res_t = pl.pallas_call(
        kernel,
        out_shape=(jax.ShapeDtypeStruct((nc, p_pad), jnp.float32),
                   jax.ShapeDtypeStruct((3, p_pad), jnp.float32)),
        grid_spec=pltpu.PrefetchScalarGridSpec(
            num_scalar_prefetch=1,
            grid=(ntiles,),
            in_specs=[
                pl.BlockSpec((3, tp), lambda i, tb: (0, i)),       # rgb (lane-dense)
                # Constant block index -> Pallas DMAs the (<=100 KiB) grid once
                # and keeps it resident; redundant 2nd pipeline buffer < 0.1 MiB.
                pl.BlockSpec((m, gh * gw), lambda i, tb: (0, 0)),
            ],
            out_specs=[
                pl.BlockSpec((nc, tp), lambda i, tb: (0, i)),      # affine mats
                pl.BlockSpec((3, tp), lambda i, tb: (0, i)),       # result rgb
            ],
        ),
        compiler_params=pltpu.CompilerParams(
            dimension_semantics=("parallel",)),
    )(tile_base, rgb_cp, grid_t)

    # Back to the module's pixel-major contract.  (If the consumer can use
    # channel-major data, return aff_t/res_t directly and skip this traffic.)
    aff = jnp.transpose(aff_t[:, :p]).reshape(p, 3, 4)
    res = jnp.transpose(res_t[:, :p])
    return aff, res


def _ref_forward(grids, rgb_chw, idx=0):
    """Pure-JAX reference of the same semantics, for verification."""
    grid = grids[idx]
    gh, gw, gl, nc = grid.shape
    _, ih, iw = rgb_chw.shape
    p = ih * iw
    rgb = jnp.transpose(rgb_chw, (1, 2, 0)).reshape(p, 3)
    gray = rgb @ jnp.array([0.299, 0.587, 0.114], jnp.float32)

    lin = jnp.arange(p)
    py = (lin // iw).astype(jnp.float32)
    px = (lin % iw).astype(jnp.float32)
    ypos = py * (gh - 1) / max(ih - 1, 1)
    xpos = px * (gw - 1) / max(iw - 1, 1)
    zpos = jnp.clip(gray, 0.0, 1.0) * (gl - 1)

    def split(pos, size):
        pos = jnp.clip(pos, 0.0, size - 1.0)
        i0f = jnp.floor(pos)
        f = pos - i0f
        i0 = i0f.astype(jnp.int32)
        i1 = jnp.minimum(i0 + 1, size - 1)
        return i0, i1, f

    y0, y1, fy = split(ypos, gh)
    x0, x1, fx = split(xpos, gw)
    z0, z1, fz = split(zpos, gl)

    aff = jnp.zeros((p, nc), jnp.float32)
    for yi, wy in ((y0, 1 - fy), (y1, fy)):
        for xi, wx in ((x0, 1 - fx), (x1, fx)):
            for zi, wz in ((z0, 1 - fz), (z1, fz)):
                aff = aff + grid[yi, xi, zi] * (wy * wx * wz)[:, None]

    affm = aff.reshape(-1, 3, 4)
    out = jnp.einsum('pck,pk->pc', affm[:, :, :3], rgb) + affm[:, :, 3]
    return affm, out


if __name__ == "__main__":
    key = jax.random.PRNGKey(0)
    k1, k2, k3 = jax.random.split(key, 3)

    # Module config: num=2 views, grid_X=16 (W), grid_Y=16 (H), grid_W=8 (L).
    n_views, g_x, g_y, g_l = 2, 16, 16, 8
    # Deterministic parameter init: identity affine grid (as in __init__), plus
    # a small perturbation so trilinear slicing is actually exercised.
    identity12 = jnp.array([1., 0, 0, 0, 0, 1., 0, 0, 0, 0, 1., 0], jnp.float32)
    grids = (jnp.tile(identity12, (n_views, g_y, g_x, g_l, 1))
             + 0.05 * jax.random.normal(k1, (n_views, g_y, g_x, g_l, 12), jnp.float32))

    # P = 2240 pixels: not a multiple of 128 -> exercises the padded tiling
    # path; 2 pixel tiles of 2048 (parallel grid axis).
    ih, iw = 40, 56
    rgb = jax.random.uniform(k2, (3, ih, iw), dtype=jnp.float32)    # CHW in [0, 1]
    depth = jax.random.uniform(k3, (ih, iw), dtype=jnp.float32)     # unused by forward

    aff_ref, res_ref = _ref_forward(grids, rgb, idx=0)

    # Exact-semantics path (f32 MXU operands): tight tolerance.
    aff32, res32 = bilateral_grid_forward(grids, rgb, depth, idx=0,
                                          matmul_dtype=jnp.float32)
    (aff32, res32) = jax.block_until_ready((aff32, res32))
    assert aff32.shape == (ih * iw, 3, 4) and res32.shape == (ih * iw, 3)
    assert np.allclose(np.asarray(aff32), np.asarray(aff_ref), atol=2e-4, rtol=2e-4)
    assert np.allclose(np.asarray(res32), np.asarray(res_ref), atol=2e-4, rtol=2e-4)

    # Fast path (bf16 MXU operands, f32 accumulation): looser tolerance that
    # accounts for bf16 rounding of the interpolation weights / grid values.
    aff_bf, res_bf = bilateral_grid_forward(grids, rgb, depth, idx=0)
    (aff_bf, res_bf) = jax.block_until_ready((aff_bf, res_bf))
    assert np.allclose(np.asarray(aff_bf), np.asarray(aff_ref), atol=5e-2, rtol=0)
    assert np.allclose(np.asarray(res_bf), np.asarray(res_ref), atol=5e-2, rtol=0)

    print("KERNEL_OK")
</pallas_src>

<mosaic_0001>
module attributes {stable_mosaic.version = 11 : i64} {
  func.func @_bilateral_slice_kernel(%arg0: i32, %arg1: memref<4xi32, #tpu.memory_space<smem>>, %arg2: memref<3x2048xf32, #tpu.memory_space<vmem>>, %arg3: memref<96x256xf32, #tpu.memory_space<vmem>>, %arg4: memref<12x2048xf32, #tpu.memory_space<vmem>>, %arg5: memref<3x2048xf32, #tpu.memory_space<vmem>>) attributes {dimension_semantics = [#tpu.dimension_semantics<parallel>], iteration_bounds = array<i64: 2>, scalar_prefetch = 1 : i64, scratch_operands = 0 : i64, tpu.core_type = #tpu.core_type<tc>, window_params = [{transform_indices = @transform_0, window_bounds = array<i64: 3, 2048>}, {pipeline_mode = #tpu.pipeline_mode<synchronous>, transform_indices = @transform_1, window_bounds = array<i64: 96, 256>}, {transform_indices = @transform_2, window_bounds = array<i64: 12, 2048>}, {transform_indices = @transform_3, window_bounds = array<i64: 3, 2048>}]} {
    %c0 = arith.constant 0 : index
    %c0_0 = arith.constant 0 : index
    %0 = vector.load %arg2[%c0, %c0_0] : memref<3x2048xf32, #tpu.memory_space<vmem>>, vector<3x2048xf32>
    %1 = vector.extract_strided_slice %0 {offsets = [0, 0], sizes = [1, 2048], strides = [1, 1]} : vector<3x2048xf32> to vector<1x2048xf32>
    %2 = vector.extract_strided_slice %0 {offsets = [1, 0], sizes = [1, 2048], strides = [1, 1]} : vector<3x2048xf32> to vector<1x2048xf32>
    %3 = vector.extract_strided_slice %0 {offsets = [2, 0], sizes = [1, 2048], strides = [1, 1]} : vector<3x2048xf32> to vector<1x2048xf32>
    %cst = arith.constant 2.990000e-01 : f32
    %4 = vector.broadcast %cst : f32 to vector<1x2048xf32>
    %5 = arith.mulf %4, %1 : vector<1x2048xf32>
    %cst_1 = arith.constant 5.870000e-01 : f32
    %6 = vector.broadcast %cst_1 : f32 to vector<1x2048xf32>
    %7 = arith.mulf %6, %2 : vector<1x2048xf32>
    %8 = arith.addf %5, %7 : vector<1x2048xf32>
    %cst_2 = arith.constant 1.140000e-01 : f32
    %9 = vector.broadcast %cst_2 : f32 to vector<1x2048xf32>
    %10 = arith.mulf %9, %3 : vector<1x2048xf32>
    %11 = arith.addf %8, %10 : vector<1x2048xf32>
    %12 = tpu.iota {dimensions = array<i32: 1>} : vector<1x2048xi32>
    %c2_i32 = arith.constant 2 : i32
    %13 = arith.muli %c2_i32, %arg0 : i32
    %14 = arith.index_cast %13 : i32 to index
    %15 = memref.load %arg1[%14] : memref<4xi32, #tpu.memory_space<smem>>
    %16 = vector.broadcast %15 : i32 to vector<1x2048xi32>
    %17 = arith.sitofp %16 : vector<1x2048xi32> to vector<1x2048xf32>
    %c2_i32_3 = arith.constant 2 : i32
    %18 = arith.muli %c2_i32_3, %arg0 : i32
    %c1_i32 = arith.constant 1 : i32
    %19 = arith.addi %18, %c1_i32 : i32
    %20 = arith.index_cast %19 : i32 to index
    %21 = memref.load %arg1[%20] : memref<4xi32, #tpu.memory_space<smem>>
    %22 = vector.broadcast %21 : i32 to vector<1x2048xi32>
    %23 = arith.addi %12, %22 : vector<1x2048xi32>
    %24 = arith.sitofp %23 : vector<1x2048xi32> to vector<1x2048xf32>
    %cst_4 = arith.constant 5.000000e-01 : f32
    %25 = vector.broadcast %cst_4 : f32 to vector<1x2048xf32>
    %26 = arith.addf %24, %25 : vector<1x2048xf32>
    %cst_5 = arith.constant 0.0178571437 : f32
    %27 = vector.broadcast %cst_5 : f32 to vector<1x2048xf32>
    %28 = arith.mulf %26, %27 : vector<1x2048xf32>
    %29 = math.floor %28 : vector<1x2048xf32>
    %30 = arith.addf %17, %29 : vector<1x2048xf32>
    %cst_6 = arith.constant 5.600000e+01 : f32
    %31 = vector.broadcast %cst_6 : f32 to vector<1x2048xf32>
    %32 = arith.mulf %29, %31 : vector<1x2048xf32>
    %33 = arith.subf %24, %32 : vector<1x2048xf32>
    %cst_7 = arith.constant 0.384615391 : f32
    %34 = vector.broadcast %cst_7 : f32 to vector<1x2048xf32>
    %35 = arith.mulf %30, %34 : vector<1x2048xf32>
    %cst_8 = arith.constant 0.000000e+00 : f32
    %cst_9 = arith.constant 1.500000e+01 : f32
    %36 = vector.broadcast %cst_8 : f32 to vector<1x2048xf32>
    %37 = arith.maximumf %36, %35 : vector<1x2048xf32>
    %38 = vector.broadcast %cst_9 : f32 to vector<1x2048xf32>
    %39 = arith.minimumf %38, %37 : vector<1x2048xf32>
    %cst_10 = arith.constant 0.272727281 : f32
    %40 = vector.broadcast %cst_10 : f32 to vector<1x2048xf32>
    %41 = arith.mulf %33, %40 : vector<1x2048xf32>
    %cst_11 = arith.constant 0.000000e+00 : f32
    %cst_12 = arith.constant 1.500000e+01 : f32
    %42 = vector.broadcast %cst_11 : f32 to vector<1x2048xf32>
    %43 = arith.maximumf %42, %41 : vector<1x2048xf32>
    %44 = vector.broadcast %cst_12 : f32 to vector<1x2048xf32>
    %45 = arith.minimumf %44, %43 : vector<1x2048xf32>
    %cst_13 = arith.constant 0.000000e+00 : f32
    %cst_14 = arith.constant 1.000000e+00 : f32
    %46 = vector.broadcast %cst_13 : f32 to vector<1x2048xf32>
    %47 = arith.maximumf %46, %11 : vector<1x2048xf32>
    %48 = vector.broadcast %cst_14 : f32 to vector<1x2048xf32>
    %49 = arith.minimumf %48, %47 : vector<1x2048xf32>
    %cst_15 = arith.constant 7.000000e+00 : f32
    %50 = vector.broadcast %cst_15 : f32 to vector<1x2048xf32>
    %51 = arith.mulf %49, %50 : vector<1x2048xf32>
    %52 = tpu.iota {dimensions = array<i32: 0>} : vector<16x2048xi32>
    %53 = arith.sitofp %52 : vector<16x2048xi32> to vector<16x2048xf32>
    %54 = vector.broadcast %39 : vector<1x2048xf32> to vector<16x2048xf32>
    %55 = arith.subf %53, %54 : vector<16x2048xf32>
    %56 = math.absf %55 : vector<16x2048xf32>
    %cst_16 = arith.constant 1.000000e+00 : f32
    %57 = vector.broadcast %cst_16 : f32 to vector<16x2048xf32>
    %58 = arith.subf %57, %56 : vector<16x2048xf32>
    %cst_17 = arith.constant 0.000000e+00 : f32
    %59 = vector.broadcast %cst_17 : f32 to vector<16x2048xf32>
    %60 = arith.maximumf %58, %59 : vector<16x2048xf32>
    %61 = tpu.iota {dimensions = array<i32: 0>} : vector<16x2048xi32>
    %62 = arith.sitofp %61 : vector<16x2048xi32> to vector<16x2048xf32>
    %63 = vector.broadcast %45 : vector<1x2048xf32> to vector<16x2048xf32>
    %64 = arith.subf %62, %63 : vector<16x2048xf32>
    %65 = math.absf %64 : vector<16x2048xf32>
    %cst_18 = arith.constant 1.000000e+00 : f32
    %66 = vector.broadcast %cst_18 : f32 to vector<16x2048xf32>
    %67 = arith.subf %66, %65 : vector<16x2048xf32>
    %cst_19 = arith.constant 0.000000e+00 : f32
    %68 = vector.broadcast %cst_19 : f32 to vector<16x2048xf32>
    %69 = arith.maximumf %67, %68 : vector<16x2048xf32>
    %70 = vector.shape_cast %60 : vector<16x2048xf32> to vector<16x1x2048xf32>
    %71 = vector.shape_cast %69 : vector<16x2048xf32> to vector<1x16x2048xf32>
    %72 = vector.broadcast %70 : vector<16x1x2048xf32> to vector<16x16x2048xf32>
    %73 = vector.broadcast %71 : vector<1x16x2048xf32> to vector<16x16x2048xf32>
    %74 = arith.mulf %72, %73 : vector<16x16x2048xf32>
    %75 = vector.shape_cast %74 : vector<16x16x2048xf32> to vector<256x2048xf32>
    %c0_20 = arith.constant 0 : index
    %c0_21 = arith.constant 0 : index
    %76 = vector.load %arg3[%c0_20, %c0_21] : memref<96x256xf32, #tpu.memory_space<vmem>>, vector<96x256xf32>
    %cst_22 = arith.constant dense<0.000000e+00> : vector<96x2048xf32>
    %77 = tpu.matmul %76, %75, %cst_22 {dimension_numbers = #tpu.dot_dimension_numbers<[1], [0], [0], [1], [0, 0, 1, 1], [], []>} : vector<96x256xf32>, vector<256x2048xf32>, vector<96x2048xf32> -> vector<96x2048xf32>
    %78 = tpu.iota {dimensions = array<i32: 0>} : vector<8x2048xi32>
    %79 = arith.sitofp %78 : vector<8x2048xi32> to vector<8x2048xf32>
    %80 = vector.broadcast %51 : vector<1x2048xf32> to vector<8x2048xf32>
    %81 = arith.subf %79, %80 : vector<8x2048xf32>
    %82 = math.absf %81 : vector<8x2048xf32>
    %cst_23 = arith.constant 1.000000e+00 : f32
    %83 = vector.broadcast %cst_23 : f32 to vector<8x2048xf32>
    %84 = arith.subf %83, %82 : vector<8x2048xf32>
    %cst_24 = arith.constant 0.000000e+00 : f32
    %85 = vector.broadcast %cst_24 : f32 to vector<8x2048xf32>
    %86 = arith.maximumf %84, %85 : vector<8x2048xf32>
    %87 = vector.extract_strided_slice %77 {offsets = [0, 0], sizes = [8, 2048], strides = [1, 1]} : vector<96x2048xf32> to vector<8x2048xf32>
    %88 = arith.mulf %87, %86 : vector<8x2048xf32>
    %cst_25 = arith.constant dense<0.000000e+00> : vector<2048xf32>
    %89 = vector.multi_reduction <add>, %88, %cst_25 [0] : vector<8x2048xf32> to vector<2048xf32>
    %90 = vector.shape_cast %89 : vector<2048xf32> to vector<1x2048xf32>
    %91 = vector.extract_strided_slice %77 {offsets = [8, 0], sizes = [8, 2048], strides = [1, 1]} : vector<96x2048xf32> to vector<8x2048xf32>
    %92 = arith.mulf %91, %86 : vector<8x2048xf32>
    %cst_26 = arith.constant dense<0.000000e+00> : vector<2048xf32>
    %93 = vector.multi_reduction <add>, %92, %cst_26 [0] : vector<8x2048xf32> to vector<2048xf32>
    %94 = vector.shape_cast %93 : vector<2048xf32> to vector<1x2048xf32>
    %95 = vector.extract_strided_slice %77 {offsets = [16, 0], sizes = [8, 2048], strides = [1, 1]} : vector<96x2048xf32> to vector<8x2048xf32>
    %96 = arith.mulf %95, %86 : vector<8x2048xf32>
    %cst_27 = arith.constant dense<0.000000e+00> : vector<2048xf32>
    %97 = vector.multi_reduction <add>, %96, %cst_27 [0] : vector<8x2048xf32> to vector<2048xf32>
    %98 = vector.shape_cast %97 : vector<2048xf32> to vector<1x2048xf32>
    %99 = vector.extract_strided_slice %77 {offsets = [24, 0], sizes = [8, 2048], strides = [1, 1]} : vector<96x2048xf32> to vector<8x2048xf32>
    %100 = arith.mulf %99, %86 : vector<8x2048xf32>
    %cst_28 = arith.constant dense<0.000000e+00> : vector<2048xf32>
    %101 = vector.multi_reduction <add>, %100, %cst_28 [0] : vector<8x2048xf32> to vector<2048xf32>
    %102 = vector.shape_cast %101 : vector<2048xf32> to vector<1x2048xf32>
    %103 = vector.extract_strided_slice %77 {offsets = [32, 0], sizes = [8, 2048], strides = [1, 1]} : vector<96x2048xf32> to vector<8x2048xf32>
    %104 = arith.mulf %103, %86 : vector<8x2048xf32>
    %cst_29 = arith.constant dense<0.000000e+00> : vector<2048xf32>
    %105 = vector.multi_reduction <add>, %104, %cst_29 [0] : vector<8x2048xf32> to vector<2048xf32>
    %106 = vector.shape_cast %105 : vector<2048xf32> to vector<1x2048xf32>
    %107 = vector.extract_strided_slice %77 {offsets = [40, 0], sizes = [8, 2048], strides = [1, 1]} : vector<96x2048xf32> to vector<8x2048xf32>
    %108 = arith.mulf %107, %86 : vector<8x2048xf32>
    %cst_30 = arith.constant dense<0.000000e+00> : vector<2048xf32>
    %109 = vector.multi_reduction <add>, %108, %cst_30 [0] : vector<8x2048xf32> to vector<2048xf32>
    %110 = vector.shape_cast %109 : vector<2048xf32> to vector<1x2048xf32>
    %111 = vector.extract_strided_slice %77 {offsets = [48, 0], sizes = [8, 2048], strides = [1, 1]} : vector<96x2048xf32> to vector<8x2048xf32>
    %112 = arith.mulf %111, %86 : vector<8x2048xf32>
    %cst_31 = arith.constant dense<0.000000e+00> : vector<2048xf32>
    %113 = vector.multi_reduction <add>, %112, %cst_31 [0] : vector<8x2048xf32> to vector<2048xf32>
    %114 = vector.shape_cast %113 : vector<2048xf32> to vector<1x2048xf32>
    %115 = vector.extract_strided_slice %77 {offsets = [56, 0], sizes = [8, 2048], strides = [1, 1]} : vector<96x2048xf32> to vector<8x2048xf32>
    %116 = arith.mulf %115, %86 : vector<8x2048xf32>
    %cst_32 = arith.constant dense<0.000000e+00> : vector<2048xf32>
    %117 = vector.multi_reduction <add>, %116, %cst_32 [0] : vector<8x2048xf32> to vector<2048xf32>
    %118 = vector.shape_cast %117 : vector<2048xf32> to vector<1x2048xf32>
    %119 = vector.extract_strided_slice %77 {offsets = [64, 0], sizes = [8, 2048], strides = [1, 1]} : vector<96x2048xf32> to vector<8x2048xf32>
    %120 = arith.mulf %119, %86 : vector<8x2048xf32>
    %cst_33 = arith.constant dense<0.000000e+00> : vector<2048xf32>
    %121 = vector.multi_reduction <add>, %120, %cst_33 [0] : vector<8x2048xf32> to vector<2048xf32>
    %122 = vector.shape_cast %121 : vector<2048xf32> to vector<1x2048xf32>
    %123 = vector.extract_strided_slice %77 {offsets = [72, 0], sizes = [8, 2048], strides = [1, 1]} : vector<96x2048xf32> to vector<8x2048xf32>
    %124 = arith.mulf %123, %86 : vector<8x2048xf32>
    %cst_34 = arith.constant dense<0.000000e+00> : vector<2048xf32>
    %125 = vector.multi_reduction <add>, %124, %cst_34 [0] : vector<8x2048xf32> to vector<2048xf32>
    %126 = vector.shape_cast %125 : vector<2048xf32> to vector<1x2048xf32>
    %127 = vector.extract_strided_slice %77 {offsets = [80, 0], sizes = [8, 2048], strides = [1, 1]} : vector<96x2048xf32> to vector<8x2048xf32>
    %128 = arith.mulf %127, %86 : vector<8x2048xf32>
    %cst_35 = arith.constant dense<0.000000e+00> : vector<2048xf32>
    %129 = vector.multi_reduction <add>, %128, %cst_35 [0] : vector<8x2048xf32> to vector<2048xf32>
    %130 = vector.shape_cast %129 : vector<2048xf32> to vector<1x2048xf32>
    %131 = vector.extract_strided_slice %77 {offsets = [88, 0], sizes = [8, 2048], strides = [1, 1]} : vector<96x2048xf32> to vector<8x2048xf32>
    %132 = arith.mulf %131, %86 : vector<8x2048xf32>
    %cst_36 = arith.constant dense<0.000000e+00> : vector<2048xf32>
    %133 = vector.multi_reduction <add>, %132, %cst_36 [0] : vector<8x2048xf32> to vector<2048xf32>
    %134 = vector.shape_cast %133 : vector<2048xf32> to vector<1x2048xf32>
    %135 = tpu.concatenate %90, %94, %98, %102, %106, %110, %114, %118, %122, %126, %130, %134 in 0 : vector<1x2048xf32>, vector<1x2048xf32>, vector<1x2048xf32>, vector<1x2048xf32>, vector<1x2048xf32>, vector<1x2048xf32>, vector<1x2048xf32>, vector<1x2048xf32>, vector<1x2048xf32>, vector<1x2048xf32>, vector<1x2048xf32>, vector<1x2048xf32> -> vector<12x2048xf32>
    %c0_37 = arith.constant 0 : index
    %c0_38 = arith.constant 0 : index
    %136 = vector.load %arg4[%c0_37, %c0_38] : memref<12x2048xf32, #tpu.memory_space<vmem>>, vector<12x2048xf32>
    tpu.vector_store %arg4[%c0_37, %c0_38], %135 {strides = array<i32>} : memref<12x2048xf32, #tpu.memory_space<vmem>>, vector<12x2048xf32>,
    %137 = arith.mulf %90, %1 : vector<1x2048xf32>
    %138 = arith.mulf %94, %2 : vector<1x2048xf32>
    %139 = arith.addf %137, %138 : vector<1x2048xf32>
    %140 = arith.mulf %98, %3 : vector<1x2048xf32>
    %141 = arith.addf %139, %140 : vector<1x2048xf32>
    %142 = arith.addf %141, %102 : vector<1x2048xf32>
    %143 = arith.mulf %106, %1 : vector<1x2048xf32>
    %144 = arith.mulf %110, %2 : vector<1x2048xf32>
    %145 = arith.addf %143, %144 : vector<1x2048xf32>
    %146 = arith.mulf %114, %3 : vector<1x2048xf32>
    %147 = arith.addf %145, %146 : vector<1x2048xf32>
    %148 = arith.addf %147, %118 : vector<1x2048xf32>
    %149 = arith.mulf %122, %1 : vector<1x2048xf32>
    %150 = arith.mulf %126, %2 : vector<1x2048xf32>
    %151 = arith.addf %149, %150 : vector<1x2048xf32>
    %152 = arith.mulf %130, %3 : vector<1x2048xf32>
    %153 = arith.addf %151, %152 : vector<1x2048xf32>
    %154 = arith.addf %153, %134 : vector<1x2048xf32>
    %155 = tpu.concatenate %142, %148, %154 in 0 : vector<1x2048xf32>, vector<1x2048xf32>, vector<1x2048xf32> -> vector<3x2048xf32>
    %c0_39 = arith.constant 0 : index
    %c0_40 = arith.constant 0 : index
    %156 = vector.load %arg5[%c0_39, %c0_40] : memref<3x2048xf32, #tpu.memory_space<vmem>>, vector<3x2048xf32>
    tpu.vector_store %arg5[%c0_39, %c0_40], %155 {strides = array<i32>} : memref<3x2048xf32, #tpu.memory_space<vmem>>, vector<3x2048xf32>,
    return
  }
  func.func @transform_0(%arg0: i32, %arg1: memref<4xi32, #tpu.memory_space<smem>>) -> (i32, i32) {
    %c0_i32 = arith.constant 0 : i32
    %c0_i32_0 = arith.constant 0 : i32
    return %c0_i32, %arg0 : i32, i32
  }
  func.func @transform_1(%arg0: i32, %arg1: memref<4xi32, #tpu.memory_space<smem>>) -> (i32, i32) {
    %c0_i32 = arith.constant 0 : i32
    %c0_i32_0 = arith.constant 0 : i32
    %c0_i32_1 = arith.constant 0 : i32
    return %c0_i32, %c0_i32_0 : i32, i32
  }
  func.func @transform_2(%arg0: i32, %arg1: memref<4xi32, #tpu.memory_space<smem>>) -> (i32, i32) {
    %c0_i32 = arith.constant 0 : i32
    %c0_i32_0 = arith.constant 0 : i32
    return %c0_i32, %arg0 : i32, i32
  }
  func.func @transform_3(%arg0: i32, %arg1: memref<4xi32, #tpu.memory_space<smem>>) -> (i32, i32) {
    %c0_i32 = arith.constant 0 : i32
    %c0_i32_0 = arith.constant 0 : i32
    return %c0_i32, %arg0 : i32, i32
  }
}

</mosaic_0001>

<llo_original>
// kernel: tpu_custom_call.1
$region0: #{tpu_custom_call.1}
  #allocation0 [shape = 'u32[]', space=smem, size = 0x4, offset = 0x4, fixed_abs, tag = 'smem constant byte address 0x4 - core index']
  #allocation1 [shape = 'u32[144,128]{1,0:T(1,128)}', space=vmem, size = 0x12000, scoped, tag = 'internal scratch']
  #allocation2 [shape = 's32[1]{0}', space=sflag, size = 0x4, scoped, tag = 'scoped memory for tpu_custom_call.1']
  #allocation3 [shape = 'u8[512]{0}', space=smem, size = 0x200, scoped, tag = 'prefetched SMEM operand 0']
  %s0 = inlined_call_operand.hbm [shape: s32[4], index: 0, kind: input, shape index: {}]
  %s1 = inlined_call_operand.hbm [shape: f32[3,4096], index: 1, kind: input, shape index: {}]
  %s2 = inlined_call_operand.hbm [shape: f32[96,256], index: 2, kind: input, shape index: {}]
  %s3 = inlined_call_operand.hbm [shape: f32[12,4096], index: 3, kind: output, shape index: {0}]
  %s4 = inlined_call_operand.hbm [shape: f32[3,4096], index: 4, kind: output, shape index: {1}]
  %5 = xla_tuple %s3, %s4
  %s6 = sld [smem:[#allocation0]]
  $region57: #{tpu_custom_call.1} parent=0
    _
  %s8 = ssub.s32 1, %s6
  %s9 = scalar_select 0, %s8, %s6
  %11 = dma.hbm_to_smem %s0, 16, [#allocation3], [#allocation2]
  %12 = dma.done [#allocation2], 16
  %13 = sfence
  $region1: #{tpu_custom_call.1} parent=0
    #allocation4 [shape = 'u8[65536]{0}', space=vmem, size = 0x10000, scoped, tag = 'input window, operand 1']
    #allocation5 [shape = 's32[2]{0}', space=sflag, size = 0x8, scoped, tag = 'scoped memory for tpu_custom_call.1']
    #allocation6 [shape = 's32[2]{0}', space=sflag, size = 0x8, scoped, tag = 'scoped memory for tpu_custom_call.1']
    #allocation7 [shape = 'u8[98304]{0}', space=vmem, size = 0x18000, scoped, tag = 'input window, operand 2, single buffered']
    #allocation8 [shape = 's32[1]{0}', space=sflag, size = 0x4, scoped, tag = 'scoped memory for tpu_custom_call.1']
    #allocation9 [shape = 'u8[262144]{0}', space=vmem, size = 0x40000, scoped, tag = 'output window, operand 0']
    #allocation10 [shape = 'u8[65536]{0}', space=vmem, size = 0x10000, scoped, tag = 'output window, operand 1']
    #allocation11 [shape = 's32[2]{0}', space=sflag, size = 0x8, scoped, tag = 'scoped memory for tpu_custom_call.1']
    %14 = vsyncpa [#allocation5], 0
    %s15 = scalar_lea.sflag [#allocation5], 1
    %16 = vsyncpa %s15, 0
    %17 = vsyncpa [#allocation8], 0
    %18 = vsyncpa [#allocation6], 0
    %s19 = scalar_lea.sflag [#allocation6], 1
    %20 = vsyncpa %s19, 0
    %21 = vsyncpa [#allocation11], 0
    %s22 = scalar_lea.sflag [#allocation11], 1
    %23 = vsyncpa %s22, 0
    loop: start=0, step=1, limit=4
    $region2: #{tpu_custom_call.1} parent=1 // loop_pre_header
      _
    $region3: #{tpu_custom_call.1} parent=1 // loop_header
      %s25 = sphi 0, %s29
      %p26 = scmp.ge.s32.totalorder %s25, 4
      %s35 = sphi 0, %s37
      %s38 = sphi 0, %s35
      %s39 = sphi 0, %s38
      %s55 = sphi 0, %s39
      %s59 = sphi 0, %s59
      %s61 = sphi 0, %s59
      %s62 = sphi 0, %s61
      %s76 = sphi 0, %s62
      %s82 = sphi 0, %s84
      %s85 = sphi 0, %s82
      %s86 = sphi 0, %s85
      %s102 = sphi 0, %s86
      %s108 = sphi 0, %s110
      %s111 = sphi 0, %s108
      %s112 = sphi 0, %s111
      %s128 = sphi 0, %s112
    $region4: #{tpu_custom_call.1} parent=1 // loop_header_branch
      %28 = sbr.rel (%p26) target = $region8
    $region5: #{tpu_custom_call.1} parent=1 // loop_body
      %s30 = ssub.s32 %s25, 1
      %s31 = ssub.s32 %s25, 2
      %s32 = sadd.s32 %s25, 1
      %s33 = ssub.s32 %s25, %s32
      %p34 = scmp.eq.s32.totalorder %s33, 0
      %s36 = sadd.s32 %s35, 1
      %s37 = scalar_select %p34, %s35, %s36
      %p40 = pneg %p34
      %p41 = scmp.eq.s32.totalorder %s25, 1
      %p42 = por %p40, %p41
      %p43 = scmp.ne.s32.totalorder %s35, %s38
      %p44 = scmp.eq.s32.totalorder %s25, 0
      %p45 = por %p43, %p44
      %p46 = scmp.ne.s32.totalorder %s35, %s38
      %p47 = scmp.eq.s32.totalorder %s30, 1
      %p48 = por %p46, %p47
      %p49 = scmp.ne.s32.totalorder %s38, %s39
      %p50 = scmp.eq.s32.totalorder %s30, 0
      %p51 = por %p49, %p50
      %p52 = scmp.ne.s32.totalorder %s38, %s39
      %p53 = scmp.eq.s32.totalorder %s31, 1
      %p54 = por %p52, %p53
      %p56 = scmp.ne.s32.totalorder %s39, %s55
      %p57 = scmp.eq.s32.totalorder %s31, 0
      %p58 = por %p56, %p57
      %s60 = sadd.s32 %s59, 1
      %p63 = scmp.eq.s32.totalorder %s25, 1
      %p64 = scmp.ne.s32.totalorder %s59, %s61
      %p65 = scmp.eq.s32.totalorder %s25, 0
      %p66 = por %p64, %p65
      %p67 = scmp.ne.s32.totalorder %s59, %s61
      %p68 = scmp.eq.s32.totalorder %s30, 1
      %p69 = por %p67, %p68
      %p70 = scmp.ne.s32.totalorder %s61, %s62
      %p71 = scmp.eq.s32.totalorder %s30, 0
      %p72 = por %p70, %p71
      %p73 = scmp.ne.s32.totalorder %s61, %s62
      %p74 = scmp.eq.s32.totalorder %s31, 1
      %p75 = por %p73, %p74
      %p77 = scmp.ne.s32.totalorder %s62, %s76
      %p78 = scmp.eq.s32.totalorder %s31, 0
      %p79 = por %p77, %p78
      %s80 = ssub.s32 %s25, %s32
      %p81 = scmp.eq.s32.totalorder %s80, 0
      %s83 = sadd.s32 %s82, 1
      %s84 = scalar_select %p81, %s82, %s83
      %p87 = pneg %p81
      %p88 = scmp.eq.s32.totalorder %s25, 1
      %p89 = por %p87, %p88
      %p90 = scmp.ne.s32.totalorder %s82, %s85
      %p91 = scmp.eq.s32.totalorder %s25, 0
      %p92 = por %p90, %p91
      %p93 = scmp.ne.s32.totalorder %s82, %s85
      %p94 = scmp.eq.s32.totalorder %s30, 1
      %p95 = por %p93, %p94
      %p96 = scmp.ne.s32.totalorder %s85, %s86
      %p97 = scmp.eq.s32.totalorder %s30, 0
      %p98 = por %p96, %p97
      %p99 = scmp.ne.s32.totalorder %s85, %s86
      %p100 = scmp.eq.s32.totalorder %s31, 1
      %p101 = por %p99, %p100
      %p103 = scmp.ne.s32.totalorder %s86, %s102
      %p104 = scmp.eq.s32.totalorder %s31, 0
      %p105 = por %p103, %p104
      %s106 = ssub.s32 %s25, %s32
      %p107 = scmp.eq.s32.totalorder %s106, 0
      %s109 = sadd.s32 %s108, 1
      %s110 = scalar_select %p107, %s108, %s109
      %p113 = pneg %p107
      %p114 = scmp.eq.s32.totalorder %s25, 1
      %p115 = por %p113, %p114
      %p116 = scmp.ne.s32.totalorder %s108, %s111
      %p117 = scmp.eq.s32.totalorder %s25, 0
      %p118 = por %p116, %p117
      %p119 = scmp.ne.s32.totalorder %s108, %s111
      %p120 = scmp.eq.s32.totalorder %s30, 1
      %p121 = por %p119, %p120
      %p122 = scmp.ne.s32.totalorder %s111, %s112
      %p123 = scmp.eq.s32.totalorder %s30, 0
      %p124 = por %p122, %p123
      %p125 = scmp.ne.s32.totalorder %s111, %s112
      %p126 = scmp.eq.s32.totalorder %s31, 1
      %p127 = por %p125, %p126
      %p129 = scmp.ne.s32.totalorder %s112, %s128
      %p130 = scmp.eq.s32.totalorder %s31, 0
      %p131 = por %p129, %p130
      %p132 = scmp.le.s32.totalorder 1, %s25
      %p133 = scmp.lt.s32.totalorder %s25, 3
      %p134 = pnand %p132, %p133
      %p135 = pneg %p134
      // Predicated region
      $region9: #{tpu_custom_call.1} parent=5 // pred_check
        _
      $region10: #{tpu_custom_call.1} parent=5 // pred_check_branch
        %137 = sbr.rel (%p134) target = $region12
      $region11: #{tpu_custom_call.1} parent=5 // pred_region
        %s138 = ssub.s32 %s25, 1
        // Predicated region
        $region13: #{tpu_custom_call.1} parent=11 // pred_check
          %p139 = pneg %p72
        $region14: #{tpu_custom_call.1} parent=11 // pred_check_branch
          %141 = sbr.rel (%p139) target = $region16
        $region15: #{tpu_custom_call.1} parent=11 // pred_region
          %s143 = ssub.s32 3072, 3072
          %144 = vsyncadd [#allocation8], %s143
          %s145 = sshll.u32 [#allocation7], 4
          %s146 = int_to_ptr.vmem [resolvable:$true] %s145
          %151 = dma.hbm_to_vmem [thread:$0]  %s2, 3072, %s146, [#allocation8], 256, 256, 16
        $region16: #{tpu_custom_call.1} parent=11 // pred_fallthru
          _
      $region12: #{tpu_custom_call.1} parent=5 // pred_fallthru
        _
      %p152 = scmp.lt.s32.totalorder %s25, 2
      // Predicated region
      $region17: #{tpu_custom_call.1} parent=5 // pred_check
        %p153 = pneg %p152
      $region18: #{tpu_custom_call.1} parent=5 // pred_check_branch
        %155 = sbr.rel (%p153) target = $region20
      $region19: #{tpu_custom_call.1} parent=5 // pred_region
        // Predicated region
        $region21: #{tpu_custom_call.1} parent=19 // pred_check
          %p156 = pneg %p45
        $region22: #{tpu_custom_call.1} parent=19 // pred_check_branch
          %158 = sbr.rel (%p156) target = $region24
        $region23: #{tpu_custom_call.1} parent=19 // pred_region
          %s159 = sand.u32 %s35, 1
          %s160 = scalar_lea.sflag [#allocation5], %s159
          %s161 = sand.u32 %s35, 1
          %s162 = smul.addr %s161, 64
          %s163 = scalar_lea.vmem [#allocation4], %s162
          %s164 = smul.u32 16, %s25
          %s166 = ssub.s32 1024, 1024
          %167 = vsyncadd %s160, %s166
          %s168 = smul.addr %s164, 64
          %s169 = scalar_lea.hbm %s1, %s168
          %s171 = sshll.u32 %s163, 4
          %s172 = int_to_ptr.vmem [resolvable:$true] %s171
          %174 = dma.hbm_to_vmem [thread:$0]  %s169, 1024, %s172, %s160
        $region24: #{tpu_custom_call.1} parent=19 // pred_fallthru
          _
      $region20: #{tpu_custom_call.1} parent=5 // pred_fallthru
        _
      %p175 = scmp.le.s32.totalorder 1, %s25
      %p176 = scmp.lt.s32.totalorder %s25, 3
      %p177 = pnand %p175, %p176
      %p178 = pneg %p177
      // Predicated region
      $region25: #{tpu_custom_call.1} parent=5 // pred_check
        _
      $region26: #{tpu_custom_call.1} parent=5 // pred_check_branch
        %180 = sbr.rel (%p177) target = $region28
      $region27: #{tpu_custom_call.1} parent=5 // pred_region
        %s181 = ssub.s32 %s25, 1
        %s182 = sand.u32 %s38, 1
        %s183 = scalar_lea.sflag [#allocation5], %s182
        %s184 = sand.u32 %s38, 1
        %s185 = smul.addr %s184, 64
        %s186 = scalar_lea.vmem [#allocation4], %s185
        // Predicated region
        $region29: #{tpu_custom_call.1} parent=27 // pred_check
          %p187 = pneg %p51
        $region30: #{tpu_custom_call.1} parent=27 // pred_check_branch
          %189 = sbr.rel (%p187) target = $region32
        $region31: #{tpu_custom_call.1} parent=27 // pred_region
          %190 = dma.done %s183, 1024
        $region32: #{tpu_custom_call.1} parent=27 // pred_fallthru
          _
        // Predicated region
        $region33: #{tpu_custom_call.1} parent=27 // pred_check
          %p191 = pneg %p72
        $region34: #{tpu_custom_call.1} parent=27 // pred_check_branch
          %193 = sbr.rel (%p191) target = $region36
        $region35: #{tpu_custom_call.1} parent=27 // pred_region
          %194 = dma.done [#allocation8], 3072
        $region36: #{tpu_custom_call.1} parent=27 // pred_fallthru
          _
        %s195 = sand.u32 %s38, 1
        %s196 = scalar_lea.sflag [#allocation5], %s195
        %s197 = sand.u32 %s38, 1
        %s198 = smul.addr %s197, 64
        %s199 = scalar_lea.vmem [#allocation4], %s198
        %p200 = pneg %p51
        %p201 = pneg %p48
        %p202 = pneg %p72
        %p203 = pneg %p69
        %p204 = pneg %p98
        %p205 = pneg %p95
        %s206 = sand.u32 %s85, 1
        %s207 = scalar_lea.sflag [#allocation6], %s206
        %s208 = sand.u32 %s85, 1
        %s209 = smul.addr %s208, 256
        %s210 = scalar_lea.vmem [#allocation9], %s209
        %p211 = pneg %p124
        %p212 = pneg %p121
        %s213 = sand.u32 %s111, 1
        %s214 = scalar_lea.sflag [#allocation11], %s213
        %s215 = sand.u32 %s111, 1
        %s216 = smul.addr %s215, 64
        %s217 = scalar_lea.vmem [#allocation10], %s216
        %s218 = smul.u32 16, %s30
        %s219 = smul.u32 16, %s30
        %s220 = smul.u32 16, %s30
        %v221 = vld [vmem:[%s186] sm:$0x77]
        %v222 = vld [vmem:[%s186 + $0x8] sm:$0x77]
        %v223 = vld [vmem:[%s186 + $0x10] sm:$0x77]
        %v224 = vld [vmem:[%s186 + $0x18] sm:$0x77]
        %v225 = vld [vmem:[%s186 + $0x20] sm:$0x77]
        %v226 = vld [vmem:[%s186 + $0x28] sm:$0x77]
        %v227 = vld [vmem:[%s186 + $0x30] sm:$0x77]
        %v228 = vld [vmem:[%s186 + $0x38] sm:$0x77]
        %v229 = vmul.f32 %v221, 0.299
        %v230 = vmul.f32 %v222, 0.299
        %v231 = vmul.f32 %v223, 0.299
        %v232 = vmul.f32 %v224, 0.299
        %v233 = vmul.f32 %v225, 0.299
        %v234 = vmul.f32 %v226, 0.299
        %v235 = vmul.f32 %v227, 0.299
        %v236 = vmul.f32 %v228, 0.299
        %v237 = vmul.f32 %v221, 0.587
        %v238 = vmul.f32 %v222, 0.587
        %v239 = vmul.f32 %v223, 0.587
        %v240 = vmul.f32 %v224, 0.587
        %v241 = vmul.f32 %v225, 0.587
        %v242 = vmul.f32 %v226, 0.587
        %v243 = vmul.f32 %v227, 0.587
        %v244 = vmul.f32 %v228, 0.587
        %v253 = vrot.slane %v237, 5
        %v254 = vrot.slane %v253, 4
        %v255 = vrot.slane %v238, 5
        %v256 = vrot.slane %v255, 4
        %v257 = vrot.slane %v239, 5
        %v258 = vrot.slane %v257, 4
        %v259 = vrot.slane %v240, 5
        %v260 = vrot.slane %v259, 4
        %v261 = vrot.slane %v241, 5
        %v262 = vrot.slane %v261, 4
        %v263 = vrot.slane %v242, 5
        %v264 = vrot.slane %v263, 4
        %v265 = vrot.slane %v243, 5
        %v266 = vrot.slane %v265, 4
        %v267 = vrot.slane %v244, 5
        %v268 = vrot.slane %v267, 4
        %v277 = vadd.f32 %v229, %v254
        %v278 = vadd.f32 %v230, %v256
        %v279 = vadd.f32 %v231, %v258
        %v280 = vadd.f32 %v232, %v260
        %v281 = vadd.f32 %v233, %v262
        %v282 = vadd.f32 %v234, %v264
        %v283 = vadd.f32 %v235, %v266
        %v284 = vadd.f32 %v236, %v268
        %v285 = vmul.f32 %v221, 0.114
        %v286 = vmul.f32 %v222, 0.114
        %v287 = vmul.f32 %v223, 0.114
        %v288 = vmul.f32 %v224, 0.114
        %v289 = vmul.f32 %v225, 0.114
        %v290 = vmul.f32 %v226, 0.114
        %v291 = vmul.f32 %v227, 0.114
        %v292 = vmul.f32 %v228, 0.114
        %v301 = vrot.slane %v285, 6
        %v302 = vrot.slane %v301, 4
        %v303 = vrot.slane %v286, 6
        %v304 = vrot.slane %v303, 4
        %v305 = vrot.slane %v287, 6
        %v306 = vrot.slane %v305, 4
        %v307 = vrot.slane %v288, 6
        %v308 = vrot.slane %v307, 4
        %v309 = vrot.slane %v289, 6
        %v310 = vrot.slane %v309, 4
        %v311 = vrot.slane %v290, 6
        %v312 = vrot.slane %v311, 4
        %v313 = vrot.slane %v291, 6
        %v314 = vrot.slane %v313, 4
        %v315 = vrot.slane %v292, 6
        %v316 = vrot.slane %v315, 4
        %v325 = vadd.f32 %v277, %v302
        %v326 = vadd.f32 %v278, %v304
        %v327 = vadd.f32 %v279, %v306
        %v328 = vadd.f32 %v280, %v308
        %v329 = vadd.f32 %v281, %v310
        %v330 = vadd.f32 %v282, %v312
        %v331 = vadd.f32 %v283, %v314
        %v332 = vadd.f32 %v284, %v316
        %v333 = vlaneseq
        %v334 = vand.u32 %v333, 127
        %v335 = vadd.s32 %v334, 128
        %v336 = vadd.s32 %v334, 256
        %v337 = vadd.s32 %v334, 384
        %v338 = vadd.s32 %v334, 512
        %v339 = vadd.s32 %v334, 640
        %v340 = vadd.s32 %v334, 768
        %v341 = vadd.s32 %v334, 896
        %v342 = vadd.s32 %v334, 1024
        %v343 = vadd.s32 %v334, 1152
        %v344 = vadd.s32 %v334, 1280
        %v345 = vadd.s32 %v334, 1408
        %v346 = vadd.s32 %v334, 1536
        %v347 = vadd.s32 %v334, 1664
        %v348 = vadd.s32 %v334, 1792
        %v349 = vadd.s32 %v334, 1920
        %s350 = smul.u32 %s30, 2
        %s351 = sld [smem:[#allocation3 + %s350]]
        %v352 = vstv %s351
        %v353 = vcvt.s32.f32 %v352
        %s354 = sadd.s32 %s350, 1
        %s355 = sld [smem:[#allocation3 + %s354]]
        %v356 = vstv %s355
        %v357 = vadd.s32 %v334, %v356
        %v358 = vadd.s32 %v335, %v356
        %v359 = vadd.s32 %v336, %v356
        %v360 = vadd.s32 %v337, %v356
        %v361 = vadd.s32 %v338, %v356
        %v362 = vadd.s32 %v339, %v356
        %v363 = vadd.s32 %v340, %v356
        %v364 = vadd.s32 %v341, %v356
        %v365 = vadd.s32 %v342, %v356
        %v366 = vadd.s32 %v343, %v356
        %v367 = vadd.s32 %v344, %v356
        %v368 = vadd.s32 %v345, %v356
        %v369 = vadd.s32 %v346, %v356
        %v370 = vadd.s32 %v347, %v356
        %v371 = vadd.s32 %v348, %v356
        %v372 = vadd.s32 %v349, %v356
        %v373 = vcvt.s32.f32 %v357
        %v374 = vcvt.s32.f32 %v358
        %v375 = vcvt.s32.f32 %v359
        %v376 = vcvt.s32.f32 %v360
        %v377 = vcvt.s32.f32 %v361
        %v378 = vcvt.s32.f32 %v362
        %v379 = vcvt.s32.f32 %v363
        %v380 = vcvt.s32.f32 %v364
        %v381 = vcvt.s32.f32 %v365
        %v382 = vcvt.s32.f32 %v366
        %v383 = vcvt.s32.f32 %v367
        %v384 = vcvt.s32.f32 %v368
        %v385 = vcvt.s32.f32 %v369
        %v386 = vcvt.s32.f32 %v370
        %v387 = vcvt.s32.f32 %v371
        %v388 = vcvt.s32.f32 %v372
        %v389 = vadd.f32 %v373, 0.5
        %v390 = vadd.f32 %v374, 0.5
        %v391 = vadd.f32 %v375, 0.5
        %v392 = vadd.f32 %v376, 0.5
        %v393 = vadd.f32 %v377, 0.5
        %v394 = vadd.f32 %v378, 0.5
        %v395 = vadd.f32 %v379, 0.5
        %v396 = vadd.f32 %v380, 0.5
        %v397 = vadd.f32 %v381, 0.5
        %v398 = vadd.f32 %v382, 0.5
        %v399 = vadd.f32 %v383, 0.5
        %v400 = vadd.f32 %v384, 0.5
        %v401 = vadd.f32 %v385, 0.5
        %v402 = vadd.f32 %v386, 0.5
        %v403 = vadd.f32 %v387, 0.5
        %v404 = vadd.f32 %v388, 0.5
        %v405 = vmul.f32 %v389, 0.017857144
        %v406 = vmul.f32 %v390, 0.017857144
        %v407 = vmul.f32 %v391, 0.017857144
        %v408 = vmul.f32 %v392, 0.017857144
        %v409 = vmul.f32 %v393, 0.017857144
        %v410 = vmul.f32 %v394, 0.017857144
        %v411 = vmul.f32 %v395, 0.017857144
        %v412 = vmul.f32 %v396, 0.017857144
        %v413 = vmul.f32 %v397, 0.017857144
        %v414 = vmul.f32 %v398, 0.017857144
        %v415 = vmul.f32 %v399, 0.017857144
        %v416 = vmul.f32 %v400, 0.017857144
        %v417 = vmul.f32 %v401, 0.017857144
        %v418 = vmul.f32 %v402, 0.017857144
        %v419 = vmul.f32 %v403, 0.017857144
        %v420 = vmul.f32 %v404, 0.017857144
        %v421 = vfloor.f32 %v405
        %v422 = vfloor.f32 %v406
        %v423 = vfloor.f32 %v407
        %v424 = vfloor.f32 %v408
        %v425 = vfloor.f32 %v409
        %v426 = vfloor.f32 %v410
        %v427 = vfloor.f32 %v411
        %v428 = vfloor.f32 %v412
        %v429 = vfloor.f32 %v413
        %v430 = vfloor.f32 %v414
        %v431 = vfloor.f32 %v415
        %v432 = vfloor.f32 %v416
        %v433 = vfloor.f32 %v417
        %v434 = vfloor.f32 %v418
        %v435 = vfloor.f32 %v419
        %v436 = vfloor.f32 %v420
        %v437 = vadd.f32 %v353, %v421
        %v438 = vadd.f32 %v353, %v422
        %v439 = vadd.f32 %v353, %v423
        %v440 = vadd.f32 %v353, %v424
        %v441 = vadd.f32 %v353, %v425
        %v442 = vadd.f32 %v353, %v426
        %v443 = vadd.f32 %v353, %v427
        %v444 = vadd.f32 %v353, %v428
        %v445 = vadd.f32 %v353, %v429
        %v446 = vadd.f32 %v353, %v430
        %v447 = vadd.f32 %v353, %v431
        %v448 = vadd.f32 %v353, %v432
        %v449 = vadd.f32 %v353, %v433
        %v450 = vadd.f32 %v353, %v434
        %v451 = vadd.f32 %v353, %v435
        %v452 = vadd.f32 %v353, %v436
        %v453 = vmul.f32 %v421, 56.0
        %v454 = vmul.f32 %v422, 56.0
        %v455 = vmul.f32 %v423, 56.0
        %v456 = vmul.f32 %v424, 56.0
        %v457 = vmul.f32 %v425, 56.0
        %v458 = vmul.f32 %v426, 56.0
        %v459 = vmul.f32 %v427, 56.0
        %v460 = vmul.f32 %v428, 56.0
        %v461 = vmul.f32 %v429, 56.0
        %v462 = vmul.f32 %v430, 56.0
        %v463 = vmul.f32 %v431, 56.0
        %v464 = vmul.f32 %v432, 56.0
        %v465 = vmul.f32 %v433, 56.0
        %v466 = vmul.f32 %v434, 56.0
        %v467 = vmul.f32 %v435, 56.0
        %v468 = vmul.f32 %v436, 56.0
        %v469 = vsub.f32 %v373, %v453
        %v470 = vsub.f32 %v374, %v454
        %v471 = vsub.f32 %v375, %v455
        %v472 = vsub.f32 %v376, %v456
        %v473 = vsub.f32 %v377, %v457
        %v474 = vsub.f32 %v378, %v458
        %v475 = vsub.f32 %v379, %v459
        %v476 = vsub.f32 %v380, %v460
        %v477 = vsub.f32 %v381, %v461
        %v478 = vsub.f32 %v382, %v462
        %v479 = vsub.f32 %v383, %v463
        %v480 = vsub.f32 %v384, %v464
        %v481 = vsub.f32 %v385, %v465
        %v482 = vsub.f32 %v386, %v466
        %v483 = vsub.f32 %v387, %v467
        %v484 = vsub.f32 %v388, %v468
        %v485 = vmul.f32 %v437, 0.3846154
        %v486 = vmul.f32 %v438, 0.3846154
        %v487 = vmul.f32 %v439, 0.3846154
        %v488 = vmul.f32 %v440, 0.3846154
        %v489 = vmul.f32 %v441, 0.3846154
        %v490 = vmul.f32 %v442, 0.3846154
        %v491 = vmul.f32 %v443, 0.3846154
        %v492 = vmul.f32 %v444, 0.3846154
        %v493 = vmul.f32 %v445, 0.3846154
        %v494 = vmul.f32 %v446, 0.3846154
        %v495 = vmul.f32 %v447, 0.3846154
        %v496 = vmul.f32 %v448, 0.3846154
        %v497 = vmul.f32 %v449, 0.3846154
        %v498 = vmul.f32 %v450, 0.3846154
        %v499 = vmul.f32 %v451, 0.3846154
        %v500 = vmul.f32 %v452, 0.3846154
        %v501 = vmax.f32 %v485, 0.0
        %v502 = vmax.f32 %v486, 0.0
        %v503 = vmax.f32 %v487, 0.0
        %v504 = vmax.f32 %v488, 0.0
        %v505 = vmax.f32 %v489, 0.0
        %v506 = vmax.f32 %v490, 0.0
        %v507 = vmax.f32 %v491, 0.0
        %v508 = vmax.f32 %v492, 0.0
        %v509 = vmax.f32 %v493, 0.0
        %v510 = vmax.f32 %v494, 0.0
        %v511 = vmax.f32 %v495, 0.0
        %v512 = vmax.f32 %v496, 0.0
        %v513 = vmax.f32 %v497, 0.0
        %v514 = vmax.f32 %v498, 0.0
        %v515 = vmax.f32 %v499, 0.0
        %v516 = vmax.f32 %v500, 0.0
        %v517 = vmin.f32 %v501, 15.0
        %v518 = vmin.f32 %v502, 15.0
        %v519 = vmin.f32 %v503, 15.0
        %v520 = vmin.f32 %v504, 15.0
        %v521 = vmin.f32 %v505, 15.0
        %v522 = vmin.f32 %v506, 15.0
        %v523 = vmin.f32 %v507, 15.0
        %v524 = vmin.f32 %v508, 15.0
        %v525 = vmin.f32 %v509, 15.0
        %v526 = vmin.f32 %v510, 15.0
        %v527 = vmin.f32 %v511, 15.0
        %v528 = vmin.f32 %v512, 15.0
        %v529 = vmin.f32 %v513, 15.0
        %v530 = vmin.f32 %v514, 15.0
        %v531 = vmin.f32 %v515, 15.0
        %v532 = vmin.f32 %v516, 15.0
        %v533 = vmul.f32 %v469, 0.27272728
        %v534 = vmul.f32 %v470, 0.27272728
        %v535 = vmul.f32 %v471, 0.27272728
        %v536 = vmul.f32 %v472, 0.27272728
        %v537 = vmul.f32 %v473, 0.27272728
        %v538 = vmul.f32 %v474, 0.27272728
        %v539 = vmul.f32 %v475, 0.27272728
        %v540 = vmul.f32 %v476, 0.27272728
        %v541 = vmul.f32 %v477, 0.27272728
        %v542 = vmul.f32 %v478, 0.27272728
        %v543 = vmul.f32 %v479, 0.27272728
        %v544 = vmul.f32 %v480, 0.27272728
        %v545 = vmul.f32 %v481, 0.27272728
        %v546 = vmul.f32 %v482, 0.27272728
        %v547 = vmul.f32 %v483, 0.27272728
        %v548 = vmul.f32 %v484, 0.27272728
        %v549 = vmax.f32 %v533, 0.0
        %v550 = vmax.f32 %v534, 0.0
        %v551 = vmax.f32 %v535, 0.0
        %v552 = vmax.f32 %v536, 0.0
        %v553 = vmax.f32 %v537, 0.0
        %v554 = vmax.f32 %v538, 0.0
        %v555 = vmax.f32 %v539, 0.0
        %v556 = vmax.f32 %v540, 0.0
        %v557 = vmax.f32 %v541, 0.0
        %v558 = vmax.f32 %v542, 0.0
        %v559 = vmax.f32 %v543, 0.0
        %v560 = vmax.f32 %v544, 0.0
        %v561 = vmax.f32 %v545, 0.0
        %v562 = vmax.f32 %v546, 0.0
        %v563 = vmax.f32 %v547, 0.0
        %v564 = vmax.f32 %v548, 0.0
        %v565 = vmin.f32 %v549, 15.0
        %v566 = vmin.f32 %v550, 15.0
        %v567 = vmin.f32 %v551, 15.0
        %v568 = vmin.f32 %v552, 15.0
        %v569 = vmin.f32 %v553, 15.0
        %v570 = vmin.f32 %v554, 15.0
        %v571 = vmin.f32 %v555, 15.0
        %v572 = vmin.f32 %v556, 15.0
        %v573 = vmin.f32 %v557, 15.0
        %v574 = vmin.f32 %v558, 15.0
        %v575 = vmin.f32 %v559, 15.0
        %v576 = vmin.f32 %v560, 15.0
        %v577 = vmin.f32 %v561, 15.0
        %v578 = vmin.f32 %v562, 15.0
        %v579 = vmin.f32 %v563, 15.0
        %v580 = vmin.f32 %v564, 15.0
        %v581 = vmax.f32 %v325, 0.0
        %v582 = vmax.f32 %v326, 0.0
        %v583 = vmax.f32 %v327, 0.0
        %v584 = vmax.f32 %v328, 0.0
        %v585 = vmax.f32 %v329, 0.0
        %v586 = vmax.f32 %v330, 0.0
        %v587 = vmax.f32 %v331, 0.0
        %v588 = vmax.f32 %v332, 0.0
        %v589 = vmin.f32 %v581, 1.0
        %v590 = vmin.f32 %v582, 1.0
        %v591 = vmin.f32 %v583, 1.0
        %v592 = vmin.f32 %v584, 1.0
        %v593 = vmin.f32 %v585, 1.0
        %v594 = vmin.f32 %v586, 1.0
        %v595 = vmin.f32 %v587, 1.0
        %v596 = vmin.f32 %v588, 1.0
        %v597 = vmul.f32 %v589, 7.0
        %v598 = vmul.f32 %v590, 7.0
        %v599 = vmul.f32 %v591, 7.0
        %v600 = vmul.f32 %v592, 7.0
        %v601 = vmul.f32 %v593, 7.0
        %v602 = vmul.f32 %v594, 7.0
        %v603 = vmul.f32 %v595, 7.0
        %v604 = vmul.f32 %v596, 7.0
        %v605 = vlaneseq
        %v606 = vshrl.u32 %v605, 7
        %v607 = vadd.s32 %v606, 8
        %v608 = vcvt.s32.f32 %v606
        %v609 = vcvt.s32.f32 %v607
        %v610 = vsub.f32 %v608, %v517
        %v611 = vsub.f32 %v608, %v518
        %v612 = vsub.f32 %v608, %v519
        %v613 = vsub.f32 %v608, %v520
        %v614 = vsub.f32 %v608, %v521
        %v615 = vsub.f32 %v608, %v522
        %v616 = vsub.f32 %v608, %v523
        %v617 = vsub.f32 %v608, %v524
        %v618 = vsub.f32 %v608, %v525
        %v619 = vsub.f32 %v608, %v526
        %v620 = vsub.f32 %v608, %v527
        %v621 = vsub.f32 %v608, %v528
        %v622 = vsub.f32 %v608, %v529
        %v623 = vsub.f32 %v608, %v530
        %v624 = vsub.f32 %v608, %v531
        %v625 = vsub.f32 %v608, %v532
        %v626 = vsub.f32 %v609, %v517
        %v627 = vsub.f32 %v609, %v518
        %v628 = vsub.f32 %v609, %v519
        %v629 = vsub.f32 %v609, %v520
        %v630 = vsub.f32 %v609, %v521
        %v631 = vsub.f32 %v609, %v522
        %v632 = vsub.f32 %v609, %v523
        %v633 = vsub.f32 %v609, %v524
        %v634 = vsub.f32 %v609, %v525
        %v635 = vsub.f32 %v609, %v526
        %v636 = vsub.f32 %v609, %v527
        %v637 = vsub.f32 %v609, %v528
        %v638 = vsub.f32 %v609, %v529
        %v639 = vsub.f32 %v609, %v530
        %v640 = vsub.f32 %v609, %v531
        %v641 = vsub.f32 %v609, %v532
        %v642 = vand.u32 2147483647, %v610
        %v643 = vand.u32 2147483647, %v611
        %v644 = vand.u32 2147483647, %v612
        %v645 = vand.u32 2147483647, %v613
        %v646 = vand.u32 2147483647, %v614
        %v647 = vand.u32 2147483647, %v615
        %v648 = vand.u32 2147483647, %v616
        %v649 = vand.u32 2147483647, %v617
        %v650 = vand.u32 2147483647, %v618
        %v651 = vand.u32 2147483647, %v619
        %v652 = vand.u32 2147483647, %v620
        %v653 = vand.u32 2147483647, %v621
        %v654 = vand.u32 2147483647, %v622
        %v655 = vand.u32 2147483647, %v623
        %v656 = vand.u32 2147483647, %v624
        %v657 = vand.u32 2147483647, %v625
        %v658 = vand.u32 2147483647, %v626
        %v659 = vand.u32 2147483647, %v627
        %v660 = vand.u32 2147483647, %v628
        %v661 = vand.u32 2147483647, %v629
        %v662 = vand.u32 2147483647, %v630
        %v663 = vand.u32 2147483647, %v631
        %v664 = vand.u32 2147483647, %v632
        %v665 = vand.u32 2147483647, %v633
        %v666 = vand.u32 2147483647, %v634
        %v667 = vand.u32 2147483647, %v635
        %v668 = vand.u32 2147483647, %v636
        %v669 = vand.u32 2147483647, %v637
        %v670 = vand.u32 2147483647, %v638
        %v671 = vand.u32 2147483647, %v639
        %v672 = vand.u32 2147483647, %v640
        %v673 = vand.u32 2147483647, %v641
        %v674 = vsub.f32 1.0, %v642
        %v675 = vsub.f32 1.0, %v643
        %v676 = vsub.f32 1.0, %v644
        %v677 = vsub.f32 1.0, %v645
        %v678 = vsub.f32 1.0, %v646
        %v679 = vsub.f32 1.0, %v647
        %v680 = vsub.f32 1.0, %v648
        %v681 = vsub.f32 1.0, %v649
        %v682 = vsub.f32 1.0, %v650
        %v683 = vsub.f32 1.0, %v651
        %v684 = vsub.f32 1.0, %v652
        %v685 = vsub.f32 1.0, %v653
        %v686 = vsub.f32 1.0, %v654
        %v687 = vsub.f32 1.0, %v655
        %v688 = vsub.f32 1.0, %v656
        %v689 = vsub.f32 1.0, %v657
        %v690 = vsub.f32 1.0, %v658
        %v691 = vsub.f32 1.0, %v659
        %v692 = vsub.f32 1.0, %v660
        %v693 = vsub.f32 1.0, %v661
        %v694 = vsub.f32 1.0, %v662
        %v695 = vsub.f32 1.0, %v663
        %v696 = vsub.f32 1.0, %v664
        %v697 = vsub.f32 1.0, %v665
        %v698 = vsub.f32 1.0, %v666
        %v699 = vsub.f32 1.0, %v667
        %v700 = vsub.f32 1.0, %v668
        %v701 = vsub.f32 1.0, %v669
        %v702 = vsub.f32 1.0, %v670
        %v703 = vsub.f32 1.0, %v671
        %v704 = vsub.f32 1.0, %v672
        %v705 = vsub.f32 1.0, %v673
        %v706 = vmax.f32 %v674, 0.0
        %v707 = vmax.f32 %v675, 0.0
        %v708 = vmax.f32 %v676, 0.0
        %v709 = vmax.f32 %v677, 0.0
        %v710 = vmax.f32 %v678, 0.0
        %v711 = vmax.f32 %v679, 0.0
        %v712 = vmax.f32 %v680, 0.0
        %v713 = vmax.f32 %v681, 0.0
        %v714 = vmax.f32 %v682, 0.0
        %v715 = vmax.f32 %v683, 0.0
        %v716 = vmax.f32 %v684, 0.0
        %v717 = vmax.f32 %v685, 0.0
        %v718 = vmax.f32 %v686, 0.0
        %v719 = vmax.f32 %v687, 0.0
        %v720 = vmax.f32 %v688, 0.0
        %v721 = vmax.f32 %v689, 0.0
        %v722 = vmax.f32 %v690, 0.0
        %v723 = vmax.f32 %v691, 0.0
        %v724 = vmax.f32 %v692, 0.0
        %v725 = vmax.f32 %v693, 0.0
        %v726 = vmax.f32 %v694, 0.0
        %v727 = vmax.f32 %v695, 0.0
        %v728 = vmax.f32 %v696, 0.0
        %v729 = vmax.f32 %v697, 0.0
        %v730 = vmax.f32 %v698, 0.0
        %v731 = vmax.f32 %v699, 0.0
        %v732 = vmax.f32 %v700, 0.0
        %v733 = vmax.f32 %v701, 0.0
        %v734 = vmax.f32 %v702, 0.0
        %v735 = vmax.f32 %v703, 0.0
        %v736 = vmax.f32 %v704, 0.0
        %v737 = vmax.f32 %v705, 0.0
        %v738 = vsub.f32 %v608, %v565
        %v739 = vsub.f32 %v608, %v566
        %v740 = vsub.f32 %v608, %v567
        %v741 = vsub.f32 %v608, %v568
        %v742 = vsub.f32 %v608, %v569
        %v743 = vsub.f32 %v608, %v570
        %v744 = vsub.f32 %v608, %v571
        %v745 = vsub.f32 %v608, %v572
        %v746 = vsub.f32 %v608, %v573
        %v747 = vsub.f32 %v608, %v574
        %v748 = vsub.f32 %v608, %v575
        %v749 = vsub.f32 %v608, %v576
        %v750 = vsub.f32 %v608, %v577
        %v751 = vsub.f32 %v608, %v578
        %v752 = vsub.f32 %v608, %v579
        %v753 = vsub.f32 %v608, %v580
        %v754 = vsub.f32 %v609, %v565
        %v755 = vsub.f32 %v609, %v566
        %v756 = vsub.f32 %v609, %v567
        %v757 = vsub.f32 %v609, %v568
        %v758 = vsub.f32 %v609, %v569
        %v759 = vsub.f32 %v609, %v570
        %v760 = vsub.f32 %v609, %v571
        %v761 = vsub.f32 %v609, %v572
        %v762 = vsub.f32 %v609, %v573
        %v763 = vsub.f32 %v609, %v574
        %v764 = vsub.f32 %v609, %v575
        %v765 = vsub.f32 %v609, %v576
        %v766 = vsub.f32 %v609, %v577
        %v767 = vsub.f32 %v609, %v578
        %v768 = vsub.f32 %v609, %v579
        %v769 = vsub.f32 %v609, %v580
        %v770 = vand.u32 2147483647, %v738
        %v771 = vand.u32 2147483647, %v739
        %v772 = vand.u32 2147483647, %v740
        %v773 = vand.u32 2147483647, %v741
        %v774 = vand.u32 2147483647, %v742
        %v775 = vand.u32 2147483647, %v743
        %v776 = vand.u32 2147483647, %v744
        %v777 = vand.u32 2147483647, %v745
        %v778 = vand.u32 2147483647, %v746
        %v779 = vand.u32 2147483647, %v747
        %v780 = vand.u32 2147483647, %v748
        %v781 = vand.u32 2147483647, %v749
        %v782 = vand.u32 2147483647, %v750
        %v783 = vand.u32 2147483647, %v751
        %v784 = vand.u32 2147483647, %v752
        %v785 = vand.u32 2147483647, %v753
        %v786 = vand.u32 2147483647, %v754
        %v787 = vand.u32 2147483647, %v755
        %v788 = vand.u32 2147483647, %v756
        %v789 = vand.u32 2147483647, %v757
        %v790 = vand.u32 2147483647, %v758
        %v791 = vand.u32 2147483647, %v759
        %v792 = vand.u32 2147483647, %v760
        %v793 = vand.u32 2147483647, %v761
        %v794 = vand.u32 2147483647, %v762
        %v795 = vand.u32 2147483647, %v763
        %v796 = vand.u32 2147483647, %v764
        %v797 = vand.u32 2147483647, %v765
        %v798 = vand.u32 2147483647, %v766
        %v799 = vand.u32 2147483647, %v767
        %v800 = vand.u32 2147483647, %v768
        %v801 = vand.u32 2147483647, %v769
        %v802 = vsub.f32 1.0, %v770
        %v803 = vsub.f32 1.0, %v771
        %v804 = vsub.f32 1.0, %v772
        %v805 = vsub.f32 1.0, %v773
        %v806 = vsub.f32 1.0, %v774
        %v807 = vsub.f32 1.0, %v775
        %v808 = vsub.f32 1.0, %v776
        %v809 = vsub.f32 1.0, %v777
        %v810 = vsub.f32 1.0, %v778
        %v811 = vsub.f32 1.0, %v779
        %v812 = vsub.f32 1.0, %v780
        %v813 = vsub.f32 1.0, %v781
        %v814 = vsub.f32 1.0, %v782
        %v815 = vsub.f32 1.0, %v783
        %v816 = vsub.f32 1.0, %v784
        %v817 = vsub.f32 1.0, %v785
        %v818 = vsub.f32 1.0, %v786
        %v819 = vsub.f32 1.0, %v787
        %v820 = vsub.f32 1.0, %v788
        %v821 = vsub.f32 1.0, %v789
        %v822 = vsub.f32 1.0, %v790
        %v823 = vsub.f32 1.0, %v791
        %v824 = vsub.f32 1.0, %v792
        %v825 = vsub.f32 1.0, %v793
        %v826 = vsub.f32 1.0, %v794
        %v827 = vsub.f32 1.0, %v795
        %v828 = vsub.f32 1.0, %v796
        %v829 = vsub.f32 1.0, %v797
        %v830 = vsub.f32 1.0, %v798
        %v831 = vsub.f32 1.0, %v799
        %v832 = vsub.f32 1.0, %v800
        %v833 = vsub.f32 1.0, %v801
        %v834 = vmax.f32 %v802, 0.0
        %v835 = vmax.f32 %v803, 0.0
        %v836 = vmax.f32 %v804, 0.0
        %v837 = vmax.f32 %v805, 0.0
        %v838 = vmax.f32 %v806, 0.0
        %v839 = vmax.f32 %v807, 0.0
        %v840 = vmax.f32 %v808, 0.0
        %v841 = vmax.f32 %v809, 0.0
        %v842 = vmax.f32 %v810, 0.0
        %v843 = vmax.f32 %v811, 0.0
        %v844 = vmax.f32 %v812, 0.0
        %v845 = vmax.f32 %v813, 0.0
        %v846 = vmax.f32 %v814, 0.0
        %v847 = vmax.f32 %v815, 0.0
        %v848 = vmax.f32 %v816, 0.0
        %v849 = vmax.f32 %v817, 0.0
        %v850 = vmax.f32 %v818, 0.0
        %v851 = vmax.f32 %v819, 0.0
        %v852 = vmax.f32 %v820, 0.0
        %v853 = vmax.f32 %v821, 0.0
        %v854 = vmax.f32 %v822, 0.0
        %v855 = vmax.f32 %v823, 0.0
        %v856 = vmax.f32 %v824, 0.0
        %v857 = vmax.f32 %v825, 0.0
        %v858 = vmax.f32 %v826, 0.0
        %v859 = vmax.f32 %v827, 0.0
        %v860 = vmax.f32 %v828, 0.0
        %v861 = vmax.f32 %v829, 0.0
        %v862 = vmax.f32 %v830, 0.0
        %v863 = vmax.f32 %v831, 0.0
        %v864 = vmax.f32 %v832, 0.0
        %v865 = vmax.f32 %v833, 0.0
        %v898 = vcombine.low %v706, %v707
        %v899 = vcombine.high %v706, %v707
        %v900 = vcombine.low %v708, %v709
        %v901 = vcombine.high %v708, %v709
        %v902 = vcombine.low %v710, %v711
        %v903 = vcombine.high %v710, %v711
        %v904 = vcombine.low %v712, %v713
        %v905 = vcombine.high %v712, %v713
        %v907 = vunpack.c.l.s4 1966171168
        %v908 = vunpack.c.0.s8 %v907
        %v909 = vlaneseq
        %v910 = vshrl.u32 %v909, 7
        %v911 = vsub.s32 %v908, %v910
        %v912 = vrot.slane %v898, %v911
        %v914 = vunpack.c.l.s4 1966171168
        %v915 = vunpack.c.0.s8 %v914
        %v916 = vlaneseq
        %v917 = vshrl.u32 %v916, 7
        %v918 = vsub.s32 %v915, %v917
        %v919 = vrot.slane %v899, %v918
        %v921 = vunpack.c.l.s4 1966171168
        %v922 = vunpack.c.0.s8 %v921
        %v923 = vlaneseq
        %v924 = vshrl.u32 %v923, 7
        %v925 = vsub.s32 %v922, %v924
        %v926 = vrot.slane %v900, %v925
        %v928 = vunpack.c.l.s4 1966171168
        %v929 = vunpack.c.0.s8 %v928
        %v930 = vlaneseq
        %v931 = vshrl.u32 %v930, 7
        %v932 = vsub.s32 %v929, %v931
        %v933 = vrot.slane %v901, %v932
        %v935 = vunpack.c.l.s4 1966171168
        %v936 = vunpack.c.0.s8 %v935
        %v937 = vlaneseq
        %v938 = vshrl.u32 %v937, 7
        %v939 = vsub.s32 %v936, %v938
        %v940 = vrot.slane %v902, %v939
        %v942 = vunpack.c.l.s4 1966171168
        %v943 = vunpack.c.0.s8 %v942
        %v944 = vlaneseq
        %v945 = vshrl.u32 %v944, 7
        %v946 = vsub.s32 %v943, %v945
        %v947 = vrot.slane %v903, %v946
        %v949 = vunpack.c.l.s4 1966171168
        %v950 = vunpack.c.0.s8 %v949
        %v951 = vlaneseq
        %v952 = vshrl.u32 %v951, 7
        %v953 = vsub.s32 %v950, %v952
        %v954 = vrot.slane %v904, %v953
        %v956 = vunpack.c.l.s4 1966171168
        %v957 = vunpack.c.0.s8 %v956
        %v958 = vlaneseq
        %v959 = vshrl.u32 %v958, 7
        %v960 = vsub.s32 %v957, %v959
        %v961 = vrot.slane %v905, %v960
        %v962 = vcombine.low %v912, %v926
        %v963 = vcombine.high %v912, %v926
        %v964 = vcombine.low %v919, %v933
        %v965 = vcombine.high %v919, %v933
        %v966 = vcombine.low %v940, %v954
        %v967 = vcombine.high %v940, %v954
        %v968 = vcombine.low %v947, %v961
        %v969 = vcombine.high %v947, %v961
        %v971 = vunpack.c.l.s4 1966171168
        %v972 = vunpack.c.0.s8 %v971
        %v973 = vlaneseq
        %v974 = vshrl.u32 %v973, 7
        %v975 = vsub.s32 %v972, %v974
        %v976 = vrot.slane %v962, %v975
        %v978 = vunpack.c.l.s4 1966171168
        %v979 = vunpack.c.0.s8 %v978
        %v980 = vlaneseq
        %v981 = vshrl.u32 %v980, 7
        %v982 = vsub.s32 %v979, %v981
        %v983 = vrot.slane %v964, %v982
        %v985 = vunpack.c.l.s4 1966171168
        %v986 = vunpack.c.0.s8 %v985
        %v987 = vlaneseq
        %v988 = vshrl.u32 %v987, 7
        %v989 = vsub.s32 %v986, %v988
        %v990 = vrot.slane %v963, %v989
        %v992 = vunpack.c.l.s4 1966171168
        %v993 = vunpack.c.0.s8 %v992
        %v994 = vlaneseq
        %v995 = vshrl.u32 %v994, 7
        %v996 = vsub.s32 %v993, %v995
        %v997 = vrot.slane %v965, %v996
        %v999 = vunpack.c.l.s4 1966171168
        %v1000 = vunpack.c.0.s8 %v999
        %v1001 = vlaneseq
        %v1002 = vshrl.u32 %v1001, 7
        %v1003 = vsub.s32 %v1000, %v1002
        %v1004 = vrot.slane %v966, %v1003
        %v1006 = vunpack.c.l.s4 1966171168
        %v1007 = vunpack.c.0.s8 %v1006
        %v1008 = vlaneseq
        %v1009 = vshrl.u32 %v1008, 7
        %v1010 = vsub.s32 %v1007, %v1009
        %v1011 = vrot.slane %v968, %v1010
        %v1013 = vunpack.c.l.s4 1966171168
        %v1014 = vunpack.c.0.s8 %v1013
        %v1015 = vlaneseq
        %v1016 = vshrl.u32 %v1015, 7
        %v1017 = vsub.s32 %v1014, %v1016
        %v1018 = vrot.slane %v967, %v1017
        %v1020 = vunpack.c.l.s4 1966171168
        %v1021 = vunpack.c.0.s8 %v1020
        %v1022 = vlaneseq
        %v1023 = vshrl.u32 %v1022, 7
        %v1024 = vsub.s32 %v1021, %v1023
        %v1025 = vrot.slane %v969, %v1024
        %v1026 = vcombine.low %v976, %v1004
        %v1027 = vcombine.high %v976, %v1004
        %v1028 = vcombine.low %v983, %v1011
        %v1029 = vcombine.high %v983, %v1011
        %v1030 = vcombine.low %v990, %v1018
        %v1031 = vcombine.high %v990, %v1018
        %v1032 = vcombine.low %v997, %v1025
        %v1033 = vcombine.high %v997, %v1025
        %v1034 = vcombine.low %v714, %v715
        %v1035 = vcombine.high %v714, %v715
        %v1036 = vcombine.low %v716, %v717
        %v1037 = vcombine.high %v716, %v717
        %v1038 = vcombine.low %v718, %v719
        %v1039 = vcombine.high %v718, %v719
        %v1040 = vcombine.low %v720, %v721
        %v1041 = vcombine.high %v720, %v721
        %v1043 = vunpack.c.l.s4 1966171168
        %v1044 = vunpack.c.0.s8 %v1043
        %v1045 = vlaneseq
        %v1046 = vshrl.u32 %v1045, 7
        %v1047 = vsub.s32 %v1044, %v1046
        %v1048 = vrot.slane %v1034, %v1047
        %v1050 = vunpack.c.l.s4 1966171168
        %v1051 = vunpack.c.0.s8 %v1050
        %v1052 = vlaneseq
        %v1053 = vshrl.u32 %v1052, 7
        %v1054 = vsub.s32 %v1051, %v1053
        %v1055 = vrot.slane %v1035, %v1054
        %v1057 = vunpack.c.l.s4 1966171168
        %v1058 = vunpack.c.0.s8 %v1057
        %v1059 = vlaneseq
        %v1060 = vshrl.u32 %v1059, 7
        %v1061 = vsub.s32 %v1058, %v1060
        %v1062 = vrot.slane %v1036, %v1061
        %v1064 = vunpack.c.l.s4 1966171168
        %v1065 = vunpack.c.0.s8 %v1064
        %v1066 = vlaneseq
        %v1067 = vshrl.u32 %v1066, 7
        %v1068 = vsub.s32 %v1065, %v1067
        %v1069 = vrot.slane %v1037, %v1068
        %v1071 = vunpack.c.l.s4 1966171168
        %v1072 = vunpack.c.0.s8 %v1071
        %v1073 = vlaneseq
        %v1074 = vshrl.u32 %v1073, 7
        %v1075 = vsub.s32 %v1072, %v1074
        %v1076 = vrot.slane %v1038, %v1075
        %v1078 = vunpack.c.l.s4 1966171168
        %v1079 = vunpack.c.0.s8 %v1078
        %v1080 = vlaneseq
        %v1081 = vshrl.u32 %v1080, 7
        %v1082 = vsub.s32 %v1079, %v1081
        %v1083 = vrot.slane %v1039, %v1082
        %v1085 = vunpack.c.l.s4 1966171168
        %v1086 = vunpack.c.0.s8 %v1085
        %v1087 = vlaneseq
        %v1088 = vshrl.u32 %v1087, 7
        %v1089 = vsub.s32 %v1086, %v1088
        %v1090 = vrot.slane %v1040, %v1089
        %v1092 = vunpack.c.l.s4 1966171168
        %v1093 = vunpack.c.0.s8 %v1092
        %v1094 = vlaneseq
        %v1095 = vshrl.u32 %v1094, 7
        %v1096 = vsub.s32 %v1093, %v1095
        %v1097 = vrot.slane %v1041, %v1096
        %v1098 = vcombine.low %v1048, %v1062
        %v1099 = vcombine.high %v1048, %v1062
        %v1100 = vcombine.low %v1055, %v1069
        %v1101 = vcombine.high %v1055, %v1069
        %v1102 = vcombine.low %v1076, %v1090
        %v1103 = vcombine.high %v1076, %v1090
        %v1104 = vcombine.low %v1083, %v1097
        %v1105 = vcombine.high %v1083, %v1097
        %v1107 = vunpack.c.l.s4 1966171168
        %v1108 = vunpack.c.0.s8 %v1107
        %v1109 = vlaneseq
        %v1110 = vshrl.u32 %v1109, 7
        %v1111 = vsub.s32 %v1108, %v1110
        %v1112 = vrot.slane %v1098, %v1111
        %v1114 = vunpack.c.l.s4 1966171168
        %v1115 = vunpack.c.0.s8 %v1114
        %v1116 = vlaneseq
        %v1117 = vshrl.u32 %v1116, 7
        %v1118 = vsub.s32 %v1115, %v1117
        %v1119 = vrot.slane %v1100, %v1118
        %v1121 = vunpack.c.l.s4 1966171168
        %v1122 = vunpack.c.0.s8 %v1121
        %v1123 = vlaneseq
        %v1124 = vshrl.u32 %v1123, 7
        %v1125 = vsub.s32 %v1122, %v1124
        %v1126 = vrot.slane %v1099, %v1125
        %v1128 = vunpack.c.l.s4 1966171168
        %v1129 = vunpack.c.0.s8 %v1128
        %v1130 = vlaneseq
        %v1131 = vshrl.u32 %v1130, 7
        %v1132 = vsub.s32 %v1129, %v1131
        %v1133 = vrot.slane %v1101, %v1132
        %v1135 = vunpack.c.l.s4 1966171168
        %v1136 = vunpack.c.0.s8 %v1135
        %v1137 = vlaneseq
        %v1138 = vshrl.u32 %v1137, 7
        %v1139 = vsub.s32 %v1136, %v1138
        %v1140 = vrot.slane %v1102, %v1139
        %v1142 = vunpack.c.l.s4 1966171168
        %v1143 = vunpack.c.0.s8 %v1142
        %v1144 = vlaneseq
        %v1145 = vshrl.u32 %v1144, 7
        %v1146 = vsub.s32 %v1143, %v1145
        %v1147 = vrot.slane %v1104, %v1146
        %v1149 = vunpack.c.l.s4 1966171168
        %v1150 = vunpack.c.0.s8 %v1149
        %v1151 = vlaneseq
        %v1152 = vshrl.u32 %v1151, 7
        %v1153 = vsub.s32 %v1150, %v1152
        %v1154 = vrot.slane %v1103, %v1153
        %v1156 = vunpack.c.l.s4 1966171168
        %v1157 = vunpack.c.0.s8 %v1156
        %v1158 = vlaneseq
        %v1159 = vshrl.u32 %v1158, 7
        %v1160 = vsub.s32 %v1157, %v1159
        %v1161 = vrot.slane %v1105, %v1160
        %v1162 = vcombine.low %v1112, %v1140
        %v1163 = vcombine.high %v1112, %v1140
        %v1164 = vcombine.low %v1119, %v1147
        %v1165 = vcombine.high %v1119, %v1147
        %v1166 = vcombine.low %v1126, %v1154
        %v1167 = vcombine.high %v1126, %v1154
        %v1168 = vcombine.low %v1133, %v1161
        %v1169 = vcombine.high %v1133, %v1161
        %v1170 = vcombine.low %v722, %v723
        %v1171 = vcombine.high %v722, %v723
        %v1172 = vcombine.low %v724, %v725
        %v1173 = vcombine.high %v724, %v725
        %v1174 = vcombine.low %v726, %v727
        %v1175 = vcombine.high %v726, %v727
        %v1176 = vcombine.low %v728, %v729
        %v1177 = vcombine.high %v728, %v729
        %v1179 = vunpack.c.l.s4 1966171168
        %v1180 = vunpack.c.0.s8 %v1179
        %v1181 = vlaneseq
        %v1182 = vshrl.u32 %v1181, 7
        %v1183 = vsub.s32 %v1180, %v1182
        %v1184 = vrot.slane %v1170, %v1183
        %v1186 = vunpack.c.l.s4 1966171168
        %v1187 = vunpack.c.0.s8 %v1186
        %v1188 = vlaneseq
        %v1189 = vshrl.u32 %v1188, 7
        %v1190 = vsub.s32 %v1187, %v1189
        %v1191 = vrot.slane %v1171, %v1190
        %v1193 = vunpack.c.l.s4 1966171168
        %v1194 = vunpack.c.0.s8 %v1193
        %v1195 = vlaneseq
        %v1196 = vshrl.u32 %v1195, 7
        %v1197 = vsub.s32 %v1194, %v1196
        %v1198 = vrot.slane %v1172, %v1197
        %v1200 = vunpack.c.l.s4 1966171168
        %v1201 = vunpack.c.0.s8 %v1200
        %v1202 = vlaneseq
        %v1203 = vshrl.u32 %v1202, 7
        %v1204 = vsub.s32 %v1201, %v1203
        %v1205 = vrot.slane %v1173, %v1204
        %v1207 = vunpack.c.l.s4 1966171168
        %v1208 = vunpack.c.0.s8 %v1207
        %v1209 = vlaneseq
        %v1210 = vshrl.u32 %v1209, 7
        %v1211 = vsub.s32 %v1208, %v1210
        %v1212 = vrot.slane %v1174, %v1211
        %v1214 = vunpack.c.l.s4 1966171168
        %v1215 = vunpack.c.0.s8 %v1214
        %v1216 = vlaneseq
        %v1217 = vshrl.u32 %v1216, 7
        %v1218 = vsub.s32 %v1215, %v1217
        %v1219 = vrot.slane %v1175, %v1218
        %v1221 = vunpack.c.l.s4 1966171168
        %v1222 = vunpack.c.0.s8 %v1221
        %v1223 = vlaneseq
        %v1224 = vshrl.u32 %v1223, 7
        %v1225 = vsub.s32 %v1222, %v1224
        %v1226 = vrot.slane %v1176, %v1225
        %v1228 = vunpack.c.l.s4 1966171168
        %v1229 = vunpack.c.0.s8 %v1228
        %v1230 = vlaneseq
        %v1231 = vshrl.u32 %v1230, 7
        %v1232 = vsub.s32 %v1229, %v1231
        %v1233 = vrot.slane %v1177, %v1232
        %v1234 = vcombine.low %v1184, %v1198
        %v1235 = vcombine.high %v1184, %v1198
        %v1236 = vcombine.low %v1191, %v1205
        %v1237 = vcombine.high %v1191, %v1205
        %v1238 = vcombine.low %v1212, %v1226
        %v1239 = vcombine.high %v1212, %v1226
        %v1240 = vcombine.low %v1219, %v1233
        %v1241 = vcombine.high %v1219, %v1233
        %v1243 = vunpack.c.l.s4 1966171168
        %v1244 = vunpack.c.0.s8 %v1243
        %v1245 = vlaneseq
        %v1246 = vshrl.u32 %v1245, 7
        %v1247 = vsub.s32 %v1244, %v1246
        %v1248 = vrot.slane %v1234, %v1247
        %v1250 = vunpack.c.l.s4 1966171168
        %v1251 = vunpack.c.0.s8 %v1250
        %v1252 = vlaneseq
        %v1253 = vshrl.u32 %v1252, 7
        %v1254 = vsub.s32 %v1251, %v1253
        %v1255 = vrot.slane %v1236, %v1254
        %v1257 = vunpack.c.l.s4 1966171168
        %v1258 = vunpack.c.0.s8 %v1257
        %v1259 = vlaneseq
        %v1260 = vshrl.u32 %v1259, 7
        %v1261 = vsub.s32 %v1258, %v1260
        %v1262 = vrot.slane %v1235, %v1261
        %v1264 = vunpack.c.l.s4 1966171168
        %v1265 = vunpack.c.0.s8 %v1264
        %v1266 = vlaneseq
        %v1267 = vshrl.u32 %v1266, 7
        %v1268 = vsub.s32 %v1265, %v1267
        %v1269 = vrot.slane %v1237, %v1268
        %v1271 = vunpack.c.l.s4 1966171168
        %v1272 = vunpack.c.0.s8 %v1271
        %v1273 = vlaneseq
        %v1274 = vshrl.u32 %v1273, 7
        %v1275 = vsub.s32 %v1272, %v1274
        %v1276 = vrot.slane %v1238, %v1275
        %v1278 = vunpack.c.l.s4 1966171168
        %v1279 = vunpack.c.0.s8 %v1278
        %v1280 = vlaneseq
        %v1281 = vshrl.u32 %v1280, 7
        %v1282 = vsub.s32 %v1279, %v1281
        %v1283 = vrot.slane %v1240, %v1282
        %v1285 = vunpack.c.l.s4 1966171168
        %v1286 = vunpack.c.0.s8 %v1285
        %v1287 = vlaneseq
        %v1288 = vshrl.u32 %v1287, 7
        %v1289 = vsub.s32 %v1286, %v1288
        %v1290 = vrot.slane %v1239, %v1289
        %v1292 = vunpack.c.l.s4 1966171168
        %v1293 = vunpack.c.0.s8 %v1292
        %v1294 = vlaneseq
        %v1295 = vshrl.u32 %v1294, 7
        %v1296 = vsub.s32 %v1293, %v1295
        %v1297 = vrot.slane %v1241, %v1296
        %v1298 = vcombine.low %v1248, %v1276
        %v1299 = vcombine.high %v1248, %v1276
        %v1300 = vcombine.low %v1255, %v1283
        %v1301 = vcombine.high %v1255, %v1283
        %v1302 = vcombine.low %v1262, %v1290
        %v1303 = vcombine.high %v1262, %v1290
        %v1304 = vcombine.low %v1269, %v1297
        %v1305 = vcombine.high %v1269, %v1297
        %v1306 = vcombine.low %v730, %v731
        %v1307 = vcombine.high %v730, %v731
        %v1308 = vcombine.low %v732, %v733
        %v1309 = vcombine.high %v732, %v733
        %v1310 = vcombine.low %v734, %v735
        %v1311 = vcombine.high %v734, %v735
        %v1312 = vcombine.low %v736, %v737
        %v1313 = vcombine.high %v736, %v737
        %v1315 = vunpack.c.l.s4 1966171168
        %v1316 = vunpack.c.0.s8 %v1315
        %v1317 = vlaneseq
        %v1318 = vshrl.u32 %v1317, 7
        %v1319 = vsub.s32 %v1316, %v1318
        %v1320 = vrot.slane %v1306, %v1319
        %v1322 = vunpack.c.l.s4 1966171168
        %v1323 = vunpack.c.0.s8 %v1322
        %v1324 = vlaneseq
        %v1325 = vshrl.u32 %v1324, 7
        %v1326 = vsub.s32 %v1323, %v1325
        %v1327 = vrot.slane %v1307, %v1326
        %v1329 = vunpack.c.l.s4 1966171168
        %v1330 = vunpack.c.0.s8 %v1329
        %v1331 = vlaneseq
        %v1332 = vshrl.u32 %v1331, 7
        %v1333 = vsub.s32 %v1330, %v1332
        %v1334 = vrot.slane %v1308, %v1333
        %v1336 = vunpack.c.l.s4 1966171168
        %v1337 = vunpack.c.0.s8 %v1336
        %v1338 = vlaneseq
        %v1339 = vshrl.u32 %v1338, 7
        %v1340 = vsub.s32 %v1337, %v1339
        %v1341 = vrot.slane %v1309, %v1340
        %v1343 = vunpack.c.l.s4 1966171168
        %v1344 = vunpack.c.0.s8 %v1343
        %v1345 = vlaneseq
        %v1346 = vshrl.u32 %v1345, 7
        %v1347 = vsub.s32 %v1344, %v1346
        %v1348 = vrot.slane %v1310, %v1347
        %v1350 = vunpack.c.l.s4 1966171168
        %v1351 = vunpack.c.0.s8 %v1350
        %v1352 = vlaneseq
        %v1353 = vshrl.u32 %v1352, 7
        %v1354 = vsub.s32 %v1351, %v1353
        %v1355 = vrot.slane %v1311, %v1354
        %v1357 = vunpack.c.l.s4 1966171168
        %v1358 = vunpack.c.0.s8 %v1357
        %v1359 = vlaneseq
        %v1360 = vshrl.u32 %v1359, 7
        %v1361 = vsub.s32 %v1358, %v1360
        %v1362 = vrot.slane %v1312, %v1361
        %v1364 = vunpack.c.l.s4 1966171168
        %v1365 = vunpack.c.0.s8 %v1364
        %v1366 = vlaneseq
        %v1367 = vshrl.u32 %v1366, 7
        %v1368 = vsub.s32 %v1365, %v1367
        %v1369 = vrot.slane %v1313, %v1368
        %v1370 = vcombine.low %v1320, %v1334
        %v1371 = vcombine.high %v1320, %v1334
        %v1372 = vcombine.low %v1327, %v1341
        %v1373 = vcombine.high %v1327, %v1341
        %v1374 = vcombine.low %v1348, %v1362
        %v1375 = vcombine.high %v1348, %v1362
        %v1376 = vcombine.low %v1355, %v1369
        %v1377 = vcombine.high %v1355, %v1369
        %v1379 = vunpack.c.l.s4 1966171168
        %v1380 = vunpack.c.0.s8 %v1379
        %v1381 = vlaneseq
        %v1382 = vshrl.u32 %v1381, 7
        %v1383 = vsub.s32 %v1380, %v1382
        %v1384 = vrot.slane %v1370, %v1383
        %v1386 = vunpack.c.l.s4 1966171168
        %v1387 = vunpack.c.0.s8 %v1386
        %v1388 = vlaneseq
        %v1389 = vshrl.u32 %v1388, 7
        %v1390 = vsub.s32 %v1387, %v1389
        %v1391 = vrot.slane %v1372, %v1390
        %v1393 = vunpack.c.l.s4 1966171168
        %v1394 = vunpack.c.0.s8 %v1393
        %v1395 = vlaneseq
        %v1396 = vshrl.u32 %v1395, 7
        %v1397 = vsub.s32 %v1394, %v1396
        %v1398 = vrot.slane %v1371, %v1397
        %v1400 = vunpack.c.l.s4 1966171168
        %v1401 = vunpack.c.0.s8 %v1400
        %v1402 = vlaneseq
        %v1403 = vshrl.u32 %v1402, 7
        %v1404 = vsub.s32 %v1401, %v1403
        %v1405 = vrot.slane %v1373, %v1404
        %v1407 = vunpack.c.l.s4 1966171168
        %v1408 = vunpack.c.0.s8 %v1407
        %v1409 = vlaneseq
        %v1410 = vshrl.u32 %v1409, 7
        %v1411 = vsub.s32 %v1408, %v1410
        %v1412 = vrot.slane %v1374, %v1411
        %v1414 = vunpack.c.l.s4 1966171168
        %v1415 = vunpack.c.0.s8 %v1414
        %v1416 = vlaneseq
        %v1417 = vshrl.u32 %v1416, 7
        %v1418 = vsub.s32 %v1415, %v1417
        %v1419 = vrot.slane %v1376, %v1418
        %v1421 = vunpack.c.l.s4 1966171168
        %v1422 = vunpack.c.0.s8 %v1421
        %v1423 = vlaneseq
        %v1424 = vshrl.u32 %v1423, 7
        %v1425 = vsub.s32 %v1422, %v1424
        %v1426 = vrot.slane %v1375, %v1425
        %v1428 = vunpack.c.l.s4 1966171168
        %v1429 = vunpack.c.0.s8 %v1428
        %v1430 = vlaneseq
        %v1431 = vshrl.u32 %v1430, 7
        %v1432 = vsub.s32 %v1429, %v1431
        %v1433 = vrot.slane %v1377, %v1432
        %v1434 = vcombine.low %v1384, %v1412
        %v1435 = vcombine.high %v1384, %v1412
        %v1436 = vcombine.low %v1391, %v1419
        %v1437 = vcombine.high %v1391, %v1419
        %v1438 = vcombine.low %v1398, %v1426
        %v1439 = vcombine.high %v1398, %v1426
        %v1440 = vcombine.low %v1405, %v1433
        %v1441 = vcombine.high %v1405, %v1433
        %v1442 = vlaneseq
        %v1443 = vshrl.u32 %v1442, 7
        %v1444 = vsub.s32 0, %v1443
        %v1445 = vrot.slane %v1026, %v1444
        %v1446 = vlaneseq
        %v1447 = vshrl.u32 %v1446, 7
        %v1448 = vsub.s32 1, %v1447
        %v1449 = vrot.slane %v1026, %v1448
        %v1450 = vlaneseq
        %v1451 = vshrl.u32 %v1450, 7
        %v1452 = vsub.s32 2, %v1451
        %v1453 = vrot.slane %v1026, %v1452
        %v1454 = vlaneseq
        %v1455 = vshrl.u32 %v1454, 7
        %v1456 = vsub.s32 3, %v1455
        %v1457 = vrot.slane %v1026, %v1456
        %v1458 = vlaneseq
        %v1459 = vshrl.u32 %v1458, 7
        %v1460 = vsub.s32 4, %v1459
        %v1461 = vrot.slane %v1026, %v1460
        %v1462 = vlaneseq
        %v1463 = vshrl.u32 %v1462, 7
        %v1464 = vsub.s32 5, %v1463
        %v1465 = vrot.slane %v1026, %v1464
        %v1466 = vlaneseq
        %v1467 = vshrl.u32 %v1466, 7
        %v1468 = vsub.s32 6, %v1467
        %v1469 = vrot.slane %v1026, %v1468
        %v1470 = vlaneseq
        %v1471 = vshrl.u32 %v1470, 7
        %v1472 = vsub.s32 7, %v1471
        %v1473 = vrot.slane %v1026, %v1472
        %v1474 = vlaneseq
        %v1475 = vshrl.u32 %v1474, 7
        %v1476 = vsub.s32 0, %v1475
        %v1477 = vrot.slane %v1162, %v1476
        %v1478 = vlaneseq
        %v1479 = vshrl.u32 %v1478, 7
        %v1480 = vsub.s32 1, %v1479
        %v1481 = vrot.slane %v1162, %v1480
        %v1482 = vlaneseq
        %v1483 = vshrl.u32 %v1482, 7
        %v1484 = vsub.s32 2, %v1483
        %v1485 = vrot.slane %v1162, %v1484
        %v1486 = vlaneseq
        %v1487 = vshrl.u32 %v1486, 7
        %v1488 = vsub.s32 3, %v1487
        %v1489 = vrot.slane %v1162, %v1488
        %v1490 = vlaneseq
        %v1491 = vshrl.u32 %v1490, 7
        %v1492 = vsub.s32 4, %v1491
        %v1493 = vrot.slane %v1162, %v1492
        %v1494 = vlaneseq
        %v1495 = vshrl.u32 %v1494, 7
        %v1496 = vsub.s32 5, %v1495
        %v1497 = vrot.slane %v1162, %v1496
        %v1498 = vlaneseq
        %v1499 = vshrl.u32 %v1498, 7
        %v1500 = vsub.s32 6, %v1499
        %v1501 = vrot.slane %v1162, %v1500
        %v1502 = vlaneseq
        %v1503 = vshrl.u32 %v1502, 7
        %v1504 = vsub.s32 7, %v1503
        %v1505 = vrot.slane %v1162, %v1504
        %v1506 = vlaneseq
        %v1507 = vshrl.u32 %v1506, 7
        %v1508 = vsub.s32 0, %v1507
        %v1509 = vrot.slane %v1030, %v1508
        %v1510 = vlaneseq
        %v1511 = vshrl.u32 %v1510, 7
        %v1512 = vsub.s32 1, %v1511
        %v1513 = vrot.slane %v1030, %v1512
        %v1514 = vlaneseq
        %v1515 = vshrl.u32 %v1514, 7
        %v1516 = vsub.s32 2, %v1515
        %v1517 = vrot.slane %v1030, %v1516
        %v1518 = vlaneseq
        %v1519 = vshrl.u32 %v1518, 7
        %v1520 = vsub.s32 3, %v1519
        %v1521 = vrot.slane %v1030, %v1520
        %v1522 = vlaneseq
        %v1523 = vshrl.u32 %v1522, 7
        %v1524 = vsub.s32 4, %v1523
        %v1525 = vrot.slane %v1030, %v1524
        %v1526 = vlaneseq
        %v1527 = vshrl.u32 %v1526, 7
        %v1528 = vsub.s32 5, %v1527
        %v1529 = vrot.slane %v1030, %v1528
        %v1530 = vlaneseq
        %v1531 = vshrl.u32 %v1530, 7
        %v1532 = vsub.s32 6, %v1531
        %v1533 = vrot.slane %v1030, %v1532
        %v1534 = vlaneseq
        %v1535 = vshrl.u32 %v1534, 7
        %v1536 = vsub.s32 7, %v1535
        %v1537 = vrot.slane %v1030, %v1536
        %v1538 = vlaneseq
        %v1539 = vshrl.u32 %v1538, 7
        %v1540 = vsub.s32 0, %v1539
        %v1541 = vrot.slane %v1166, %v1540
        %v1542 = vlaneseq
        %v1543 = vshrl.u32 %v1542, 7
        %v1544 = vsub.s32 1, %v1543
        %v1545 = vrot.slane %v1166, %v1544
        %v1546 = vlaneseq
        %v1547 = vshrl.u32 %v1546, 7
        %v1548 = vsub.s32 2, %v1547
        %v1549 = vrot.slane %v1166, %v1548
        %v1550 = vlaneseq
        %v1551 = vshrl.u32 %v1550, 7
        %v1552 = vsub.s32 3, %v1551
        %v1553 = vrot.slane %v1166, %v1552
        %v1554 = vlaneseq
        %v1555 = vshrl.u32 %v1554, 7
        %v1556 = vsub.s32 4, %v1555
        %v1557 = vrot.slane %v1166, %v1556
        %v1558 = vlaneseq
        %v1559 = vshrl.u32 %v1558, 7
        %v1560 = vsub.s32 5, %v1559
        %v1561 = vrot.slane %v1166, %v1560
        %v1562 = vlaneseq
        %v1563 = vshrl.u32 %v1562, 7
        %v1564 = vsub.s32 6, %v1563
        %v1565 = vrot.slane %v1166, %v1564
        %v1566 = vlaneseq
        %v1567 = vshrl.u32 %v1566, 7
        %v1568 = vsub.s32 7, %v1567
        %v1569 = vrot.slane %v1166, %v1568
        %v1570 = vlaneseq
        %v1571 = vshrl.u32 %v1570, 7
        %v1572 = vsub.s32 0, %v1571
        %v1573 = vrot.slane %v1027, %v1572
        %v1574 = vlaneseq
        %v1575 = vshrl.u32 %v1574, 7
        %v1576 = vsub.s32 1, %v1575
        %v1577 = vrot.slane %v1027, %v1576
        %v1578 = vlaneseq
        %v1579 = vshrl.u32 %v1578, 7
        %v1580 = vsub.s32 2, %v1579
        %v1581 = vrot.slane %v1027, %v1580
        %v1582 = vlaneseq
        %v1583 = vshrl.u32 %v1582, 7
        %v1584 = vsub.s32 3, %v1583
        %v1585 = vrot.slane %v1027, %v1584
        %v1586 = vlaneseq
        %v1587 = vshrl.u32 %v1586, 7
        %v1588 = vsub.s32 4, %v1587
        %v1589 = vrot.slane %v1027, %v1588
        %v1590 = vlaneseq
        %v1591 = vshrl.u32 %v1590, 7
        %v1592 = vsub.s32 5, %v1591
        %v1593 = vrot.slane %v1027, %v1592
        %v1594 = vlaneseq
        %v1595 = vshrl.u32 %v1594, 7
        %v1596 = vsub.s32 6, %v1595
        %v1597 = vrot.slane %v1027, %v1596
        %v1598 = vlaneseq
        %v1599 = vshrl.u32 %v1598, 7
        %v1600 = vsub.s32 7, %v1599
        %v1601 = vrot.slane %v1027, %v1600
        %v1602 = vlaneseq
        %v1603 = vshrl.u32 %v1602, 7
        %v1604 = vsub.s32 0, %v1603
        %v1605 = vrot.slane %v1163, %v1604
        %v1606 = vlaneseq
        %v1607 = vshrl.u32 %v1606, 7
        %v1608 = vsub.s32 1, %v1607
        %v1609 = vrot.slane %v1163, %v1608
        %v1610 = vlaneseq
        %v1611 = vshrl.u32 %v1610, 7
        %v1612 = vsub.s32 2, %v1611
        %v1613 = vrot.slane %v1163, %v1612
        %v1614 = vlaneseq
        %v1615 = vshrl.u32 %v1614, 7
        %v1616 = vsub.s32 3, %v1615
        %v1617 = vrot.slane %v1163, %v1616
        %v1618 = vlaneseq
        %v1619 = vshrl.u32 %v1618, 7
        %v1620 = vsub.s32 4, %v1619
        %v1621 = vrot.slane %v1163, %v1620
        %v1622 = vlaneseq
        %v1623 = vshrl.u32 %v1622, 7
        %v1624 = vsub.s32 5, %v1623
        %v1625 = vrot.slane %v1163, %v1624
        %v1626 = vlaneseq
        %v1627 = vshrl.u32 %v1626, 7
        %v1628 = vsub.s32 6, %v1627
        %v1629 = vrot.slane %v1163, %v1628
        %v1630 = vlaneseq
        %v1631 = vshrl.u32 %v1630, 7
        %v1632 = vsub.s32 7, %v1631
        %v1633 = vrot.slane %v1163, %v1632
        %v1634 = vlaneseq
        %v1635 = vshrl.u32 %v1634, 7
        %v1636 = vsub.s32 0, %v1635
        %v1637 = vrot.slane %v1031, %v1636
        %v1638 = vlaneseq
        %v1639 = vshrl.u32 %v1638, 7
        %v1640 = vsub.s32 1, %v1639
        %v1641 = vrot.slane %v1031, %v1640
        %v1642 = vlaneseq
        %v1643 = vshrl.u32 %v1642, 7
        %v1644 = vsub.s32 2, %v1643
        %v1645 = vrot.slane %v1031, %v1644
        %v1646 = vlaneseq
        %v1647 = vshrl.u32 %v1646, 7
        %v1648 = vsub.s32 3, %v1647
        %v1649 = vrot.slane %v1031, %v1648
        %v1650 = vlaneseq
        %v1651 = vshrl.u32 %v1650, 7
        %v1652 = vsub.s32 4, %v1651
        %v1653 = vrot.slane %v1031, %v1652
        %v1654 = vlaneseq
        %v1655 = vshrl.u32 %v1654, 7
        %v1656 = vsub.s32 5, %v1655
        %v1657 = vrot.slane %v1031, %v1656
        %v1658 = vlaneseq
        %v1659 = vshrl.u32 %v1658, 7
        %v1660 = vsub.s32 6, %v1659
        %v1661 = vrot.slane %v1031, %v1660
        %v1662 = vlaneseq
        %v1663 = vshrl.u32 %v1662, 7
        %v1664 = vsub.s32 7, %v1663
        %v1665 = vrot.slane %v1031, %v1664
        %v1666 = vlaneseq
        %v1667 = vshrl.u32 %v1666, 7
        %v1668 = vsub.s32 0, %v1667
        %v1669 = vrot.slane %v1167, %v1668
        %v1670 = vlaneseq
        %v1671 = vshrl.u32 %v1670, 7
        %v1672 = vsub.s32 1, %v1671
        %v1673 = vrot.slane %v1167, %v1672
        %v1674 = vlaneseq
        %v1675 = vshrl.u32 %v1674, 7
        %v1676 = vsub.s32 2, %v1675
        %v1677 = vrot.slane %v1167, %v1676
        %v1678 = vlaneseq
        %v1679 = vshrl.u32 %v1678, 7
        %v1680 = vsub.s32 3, %v1679
        %v1681 = vrot.slane %v1167, %v1680
        %v1682 = vlaneseq
        %v1683 = vshrl.u32 %v1682, 7
        %v1684 = vsub.s32 4, %v1683
        %v1685 = vrot.slane %v1167, %v1684
        %v1686 = vlaneseq
        %v1687 = vshrl.u32 %v1686, 7
        %v1688 = vsub.s32 5, %v1687
        %v1689 = vrot.slane %v1167, %v1688
        %v1690 = vlaneseq
        %v1691 = vshrl.u32 %v1690, 7
        %v1692 = vsub.s32 6, %v1691
        %v1693 = vrot.slane %v1167, %v1692
        %v1694 = vlaneseq
        %v1695 = vshrl.u32 %v1694, 7
        %v1696 = vsub.s32 7, %v1695
        %v1697 = vrot.slane %v1167, %v1696
        %v1698 = vlaneseq
        %v1699 = vshrl.u32 %v1698, 7
        %v1700 = vsub.s32 0, %v1699
        %v1701 = vrot.slane %v1028, %v1700
        %v1702 = vlaneseq
        %v1703 = vshrl.u32 %v1702, 7
        %v1704 = vsub.s32 1, %v1703
        %v1705 = vrot.slane %v1028, %v1704
        %v1706 = vlaneseq
        %v1707 = vshrl.u32 %v1706, 7
        %v1708 = vsub.s32 2, %v1707
        %v1709 = vrot.slane %v1028, %v1708
        %v1710 = vlaneseq
        %v1711 = vshrl.u32 %v1710, 7
        %v1712 = vsub.s32 3, %v1711
        %v1713 = vrot.slane %v1028, %v1712
        %v1714 = vlaneseq
        %v1715 = vshrl.u32 %v1714, 7
        %v1716 = vsub.s32 4, %v1715
        %v1717 = vrot.slane %v1028, %v1716
        %v1718 = vlaneseq
        %v1719 = vshrl.u32 %v1718, 7
        %v1720 = vsub.s32 5, %v1719
        %v1721 = vrot.slane %v1028, %v1720
        %v1722 = vlaneseq
        %v1723 = vshrl.u32 %v1722, 7
        %v1724 = vsub.s32 6, %v1723
        %v1725 = vrot.slane %v1028, %v1724
        %v1726 = vlaneseq
        %v1727 = vshrl.u32 %v1726, 7
        %v1728 = vsub.s32 7, %v1727
        %v1729 = vrot.slane %v1028, %v1728
        %v1730 = vlaneseq
        %v1731 = vshrl.u32 %v1730, 7
        %v1732 = vsub.s32 0, %v1731
        %v1733 = vrot.slane %v1164, %v1732
        %v1734 = vlaneseq
        %v1735 = vshrl.u32 %v1734, 7
        %v1736 = vsub.s32 1, %v1735
        %v1737 = vrot.slane %v1164, %v1736
        %v1738 = vlaneseq
        %v1739 = vshrl.u32 %v1738, 7
        %v1740 = vsub.s32 2, %v1739
        %v1741 = vrot.slane %v1164, %v1740
        %v1742 = vlaneseq
        %v1743 = vshrl.u32 %v1742, 7
        %v1744 = vsub.s32 3, %v1743
        %v1745 = vrot.slane %v1164, %v1744
        %v1746 = vlaneseq
        %v1747 = vshrl.u32 %v1746, 7
        %v1748 = vsub.s32 4, %v1747
        %v1749 = vrot.slane %v1164, %v1748
        %v1750 = vlaneseq
        %v1751 = vshrl.u32 %v1750, 7
        %v1752 = vsub.s32 5, %v1751
        %v1753 = vrot.slane %v1164, %v1752
        %v1754 = vlaneseq
        %v1755 = vshrl.u32 %v1754, 7
        %v1756 = vsub.s32 6, %v1755
        %v1757 = vrot.slane %v1164, %v1756
        %v1758 = vlaneseq
        %v1759 = vshrl.u32 %v1758, 7
        %v1760 = vsub.s32 7, %v1759
        %v1761 = vrot.slane %v1164, %v1760
        %v1762 = vlaneseq
        %v1763 = vshrl.u32 %v1762, 7
        %v1764 = vsub.s32 0, %v1763
        %v1765 = vrot.slane %v1032, %v1764
        %v1766 = vlaneseq
        %v1767 = vshrl.u32 %v1766, 7
        %v1768 = vsub.s32 1, %v1767
        %v1769 = vrot.slane %v1032, %v1768
        %v1770 = vlaneseq
        %v1771 = vshrl.u32 %v1770, 7
        %v1772 = vsub.s32 2, %v1771
        %v1773 = vrot.slane %v1032, %v1772
        %v1774 = vlaneseq
        %v1775 = vshrl.u32 %v1774, 7
        %v1776 = vsub.s32 3, %v1775
        %v1777 = vrot.slane %v1032, %v1776
        %v1778 = vlaneseq
        %v1779 = vshrl.u32 %v1778, 7
        %v1780 = vsub.s32 4, %v1779
        %v1781 = vrot.slane %v1032, %v1780
        %v1782 = vlaneseq
        %v1783 = vshrl.u32 %v1782, 7
        %v1784 = vsub.s32 5, %v1783
        %v1785 = vrot.slane %v1032, %v1784
        %v1786 = vlaneseq
        %v1787 = vshrl.u32 %v1786, 7
        %v1788 = vsub.s32 6, %v1787
        %v1789 = vrot.slane %v1032, %v1788
        %v1790 = vlaneseq
        %v1791 = vshrl.u32 %v1790, 7
        %v1792 = vsub.s32 7, %v1791
        %v1793 = vrot.slane %v1032, %v1792
        %v1794 = vlaneseq
        %v1795 = vshrl.u32 %v1794, 7
        %v1796 = vsub.s32 0, %v1795
        %v1797 = vrot.slane %v1168, %v1796
        %v1798 = vlaneseq
        %v1799 = vshrl.u32 %v1798, 7
        %v1800 = vsub.s32 1, %v1799
        %v1801 = vrot.slane %v1168, %v1800
        %v1802 = vlaneseq
        %v1803 = vshrl.u32 %v1802, 7
        %v1804 = vsub.s32 2, %v1803
        %v1805 = vrot.slane %v1168, %v1804
        %v1806 = vlaneseq
        %v1807 = vshrl.u32 %v1806, 7
        %v1808 = vsub.s32 3, %v1807
        %v1809 = vrot.slane %v1168, %v1808
        %v1810 = vlaneseq
        %v1811 = vshrl.u32 %v1810, 7
        %v1812 = vsub.s32 4, %v1811
        %v1813 = vrot.slane %v1168, %v1812
        %v1814 = vlaneseq
        %v1815 = vshrl.u32 %v1814, 7
        %v1816 = vsub.s32 5, %v1815
        %v1817 = vrot.slane %v1168, %v1816
        %v1818 = vlaneseq
        %v1819 = vshrl.u32 %v1818, 7
        %v1820 = vsub.s32 6, %v1819
        %v1821 = vrot.slane %v1168, %v1820
        %v1822 = vlaneseq
        %v1823 = vshrl.u32 %v1822, 7
        %v1824 = vsub.s32 7, %v1823
        %v1825 = vrot.slane %v1168, %v1824
        %v1826 = vlaneseq
        %v1827 = vshrl.u32 %v1826, 7
        %v1828 = vsub.s32 0, %v1827
        %v1829 = vrot.slane %v1029, %v1828
        %v1830 = vlaneseq
        %v1831 = vshrl.u32 %v1830, 7
        %v1832 = vsub.s32 1, %v1831
        %v1833 = vrot.slane %v1029, %v1832
        %v1834 = vlaneseq
        %v1835 = vshrl.u32 %v1834, 7
        %v1836 = vsub.s32 2, %v1835
        %v1837 = vrot.slane %v1029, %v1836
        %v1838 = vlaneseq
        %v1839 = vshrl.u32 %v1838, 7
        %v1840 = vsub.s32 3, %v1839
        %v1841 = vrot.slane %v1029, %v1840
        %v1842 = vlaneseq
        %v1843 = vshrl.u32 %v1842, 7
        %v1844 = vsub.s32 4, %v1843
        %v1845 = vrot.slane %v1029, %v1844
        %v1846 = vlaneseq
        %v1847 = vshrl.u32 %v1846, 7
        %v1848 = vsub.s32 5, %v1847
        %v1849 = vrot.slane %v1029, %v1848
        %v1850 = vlaneseq
        %v1851 = vshrl.u32 %v1850, 7
        %v1852 = vsub.s32 6, %v1851
        %v1853 = vrot.slane %v1029, %v1852
        %v1854 = vlaneseq
        %v1855 = vshrl.u32 %v1854, 7
        %v1856 = vsub.s32 7, %v1855
        %v1857 = vrot.slane %v1029, %v1856
        %v1858 = vlaneseq
        %v1859 = vshrl.u32 %v1858, 7
        %v1860 = vsub.s32 0, %v1859
        %v1861 = vrot.slane %v1165, %v1860
        %v1862 = vlaneseq
        %v1863 = vshrl.u32 %v1862, 7
        %v1864 = vsub.s32 1, %v1863
        %v1865 = vrot.slane %v1165, %v1864
        %v1866 = vlaneseq
        %v1867 = vshrl.u32 %v1866, 7
        %v1868 = vsub.s32 2, %v1867
        %v1869 = vrot.slane %v1165, %v1868
        %v1870 = vlaneseq
        %v1871 = vshrl.u32 %v1870, 7
        %v1872 = vsub.s32 3, %v1871
        %v1873 = vrot.slane %v1165, %v1872
        %v1874 = vlaneseq
        %v1875 = vshrl.u32 %v1874, 7
        %v1876 = vsub.s32 4, %v1875
        %v1877 = vrot.slane %v1165, %v1876
        %v1878 = vlaneseq
        %v1879 = vshrl.u32 %v1878, 7
        %v1880 = vsub.s32 5, %v1879
        %v1881 = vrot.slane %v1165, %v1880
        %v1882 = vlaneseq
        %v1883 = vshrl.u32 %v1882, 7
        %v1884 = vsub.s32 6, %v1883
        %v1885 = vrot.slane %v1165, %v1884
        %v1886 = vlaneseq
        %v1887 = vshrl.u32 %v1886, 7
        %v1888 = vsub.s32 7, %v1887
        %v1889 = vrot.slane %v1165, %v1888
        %v1890 = vlaneseq
        %v1891 = vshrl.u32 %v1890, 7
        %v1892 = vsub.s32 0, %v1891
        %v1893 = vrot.slane %v1033, %v1892
        %v1894 = vlaneseq
        %v1895 = vshrl.u32 %v1894, 7
        %v1896 = vsub.s32 1, %v1895
        %v1897 = vrot.slane %v1033, %v1896
        %v1898 = vlaneseq
        %v1899 = vshrl.u32 %v1898, 7
        %v1900 = vsub.s32 2, %v1899
        %v1901 = vrot.slane %v1033, %v1900
        %v1902 = vlaneseq
        %v1903 = vshrl.u32 %v1902, 7
        %v1904 = vsub.s32 3, %v1903
        %v1905 = vrot.slane %v1033, %v1904
        %v1906 = vlaneseq
        %v1907 = vshrl.u32 %v1906, 7
        %v1908 = vsub.s32 4, %v1907
        %v1909 = vrot.slane %v1033, %v1908
        %v1910 = vlaneseq
        %v1911 = vshrl.u32 %v1910, 7
        %v1912 = vsub.s32 5, %v1911
        %v1913 = vrot.slane %v1033, %v1912
        %v1914 = vlaneseq
        %v1915 = vshrl.u32 %v1914, 7
        %v1916 = vsub.s32 6, %v1915
        %v1917 = vrot.slane %v1033, %v1916
        %v1918 = vlaneseq
        %v1919 = vshrl.u32 %v1918, 7
        %v1920 = vsub.s32 7, %v1919
        %v1921 = vrot.slane %v1033, %v1920
        %v1922 = vlaneseq
        %v1923 = vshrl.u32 %v1922, 7
        %v1924 = vsub.s32 0, %v1923
        %v1925 = vrot.slane %v1169, %v1924
        %v1926 = vlaneseq
        %v1927 = vshrl.u32 %v1926, 7
        %v1928 = vsub.s32 1, %v1927
        %v1929 = vrot.slane %v1169, %v1928
        %v1930 = vlaneseq
        %v1931 = vshrl.u32 %v1930, 7
        %v1932 = vsub.s32 2, %v1931
        %v1933 = vrot.slane %v1169, %v1932
        %v1934 = vlaneseq
        %v1935 = vshrl.u32 %v1934, 7
        %v1936 = vsub.s32 3, %v1935
        %v1937 = vrot.slane %v1169, %v1936
        %v1938 = vlaneseq
        %v1939 = vshrl.u32 %v1938, 7
        %v1940 = vsub.s32 4, %v1939
        %v1941 = vrot.slane %v1169, %v1940
        %v1942 = vlaneseq
        %v1943 = vshrl.u32 %v1942, 7
        %v1944 = vsub.s32 5, %v1943
        %v1945 = vrot.slane %v1169, %v1944
        %v1946 = vlaneseq
        %v1947 = vshrl.u32 %v1946, 7
        %v1948 = vsub.s32 6, %v1947
        %v1949 = vrot.slane %v1169, %v1948
        %v1950 = vlaneseq
        %v1951 = vshrl.u32 %v1950, 7
        %v1952 = vsub.s32 7, %v1951
        %v1953 = vrot.slane %v1169, %v1952
        %v1954 = vlaneseq
        %v1955 = vshrl.u32 %v1954, 7
        %v1956 = vsub.s32 0, %v1955
        %v1957 = vrot.slane %v1298, %v1956
        %v1958 = vlaneseq
        %v1959 = vshrl.u32 %v1958, 7
        %v1960 = vsub.s32 1, %v1959
        %v1961 = vrot.slane %v1298, %v1960
        %v1962 = vlaneseq
        %v1963 = vshrl.u32 %v1962, 7
        %v1964 = vsub.s32 2, %v1963
        %v1965 = vrot.slane %v1298, %v1964
        %v1966 = vlaneseq
        %v1967 = vshrl.u32 %v1966, 7
        %v1968 = vsub.s32 3, %v1967
        %v1969 = vrot.slane %v1298, %v1968
        %v1970 = vlaneseq
        %v1971 = vshrl.u32 %v1970, 7
        %v1972 = vsub.s32 4, %v1971
        %v1973 = vrot.slane %v1298, %v1972
        %v1974 = vlaneseq
        %v1975 = vshrl.u32 %v1974, 7
        %v1976 = vsub.s32 5, %v1975
        %v1977 = vrot.slane %v1298, %v1976
        %v1978 = vlaneseq
        %v1979 = vshrl.u32 %v1978, 7
        %v1980 = vsub.s32 6, %v1979
        %v1981 = vrot.slane %v1298, %v1980
        %v1982 = vlaneseq
        %v1983 = vshrl.u32 %v1982, 7
        %v1984 = vsub.s32 7, %v1983
        %v1985 = vrot.slane %v1298, %v1984
        %v1986 = vlaneseq
        %v1987 = vshrl.u32 %v1986, 7
        %v1988 = vsub.s32 0, %v1987
        %v1989 = vrot.slane %v1434, %v1988
        %v1990 = vlaneseq
        %v1991 = vshrl.u32 %v1990, 7
        %v1992 = vsub.s32 1, %v1991
        %v1993 = vrot.slane %v1434, %v1992
        %v1994 = vlaneseq
        %v1995 = vshrl.u32 %v1994, 7
        %v1996 = vsub.s32 2, %v1995
        %v1997 = vrot.slane %v1434, %v1996
        %v1998 = vlaneseq
        %v1999 = vshrl.u32 %v1998, 7
        %v2000 = vsub.s32 3, %v1999
        %v2001 = vrot.slane %v1434, %v2000
        %v2002 = vlaneseq
        %v2003 = vshrl.u32 %v2002, 7
        %v2004 = vsub.s32 4, %v2003
        %v2005 = vrot.slane %v1434, %v2004
        %v2006 = vlaneseq
        %v2007 = vshrl.u32 %v2006, 7
        %v2008 = vsub.s32 5, %v2007
        %v2009 = vrot.slane %v1434, %v2008
        %v2010 = vlaneseq
        %v2011 = vshrl.u32 %v2010, 7
        %v2012 = vsub.s32 6, %v2011
        %v2013 = vrot.slane %v1434, %v2012
        %v2014 = vlaneseq
        %v2015 = vshrl.u32 %v2014, 7
        %v2016 = vsub.s32 7, %v2015
        %v2017 = vrot.slane %v1434, %v2016
        %v2018 = vlaneseq
        %v2019 = vshrl.u32 %v2018, 7
        %v2020 = vsub.s32 0, %v2019
        %v2021 = vrot.slane %v1302, %v2020
        %v2022 = vlaneseq
        %v2023 = vshrl.u32 %v2022, 7
        %v2024 = vsub.s32 1, %v2023
        %v2025 = vrot.slane %v1302, %v2024
        %v2026 = vlaneseq
        %v2027 = vshrl.u32 %v2026, 7
        %v2028 = vsub.s32 2, %v2027
        %v2029 = vrot.slane %v1302, %v2028
        %v2030 = vlaneseq
        %v2031 = vshrl.u32 %v2030, 7
        %v2032 = vsub.s32 3, %v2031
        %v2033 = vrot.slane %v1302, %v2032
        %v2034 = vlaneseq
        %v2035 = vshrl.u32 %v2034, 7
        %v2036 = vsub.s32 4, %v2035
        %v2037 = vrot.slane %v1302, %v2036
        %v2038 = vlaneseq
        %v2039 = vshrl.u32 %v2038, 7
        %v2040 = vsub.s32 5, %v2039
        %v2041 = vrot.slane %v1302, %v2040
        %v2042 = vlaneseq
        %v2043 = vshrl.u32 %v2042, 7
        %v2044 = vsub.s32 6, %v2043
        %v2045 = vrot.slane %v1302, %v2044
        %v2046 = vlaneseq
        %v2047 = vshrl.u32 %v2046, 7
        %v2048 = vsub.s32 7, %v2047
        %v2049 = vrot.slane %v1302, %v2048
        %v2050 = vlaneseq
        %v2051 = vshrl.u32 %v2050, 7
        %v2052 = vsub.s32 0, %v2051
        %v2053 = vrot.slane %v1438, %v2052
        %v2054 = vlaneseq
        %v2055 = vshrl.u32 %v2054, 7
        %v2056 = vsub.s32 1, %v2055
        %v2057 = vrot.slane %v1438, %v2056
        %v2058 = vlaneseq
        %v2059 = vshrl.u32 %v2058, 7
        %v2060 = vsub.s32 2, %v2059
        %v2061 = vrot.slane %v1438, %v2060
        %v2062 = vlaneseq
        %v2063 = vshrl.u32 %v2062, 7
        %v2064 = vsub.s32 3, %v2063
        %v2065 = vrot.slane %v1438, %v2064
        %v2066 = vlaneseq
        %v2067 = vshrl.u32 %v2066, 7
        %v2068 = vsub.s32 4, %v2067
        %v2069 = vrot.slane %v1438, %v2068
        %v2070 = vlaneseq
        %v2071 = vshrl.u32 %v2070, 7
        %v2072 = vsub.s32 5, %v2071
        %v2073 = vrot.slane %v1438, %v2072
        %v2074 = vlaneseq
        %v2075 = vshrl.u32 %v2074, 7
        %v2076 = vsub.s32 6, %v2075
        %v2077 = vrot.slane %v1438, %v2076
        %v2078 = vlaneseq
        %v2079 = vshrl.u32 %v2078, 7
        %v2080 = vsub.s32 7, %v2079
        %v2081 = vrot.slane %v1438, %v2080
        %v2082 = vlaneseq
        %v2083 = vshrl.u32 %v2082, 7
        %v2084 = vsub.s32 0, %v2083
        %v2085 = vrot.slane %v1299, %v2084
        %v2086 = vlaneseq
        %v2087 = vshrl.u32 %v2086, 7
        %v2088 = vsub.s32 1, %v2087
        %v2089 = vrot.slane %v1299, %v2088
        %v2090 = vlaneseq
        %v2091 = vshrl.u32 %v2090, 7
        %v2092 = vsub.s32 2, %v2091
        %v2093 = vrot.slane %v1299, %v2092
        %v2094 = vlaneseq
        %v2095 = vshrl.u32 %v2094, 7
        %v2096 = vsub.s32 3, %v2095
        %v2097 = vrot.slane %v1299, %v2096
        %v2098 = vlaneseq
        %v2099 = vshrl.u32 %v2098, 7
        %v2100 = vsub.s32 4, %v2099
        %v2101 = vrot.slane %v1299, %v2100
        %v2102 = vlaneseq
        %v2103 = vshrl.u32 %v2102, 7
        %v2104 = vsub.s32 5, %v2103
        %v2105 = vrot.slane %v1299, %v2104
        %v2106 = vlaneseq
        %v2107 = vshrl.u32 %v2106, 7
        %v2108 = vsub.s32 6, %v2107
        %v2109 = vrot.slane %v1299, %v2108
        %v2110 = vlaneseq
        %v2111 = vshrl.u32 %v2110, 7
        %v2112 = vsub.s32 7, %v2111
        %v2113 = vrot.slane %v1299, %v2112
        %v2114 = vlaneseq
        %v2115 = vshrl.u32 %v2114, 7
        %v2116 = vsub.s32 0, %v2115
        %v2117 = vrot.slane %v1435, %v2116
        %v2118 = vlaneseq
        %v2119 = vshrl.u32 %v2118, 7
        %v2120 = vsub.s32 1, %v2119
        %v2121 = vrot.slane %v1435, %v2120
        %v2122 = vlaneseq
        %v2123 = vshrl.u32 %v2122, 7
        %v2124 = vsub.s32 2, %v2123
        %v2125 = vrot.slane %v1435, %v2124
        %v2126 = vlaneseq
        %v2127 = vshrl.u32 %v2126, 7
        %v2128 = vsub.s32 3, %v2127
        %v2129 = vrot.slane %v1435, %v2128
        %v2130 = vlaneseq
        %v2131 = vshrl.u32 %v2130, 7
        %v2132 = vsub.s32 4, %v2131
        %v2133 = vrot.slane %v1435, %v2132
        %v2134 = vlaneseq
        %v2135 = vshrl.u32 %v2134, 7
        %v2136 = vsub.s32 5, %v2135
        %v2137 = vrot.slane %v1435, %v2136
        %v2138 = vlaneseq
        %v2139 = vshrl.u32 %v2138, 7
        %v2140 = vsub.s32 6, %v2139
        %v2141 = vrot.slane %v1435, %v2140
        %v2142 = vlaneseq
        %v2143 = vshrl.u32 %v2142, 7
        %v2144 = vsub.s32 7, %v2143
        %v2145 = vrot.slane %v1435, %v2144
        %v2146 = vlaneseq
        %v2147 = vshrl.u32 %v2146, 7
        %v2148 = vsub.s32 0, %v2147
        %v2149 = vrot.slane %v1303, %v2148
        %v2150 = vlaneseq
        %v2151 = vshrl.u32 %v2150, 7
        %v2152 = vsub.s32 1, %v2151
        %v2153 = vrot.slane %v1303, %v2152
        %v2154 = vlaneseq
        %v2155 = vshrl.u32 %v2154, 7
        %v2156 = vsub.s32 2, %v2155
        %v2157 = vrot.slane %v1303, %v2156
        %v2158 = vlaneseq
        %v2159 = vshrl.u32 %v2158, 7
        %v2160 = vsub.s32 3, %v2159
        %v2161 = vrot.slane %v1303, %v2160
        %v2162 = vlaneseq
        %v2163 = vshrl.u32 %v2162, 7
        %v2164 = vsub.s32 4, %v2163
        %v2165 = vrot.slane %v1303, %v2164
        %v2166 = vlaneseq
        %v2167 = vshrl.u32 %v2166, 7
        %v2168 = vsub.s32 5, %v2167
        %v2169 = vrot.slane %v1303, %v2168
        %v2170 = vlaneseq
        %v2171 = vshrl.u32 %v2170, 7
        %v2172 = vsub.s32 6, %v2171
        %v2173 = vrot.slane %v1303, %v2172
        %v2174 = vlaneseq
        %v2175 = vshrl.u32 %v2174, 7
        %v2176 = vsub.s32 7, %v2175
        %v2177 = vrot.slane %v1303, %v2176
        %v2178 = vlaneseq
        %v2179 = vshrl.u32 %v2178, 7
        %v2180 = vsub.s32 0, %v2179
        %v2181 = vrot.slane %v1439, %v2180
        %v2182 = vlaneseq
        %v2183 = vshrl.u32 %v2182, 7
        %v2184 = vsub.s32 1, %v2183
        %v2185 = vrot.slane %v1439, %v2184
        %v2186 = vlaneseq
        %v2187 = vshrl.u32 %v2186, 7
        %v2188 = vsub.s32 2, %v2187
        %v2189 = vrot.slane %v1439, %v2188
        %v2190 = vlaneseq
        %v2191 = vshrl.u32 %v2190, 7
        %v2192 = vsub.s32 3, %v2191
        %v2193 = vrot.slane %v1439, %v2192
        %v2194 = vlaneseq
        %v2195 = vshrl.u32 %v2194, 7
        %v2196 = vsub.s32 4, %v2195
        %v2197 = vrot.slane %v1439, %v2196
        %v2198 = vlaneseq
        %v2199 = vshrl.u32 %v2198, 7
        %v2200 = vsub.s32 5, %v2199
        %v2201 = vrot.slane %v1439, %v2200
        %v2202 = vlaneseq
        %v2203 = vshrl.u32 %v2202, 7
        %v2204 = vsub.s32 6, %v2203
        %v2205 = vrot.slane %v1439, %v2204
        %v2206 = vlaneseq
        %v2207 = vshrl.u32 %v2206, 7
        %v2208 = vsub.s32 7, %v2207
        %v2209 = vrot.slane %v1439, %v2208
        %v2210 = vlaneseq
        %v2211 = vshrl.u32 %v2210, 7
        %v2212 = vsub.s32 0, %v2211
        %v2213 = vrot.slane %v1300, %v2212
        %v2214 = vlaneseq
        %v2215 = vshrl.u32 %v2214, 7
        %v2216 = vsub.s32 1, %v2215
        %v2217 = vrot.slane %v1300, %v2216
        %v2218 = vlaneseq
        %v2219 = vshrl.u32 %v2218, 7
        %v2220 = vsub.s32 2, %v2219
        %v2221 = vrot.slane %v1300, %v2220
        %v2222 = vlaneseq
        %v2223 = vshrl.u32 %v2222, 7
        %v2224 = vsub.s32 3, %v2223
        %v2225 = vrot.slane %v1300, %v2224
        %v2226 = vlaneseq
        %v2227 = vshrl.u32 %v2226, 7
        %v2228 = vsub.s32 4, %v2227
        %v2229 = vrot.slane %v1300, %v2228
        %v2230 = vlaneseq
        %v2231 = vshrl.u32 %v2230, 7
        %v2232 = vsub.s32 5, %v2231
        %v2233 = vrot.slane %v1300, %v2232
        %v2234 = vlaneseq
        %v2235 = vshrl.u32 %v2234, 7
        %v2236 = vsub.s32 6, %v2235
        %v2237 = vrot.slane %v1300, %v2236
        %v2238 = vlaneseq
        %v2239 = vshrl.u32 %v2238, 7
        %v2240 = vsub.s32 7, %v2239
        %v2241 = vrot.slane %v1300, %v2240
        %v2242 = vlaneseq
        %v2243 = vshrl.u32 %v2242, 7
        %v2244 = vsub.s32 0, %v2243
        %v2245 = vrot.slane %v1436, %v2244
        %v2246 = vlaneseq
        %v2247 = vshrl.u32 %v2246, 7
        %v2248 = vsub.s32 1, %v2247
        %v2249 = vrot.slane %v1436, %v2248
        %v2250 = vlaneseq
        %v2251 = vshrl.u32 %v2250, 7
        %v2252 = vsub.s32 2, %v2251
        %v2253 = vrot.slane %v1436, %v2252
        %v2254 = vlaneseq
        %v2255 = vshrl.u32 %v2254, 7
        %v2256 = vsub.s32 3, %v2255
        %v2257 = vrot.slane %v1436, %v2256
        %v2258 = vlaneseq
        %v2259 = vshrl.u32 %v2258, 7
        %v2260 = vsub.s32 4, %v2259
        %v2261 = vrot.slane %v1436, %v2260
        %v2262 = vlaneseq
        %v2263 = vshrl.u32 %v2262, 7
        %v2264 = vsub.s32 5, %v2263
        %v2265 = vrot.slane %v1436, %v2264
        %v2266 = vlaneseq
        %v2267 = vshrl.u32 %v2266, 7
        %v2268 = vsub.s32 6, %v2267
        %v2269 = vrot.slane %v1436, %v2268
        %v2270 = vlaneseq
        %v2271 = vshrl.u32 %v2270, 7
        %v2272 = vsub.s32 7, %v2271
        %v2273 = vrot.slane %v1436, %v2272
        %v2274 = vlaneseq
        %v2275 = vshrl.u32 %v2274, 7
        %v2276 = vsub.s32 0, %v2275
        %v2277 = vrot.slane %v1304, %v2276
        %v2278 = vlaneseq
        %v2279 = vshrl.u32 %v2278, 7
        %v2280 = vsub.s32 1, %v2279
        %v2281 = vrot.slane %v1304, %v2280
        %v2282 = vlaneseq
        %v2283 = vshrl.u32 %v2282, 7
        %v2284 = vsub.s32 2, %v2283
        %v2285 = vrot.slane %v1304, %v2284
        %v2286 = vlaneseq
        %v2287 = vshrl.u32 %v2286, 7
        %v2288 = vsub.s32 3, %v2287
        %v2289 = vrot.slane %v1304, %v2288
        %v2290 = vlaneseq
        %v2291 = vshrl.u32 %v2290, 7
        %v2292 = vsub.s32 4, %v2291
        %v2293 = vrot.slane %v1304, %v2292
        %v2294 = vlaneseq
        %v2295 = vshrl.u32 %v2294, 7
        %v2296 = vsub.s32 5, %v2295
        %v2297 = vrot.slane %v1304, %v2296
        %v2298 = vlaneseq
        %v2299 = vshrl.u32 %v2298, 7
        %v2300 = vsub.s32 6, %v2299
        %v2301 = vrot.slane %v1304, %v2300
        %v2302 = vlaneseq
        %v2303 = vshrl.u32 %v2302, 7
        %v2304 = vsub.s32 7, %v2303
        %v2305 = vrot.slane %v1304, %v2304
        %v2306 = vlaneseq
        %v2307 = vshrl.u32 %v2306, 7
        %v2308 = vsub.s32 0, %v2307
        %v2309 = vrot.slane %v1440, %v2308
        %v2310 = vlaneseq
        %v2311 = vshrl.u32 %v2310, 7
        %v2312 = vsub.s32 1, %v2311
        %v2313 = vrot.slane %v1440, %v2312
        %v2314 = vlaneseq
        %v2315 = vshrl.u32 %v2314, 7
        %v2316 = vsub.s32 2, %v2315
        %v2317 = vrot.slane %v1440, %v2316
        %v2318 = vlaneseq
        %v2319 = vshrl.u32 %v2318, 7
        %v2320 = vsub.s32 3, %v2319
        %v2321 = vrot.slane %v1440, %v2320
        %v2322 = vlaneseq
        %v2323 = vshrl.u32 %v2322, 7
        %v2324 = vsub.s32 4, %v2323
        %v2325 = vrot.slane %v1440, %v2324
        %v2326 = vlaneseq
        %v2327 = vshrl.u32 %v2326, 7
        %v2328 = vsub.s32 5, %v2327
        %v2329 = vrot.slane %v1440, %v2328
        %v2330 = vlaneseq
        %v2331 = vshrl.u32 %v2330, 7
        %v2332 = vsub.s32 6, %v2331
        %v2333 = vrot.slane %v1440, %v2332
        %v2334 = vlaneseq
        %v2335 = vshrl.u32 %v2334, 7
        %v2336 = vsub.s32 7, %v2335
        %v2337 = vrot.slane %v1440, %v2336
        %v2338 = vlaneseq
        %v2339 = vshrl.u32 %v2338, 7
        %v2340 = vsub.s32 0, %v2339
        %v2341 = vrot.slane %v1301, %v2340
        %v2342 = vlaneseq
        %v2343 = vshrl.u32 %v2342, 7
        %v2344 = vsub.s32 1, %v2343
        %v2345 = vrot.slane %v1301, %v2344
        %v2346 = vlaneseq
        %v2347 = vshrl.u32 %v2346, 7
        %v2348 = vsub.s32 2, %v2347
        %v2349 = vrot.slane %v1301, %v2348
        %v2350 = vlaneseq
        %v2351 = vshrl.u32 %v2350, 7
        %v2352 = vsub.s32 3, %v2351
        %v2353 = vrot.slane %v1301, %v2352
        %v2354 = vlaneseq
        %v2355 = vshrl.u32 %v2354, 7
        %v2356 = vsub.s32 4, %v2355
        %v2357 = vrot.slane %v1301, %v2356
        %v2358 = vlaneseq
        %v2359 = vshrl.u32 %v2358, 7
        %v2360 = vsub.s32 5, %v2359
        %v2361 = vrot.slane %v1301, %v2360
        %v2362 = vlaneseq
        %v2363 = vshrl.u32 %v2362, 7
        %v2364 = vsub.s32 6, %v2363
        %v2365 = vrot.slane %v1301, %v2364
        %v2366 = vlaneseq
        %v2367 = vshrl.u32 %v2366, 7
        %v2368 = vsub.s32 7, %v2367
        %v2369 = vrot.slane %v1301, %v2368
        %v2370 = vlaneseq
        %v2371 = vshrl.u32 %v2370, 7
        %v2372 = vsub.s32 0, %v2371
        %v2373 = vrot.slane %v1437, %v2372
        %v2374 = vlaneseq
        %v2375 = vshrl.u32 %v2374, 7
        %v2376 = vsub.s32 1, %v2375
        %v2377 = vrot.slane %v1437, %v2376
        %v2378 = vlaneseq
        %v2379 = vshrl.u32 %v2378, 7
        %v2380 = vsub.s32 2, %v2379
        %v2381 = vrot.slane %v1437, %v2380
        %v2382 = vlaneseq
        %v2383 = vshrl.u32 %v2382, 7
        %v2384 = vsub.s32 3, %v2383
        %v2385 = vrot.slane %v1437, %v2384
        %v2386 = vlaneseq
        %v2387 = vshrl.u32 %v2386, 7
        %v2388 = vsub.s32 4, %v2387
        %v2389 = vrot.slane %v1437, %v2388
        %v2390 = vlaneseq
        %v2391 = vshrl.u32 %v2390, 7
        %v2392 = vsub.s32 5, %v2391
        %v2393 = vrot.slane %v1437, %v2392
        %v2394 = vlaneseq
        %v2395 = vshrl.u32 %v2394, 7
        %v2396 = vsub.s32 6, %v2395
        %v2397 = vrot.slane %v1437, %v2396
        %v2398 = vlaneseq
        %v2399 = vshrl.u32 %v2398, 7
        %v2400 = vsub.s32 7, %v2399
        %v2401 = vrot.slane %v1437, %v2400
        %v2402 = vlaneseq
        %v2403 = vshrl.u32 %v2402, 7
        %v2404 = vsub.s32 0, %v2403
        %v2405 = vrot.slane %v1305, %v2404
        %v2406 = vlaneseq
        %v2407 = vshrl.u32 %v2406, 7
        %v2408 = vsub.s32 1, %v2407
        %v2409 = vrot.slane %v1305, %v2408
        %v2410 = vlaneseq
        %v2411 = vshrl.u32 %v2410, 7
        %v2412 = vsub.s32 2, %v2411
        %v2413 = vrot.slane %v1305, %v2412
        %v2414 = vlaneseq
        %v2415 = vshrl.u32 %v2414, 7
        %v2416 = vsub.s32 3, %v2415
        %v2417 = vrot.slane %v1305, %v2416
        %v2418 = vlaneseq
        %v2419 = vshrl.u32 %v2418, 7
        %v2420 = vsub.s32 4, %v2419
        %v2421 = vrot.slane %v1305, %v2420
        %v2422 = vlaneseq
        %v2423 = vshrl.u32 %v2422, 7
        %v2424 = vsub.s32 5, %v2423
        %v2425 = vrot.slane %v1305, %v2424
        %v2426 = vlaneseq
        %v2427 = vshrl.u32 %v2426, 7
        %v2428 = vsub.s32 6, %v2427
        %v2429 = vrot.slane %v1305, %v2428
        %v2430 = vlaneseq
        %v2431 = vshrl.u32 %v2430, 7
        %v2432 = vsub.s32 7, %v2431
        %v2433 = vrot.slane %v1305, %v2432
        %v2434 = vlaneseq
        %v2435 = vshrl.u32 %v2434, 7
        %v2436 = vsub.s32 0, %v2435
        %v2437 = vrot.slane %v1441, %v2436
        %v2438 = vlaneseq
        %v2439 = vshrl.u32 %v2438, 7
        %v2440 = vsub.s32 1, %v2439
        %v2441 = vrot.slane %v1441, %v2440
        %v2442 = vlaneseq
        %v2443 = vshrl.u32 %v2442, 7
        %v2444 = vsub.s32 2, %v2443
        %v2445 = vrot.slane %v1441, %v2444
        %v2446 = vlaneseq
        %v2447 = vshrl.u32 %v2446, 7
        %v2448 = vsub.s32 3, %v2447
        %v2449 = vrot.slane %v1441, %v2448
        %v2450 = vlaneseq
        %v2451 = vshrl.u32 %v2450, 7
        %v2452 = vsub.s32 4, %v2451
        %v2453 = vrot.slane %v1441, %v2452
        %v2454 = vlaneseq
        %v2455 = vshrl.u32 %v2454, 7
        %v2456 = vsub.s32 5, %v2455
        %v2457 = vrot.slane %v1441, %v2456
        %v2458 = vlaneseq
        %v2459 = vshrl.u32 %v2458, 7
        %v2460 = vsub.s32 6, %v2459
        %v2461 = vrot.slane %v1441, %v2460
        %v2462 = vlaneseq
        %v2463 = vshrl.u32 %v2462, 7
        %v2464 = vsub.s32 7, %v2463
        %v2465 = vrot.slane %v1441, %v2464
        %v2722 = vmul.f32 %v1445, %v834
        %v2723 = vmul.f32 %v1449, %v835
        %v2724 = vmul.f32 %v1453, %v836
        %v2725 = vmul.f32 %v1457, %v837
        %v2726 = vmul.f32 %v1461, %v838
        %v2727 = vmul.f32 %v1465, %v839
        %v2728 = vmul.f32 %v1469, %v840
        %v2729 = vmul.f32 %v1473, %v841
        %v2730 = vmul.f32 %v1477, %v842
        %v2731 = vmul.f32 %v1481, %v843
        %v2732 = vmul.f32 %v1485, %v844
        %v2733 = vmul.f32 %v1489, %v845
        %v2734 = vmul.f32 %v1493, %v846
        %v2735 = vmul.f32 %v1497, %v847
        %v2736 = vmul.f32 %v1501, %v848
        %v2737 = vmul.f32 %v1505, %v849
        %v2738 = vmul.f32 %v1445, %v850
        %v2739 = vmul.f32 %v1449, %v851
        %v2740 = vmul.f32 %v1453, %v852
        %v2741 = vmul.f32 %v1457, %v853
        %v2742 = vmul.f32 %v1461, %v854
        %v2743 = vmul.f32 %v1465, %v855
        %v2744 = vmul.f32 %v1469, %v856
        %v2745 = vmul.f32 %v1473, %v857
        %v2746 = vmul.f32 %v1477, %v858
        %v2747 = vmul.f32 %v1481, %v859
        %v2748 = vmul.f32 %v1485, %v860
        %v2749 = vmul.f32 %v1489, %v861
        %v2750 = vmul.f32 %v1493, %v862
        %v2751 = vmul.f32 %v1497, %v863
        %v2752 = vmul.f32 %v1501, %v864
        %v2753 = vmul.f32 %v1505, %v865
        %v2754 = vmul.f32 %v1509, %v834
        %v2755 = vmul.f32 %v1513, %v835
        %v2756 = vmul.f32 %v1517, %v836
        %v2757 = vmul.f32 %v1521, %v837
        %v2758 = vmul.f32 %v1525, %v838
        %v2759 = vmul.f32 %v1529, %v839
        %v2760 = vmul.f32 %v1533, %v840
        %v2761 = vmul.f32 %v1537, %v841
        %v2762 = vmul.f32 %v1541, %v842
        %v2763 = vmul.f32 %v1545, %v843
        %v2764 = vmul.f32 %v1549, %v844
        %v2765 = vmul.f32 %v1553, %v845
        %v2766 = vmul.f32 %v1557, %v846
        %v2767 = vmul.f32 %v1561, %v847
        %v2768 = vmul.f32 %v1565, %v848
        %v2769 = vmul.f32 %v1569, %v849
        %v2770 = vmul.f32 %v1509, %v850
        %v2771 = vmul.f32 %v1513, %v851
        %v2772 = vmul.f32 %v1517, %v852
        %v2773 = vmul.f32 %v1521, %v853
        %v2774 = vmul.f32 %v1525, %v854
        %v2775 = vmul.f32 %v1529, %v855
        %v2776 = vmul.f32 %v1533, %v856
        %v2777 = vmul.f32 %v1537, %v857
        %v2778 = vmul.f32 %v1541, %v858
        %v2779 = vmul.f32 %v1545, %v859
        %v2780 = vmul.f32 %v1549, %v860
        %v2781 = vmul.f32 %v1553, %v861
        %v2782 = vmul.f32 %v1557, %v862
        %v2783 = vmul.f32 %v1561, %v863
        %v2784 = vmul.f32 %v1565, %v864
        %v2785 = vmul.f32 %v1569, %v865
        %v2786 = vmul.f32 %v1573, %v834
        %v2787 = vmul.f32 %v1577, %v835
        %v2788 = vmul.f32 %v1581, %v836
        %v2789 = vmul.f32 %v1585, %v837
        %v2790 = vmul.f32 %v1589, %v838
        %v2791 = vmul.f32 %v1593, %v839
        %v2792 = vmul.f32 %v1597, %v840
        %v2793 = vmul.f32 %v1601, %v841
        %v2794 = vmul.f32 %v1605, %v842
        %v2795 = vmul.f32 %v1609, %v843
        %v2796 = vmul.f32 %v1613, %v844
        %v2797 = vmul.f32 %v1617, %v845
        %v2798 = vmul.f32 %v1621, %v846
        %v2799 = vmul.f32 %v1625, %v847
        %v2800 = vmul.f32 %v1629, %v848
        %v2801 = vmul.f32 %v1633, %v849
        %v2802 = vmul.f32 %v1573, %v850
        %v2803 = vmul.f32 %v1577, %v851
        %v2804 = vmul.f32 %v1581, %v852
        %v2805 = vmul.f32 %v1585, %v853
        %v2806 = vmul.f32 %v1589, %v854
        %v2807 = vmul.f32 %v1593, %v855
        %v2808 = vmul.f32 %v1597, %v856
        %v2809 = vmul.f32 %v1601, %v857
        %v2810 = vmul.f32 %v1605, %v858
        %v2811 = vmul.f32 %v1609, %v859
        %v2812 = vmul.f32 %v1613, %v860
        %v2813 = vmul.f32 %v1617, %v861
        %v2814 = vmul.f32 %v1621, %v862
        %v2815 = vmul.f32 %v1625, %v863
        %v2816 = vmul.f32 %v1629, %v864
        %v2817 = vmul.f32 %v1633, %v865
        %v2818 = vmul.f32 %v1637, %v834
        %v2819 = vmul.f32 %v1641, %v835
        %v2820 = vmul.f32 %v1645, %v836
        %v2821 = vmul.f32 %v1649, %v837
        %v2822 = vmul.f32 %v1653, %v838
        %v2823 = vmul.f32 %v1657, %v839
        %v2824 = vmul.f32 %v1661, %v840
        %v2825 = vmul.f32 %v1665, %v841
        %v2826 = vmul.f32 %v1669, %v842
        %v2827 = vmul.f32 %v1673, %v843
        %v2828 = vmul.f32 %v1677, %v844
        %v2829 = vmul.f32 %v1681, %v845
        %v2830 = vmul.f32 %v1685, %v846
        %v2831 = vmul.f32 %v1689, %v847
        %v2832 = vmul.f32 %v1693, %v848
        %v2833 = vmul.f32 %v1697, %v849
        %v2834 = vmul.f32 %v1637, %v850
        %v2835 = vmul.f32 %v1641, %v851
        %v2836 = vmul.f32 %v1645, %v852
        %v2837 = vmul.f32 %v1649, %v853
        %v2838 = vmul.f32 %v1653, %v854
        %v2839 = vmul.f32 %v1657, %v855
        %v2840 = vmul.f32 %v1661, %v856
        %v2841 = vmul.f32 %v1665, %v857
        %v2842 = vmul.f32 %v1669, %v858
        %v2843 = vmul.f32 %v1673, %v859
        %v2844 = vmul.f32 %v1677, %v860
        %v2845 = vmul.f32 %v1681, %v861
        %v2846 = vmul.f32 %v1685, %v862
        %v2847 = vmul.f32 %v1689, %v863
        %v2848 = vmul.f32 %v1693, %v864
        %v2849 = vmul.f32 %v1697, %v865
        %v2850 = vmul.f32 %v1701, %v834
        %v2851 = vmul.f32 %v1705, %v835
        %v2852 = vmul.f32 %v1709, %v836
        %v2853 = vmul.f32 %v1713, %v837
        %v2854 = vmul.f32 %v1717, %v838
        %v2855 = vmul.f32 %v1721, %v839
        %v2856 = vmul.f32 %v1725, %v840
        %v2857 = vmul.f32 %v1729, %v841
        %v2858 = vmul.f32 %v1733, %v842
        %v2859 = vmul.f32 %v1737, %v843
        %v2860 = vmul.f32 %v1741, %v844
        %v2861 = vmul.f32 %v1745, %v845
        %v2862 = vmul.f32 %v1749, %v846
        %v2863 = vmul.f32 %v1753, %v847
        %v2864 = vmul.f32 %v1757, %v848
        %v2865 = vmul.f32 %v1761, %v849
        %v2866 = vmul.f32 %v1701, %v850
        %v2867 = vmul.f32 %v1705, %v851
        %v2868 = vmul.f32 %v1709, %v852
        %v2869 = vmul.f32 %v1713, %v853
        %v2870 = vmul.f32 %v1717, %v854
        %v2871 = vmul.f32 %v1721, %v855
        %v2872 = vmul.f32 %v1725, %v856
        %v2873 = vmul.f32 %v1729, %v857
        %v2874 = vmul.f32 %v1733, %v858
        %v2875 = vmul.f32 %v1737, %v859
        %v2876 = vmul.f32 %v1741, %v860
        %v2877 = vmul.f32 %v1745, %v861
        %v2878 = vmul.f32 %v1749, %v862
        %v2879 = vmul.f32 %v1753, %v863
        %v2880 = vmul.f32 %v1757, %v864
        %v2881 = vmul.f32 %v1761, %v865
        %v2882 = vmul.f32 %v1765, %v834
        %v2883 = vmul.f32 %v1769, %v835
        %v2884 = vmul.f32 %v1773, %v836
        %v2885 = vmul.f32 %v1777, %v837
        %v2886 = vmul.f32 %v1781, %v838
        %v2887 = vmul.f32 %v1785, %v839
        %v2888 = vmul.f32 %v1789, %v840
        %v2889 = vmul.f32 %v1793, %v841
        %v2890 = vmul.f32 %v1797, %v842
        %v2891 = vmul.f32 %v1801, %v843
        %v2892 = vmul.f32 %v1805, %v844
        %v2893 = vmul.f32 %v1809, %v845
        %v2894 = vmul.f32 %v1813, %v846
        %v2895 = vmul.f32 %v1817, %v847
        %v2896 = vmul.f32 %v1821, %v848
        %v2897 = vmul.f32 %v1825, %v849
        %v2898 = vmul.f32 %v1765, %v850
        %v2899 = vmul.f32 %v1769, %v851
        %v2900 = vmul.f32 %v1773, %v852
        %v2901 = vmul.f32 %v1777, %v853
        %v2902 = vmul.f32 %v1781, %v854
        %v2903 = vmul.f32 %v1785, %v855
        %v2904 = vmul.f32 %v1789, %v856
        %v2905 = vmul.f32 %v1793, %v857
        %v2906 = vmul.f32 %v1797, %v858
        %v2907 = vmul.f32 %v1801, %v859
        %v2908 = vmul.f32 %v1805, %v860
        %v2909 = vmul.f32 %v1809, %v861
        %v2910 = vmul.f32 %v1813, %v862
        %v2911 = vmul.f32 %v1817, %v863
        %v2912 = vmul.f32 %v1821, %v864
        %v2913 = vmul.f32 %v1825, %v865
        %v2914 = vmul.f32 %v1829, %v834
        %v2915 = vmul.f32 %v1833, %v835
        %v2916 = vmul.f32 %v1837, %v836
        %v2917 = vmul.f32 %v1841, %v837
        %v2918 = vmul.f32 %v1845, %v838
        %v2919 = vmul.f32 %v1849, %v839
        %v2920 = vmul.f32 %v1853, %v840
        %v2921 = vmul.f32 %v1857, %v841
        %v2922 = vmul.f32 %v1861, %v842
        %v2923 = vmul.f32 %v1865, %v843
        %v2924 = vmul.f32 %v1869, %v844
        %v2925 = vmul.f32 %v1873, %v845
        %v2926 = vmul.f32 %v1877, %v846
        %v2927 = vmul.f32 %v1881, %v847
        %v2928 = vmul.f32 %v1885, %v848
        %v2929 = vmul.f32 %v1889, %v849
        %v2930 = vmul.f32 %v1829, %v850
        %v2931 = vmul.f32 %v1833, %v851
        %v2932 = vmul.f32 %v1837, %v852
        %v2933 = vmul.f32 %v1841, %v853
        %v2934 = vmul.f32 %v1845, %v854
        %v2935 = vmul.f32 %v1849, %v855
        %v2936 = vmul.f32 %v1853, %v856
        %v2937 = vmul.f32 %v1857, %v857
        %v2938 = vmul.f32 %v1861, %v858
        %v2939 = vmul.f32 %v1865, %v859
        %v2940 = vmul.f32 %v1869, %v860
        %v2941 = vmul.f32 %v1873, %v861
        %v2942 = vmul.f32 %v1877, %v862
        %v2943 = vmul.f32 %v1881, %v863
        %v2944 = vmul.f32 %v1885, %v864
        %v2945 = vmul.f32 %v1889, %v865
        %v2946 = vmul.f32 %v1893, %v834
        %v2947 = vmul.f32 %v1897, %v835
        %v2948 = vmul.f32 %v1901, %v836
        %v2949 = vmul.f32 %v1905, %v837
        %v2950 = vmul.f32 %v1909, %v838
        %v2951 = vmul.f32 %v1913, %v839
        %v2952 = vmul.f32 %v1917, %v840
        %v2953 = vmul.f32 %v1921, %v841
        %v2954 = vmul.f32 %v1925, %v842
        %v2955 = vmul.f32 %v1929, %v843
        %v2956 = vmul.f32 %v1933, %v844
        %v2957 = vmul.f32 %v1937, %v845
        %v2958 = vmul.f32 %v1941, %v846
        %v2959 = vmul.f32 %v1945, %v847
        %v2960 = vmul.f32 %v1949, %v848
        %v2961 = vmul.f32 %v1953, %v849
        %v2962 = vmul.f32 %v1893, %v850
        %v2963 = vmul.f32 %v1897, %v851
        %v2964 = vmul.f32 %v1901, %v852
        %v2965 = vmul.f32 %v1905, %v853
        %v2966 = vmul.f32 %v1909, %v854
        %v2967 = vmul.f32 %v1913, %v855
        %v2968 = vmul.f32 %v1917, %v856
        %v2969 = vmul.f32 %v1921, %v857
        %v2970 = vmul.f32 %v1925, %v858
        %v2971 = vmul.f32 %v1929, %v859
        %v2972 = vmul.f32 %v1933, %v860
        %v2973 = vmul.f32 %v1937, %v861
        %v2974 = vmul.f32 %v1941, %v862
        %v2975 = vmul.f32 %v1945, %v863
        %v2976 = vmul.f32 %v1949, %v864
        %v2977 = vmul.f32 %v1953, %v865
        %v2978 = vmul.f32 %v1957, %v834
        %v2979 = vmul.f32 %v1961, %v835
        %v2980 = vmul.f32 %v1965, %v836
        %v2981 = vmul.f32 %v1969, %v837
        %v2982 = vmul.f32 %v1973, %v838
        %v2983 = vmul.f32 %v1977, %v839
        %v2984 = vmul.f32 %v1981, %v840
        %v2985 = vmul.f32 %v1985, %v841
        %v2986 = vmul.f32 %v1989, %v842
        %v2987 = vmul.f32 %v1993, %v843
        %v2988 = vmul.f32 %v1997, %v844
        %v2989 = vmul.f32 %v2001, %v845
        %v2990 = vmul.f32 %v2005, %v846
        %v2991 = vmul.f32 %v2009, %v847
        %v2992 = vmul.f32 %v2013, %v848
        %v2993 = vmul.f32 %v2017, %v849
        %v2994 = vmul.f32 %v1957, %v850
        %v2995 = vmul.f32 %v1961, %v851
        %v2996 = vmul.f32 %v1965, %v852
        %v2997 = vmul.f32 %v1969, %v853
        %v2998 = vmul.f32 %v1973, %v854
        %v2999 = vmul.f32 %v1977, %v855
        %v3000 = vmul.f32 %v1981, %v856
        %v3001 = vmul.f32 %v1985, %v857
        %v3002 = vmul.f32 %v1989, %v858
        %v3003 = vmul.f32 %v1993, %v859
        %v3004 = vmul.f32 %v1997, %v860
        %v3005 = vmul.f32 %v2001, %v861
        %v3006 = vmul.f32 %v2005, %v862
        %v3007 = vmul.f32 %v2009, %v863
        %v3008 = vmul.f32 %v2013, %v864
        %v3009 = vmul.f32 %v2017, %v865
        %v3010 = vmul.f32 %v2021, %v834
        %v3011 = vmul.f32 %v2025, %v835
        %v3012 = vmul.f32 %v2029, %v836
        %v3013 = vmul.f32 %v2033, %v837
        %v3014 = vmul.f32 %v2037, %v838
        %v3015 = vmul.f32 %v2041, %v839
        %v3016 = vmul.f32 %v2045, %v840
        %v3017 = vmul.f32 %v2049, %v841
        %v3018 = vmul.f32 %v2053, %v842
        %v3019 = vmul.f32 %v2057, %v843
        %v3020 = vmul.f32 %v2061, %v844
        %v3021 = vmul.f32 %v2065, %v845
        %v3022 = vmul.f32 %v2069, %v846
        %v3023 = vmul.f32 %v2073, %v847
        %v3024 = vmul.f32 %v2077, %v848
        %v3025 = vmul.f32 %v2081, %v849
        %v3026 = vmul.f32 %v2021, %v850
        %v3027 = vmul.f32 %v2025, %v851
        %v3028 = vmul.f32 %v2029, %v852
        %v3029 = vmul.f32 %v2033, %v853
        %v3030 = vmul.f32 %v2037, %v854
        %v3031 = vmul.f32 %v2041, %v855
        %v3032 = vmul.f32 %v2045, %v856
        %v3033 = vmul.f32 %v2049, %v857
        %v3034 = vmul.f32 %v2053, %v858
        %v3035 = vmul.f32 %v2057, %v859
        %v3036 = vmul.f32 %v2061, %v860
        %v3037 = vmul.f32 %v2065, %v861
        %v3038 = vmul.f32 %v2069, %v862
        %v3039 = vmul.f32 %v2073, %v863
        %v3040 = vmul.f32 %v2077, %v864
        %v3041 = vmul.f32 %v2081, %v865
        %v3042 = vmul.f32 %v2085, %v834
        %v3043 = vmul.f32 %v2089, %v835
        %v3044 = vmul.f32 %v2093, %v836
        %v3045 = vmul.f32 %v2097, %v837
        %v3046 = vmul.f32 %v2101, %v838
        %v3047 = vmul.f32 %v2105, %v839
        %v3048 = vmul.f32 %v2109, %v840
        %v3049 = vmul.f32 %v2113, %v841
        %v3050 = vmul.f32 %v2117, %v842
        %v3051 = vmul.f32 %v2121, %v843
        %v3052 = vmul.f32 %v2125, %v844
        %v3053 = vmul.f32 %v2129, %v845
        %v3054 = vmul.f32 %v2133, %v846
        %v3055 = vmul.f32 %v2137, %v847
        %v3056 = vmul.f32 %v2141, %v848
        %v3057 = vmul.f32 %v2145, %v849
        %v3058 = vmul.f32 %v2085, %v850
        %v3059 = vmul.f32 %v2089, %v851
        %v3060 = vmul.f32 %v2093, %v852
        %v3061 = vmul.f32 %v2097, %v853
        %v3062 = vmul.f32 %v2101, %v854
        %v3063 = vmul.f32 %v2105, %v855
        %v3064 = vmul.f32 %v2109, %v856
        %v3065 = vmul.f32 %v2113, %v857
        %v3066 = vmul.f32 %v2117, %v858
        %v3067 = vmul.f32 %v2121, %v859
        %v3068 = vmul.f32 %v2125, %v860
        %v3069 = vmul.f32 %v2129, %v861
        %v3070 = vmul.f32 %v2133, %v862
        %v3071 = vmul.f32 %v2137, %v863
        %v3072 = vmul.f32 %v2141, %v864
        %v3073 = vmul.f32 %v2145, %v865
        %v3074 = vmul.f32 %v2149, %v834
        %v3075 = vmul.f32 %v2153, %v835
        %v3076 = vmul.f32 %v2157, %v836
        %v3077 = vmul.f32 %v2161, %v837
        %v3078 = vmul.f32 %v2165, %v838
        %v3079 = vmul.f32 %v2169, %v839
        %v3080 = vmul.f32 %v2173, %v840
        %v3081 = vmul.f32 %v2177, %v841
        %v3082 = vmul.f32 %v2181, %v842
        %v3083 = vmul.f32 %v2185, %v843
        %v3084 = vmul.f32 %v2189, %v844
        %v3085 = vmul.f32 %v2193, %v845
        %v3086 = vmul.f32 %v2197, %v846
        %v3087 = vmul.f32 %v2201, %v847
        %v3088 = vmul.f32 %v2205, %v848
        %v3089 = vmul.f32 %v2209, %v849
        %v3090 = vmul.f32 %v2149, %v850
        %v3091 = vmul.f32 %v2153, %v851
        %v3092 = vmul.f32 %v2157, %v852
        %v3093 = vmul.f32 %v2161, %v853
        %v3094 = vmul.f32 %v2165, %v854
        %v3095 = vmul.f32 %v2169, %v855
        %v3096 = vmul.f32 %v2173, %v856
        %v3097 = vmul.f32 %v2177, %v857
        %v3098 = vmul.f32 %v2181, %v858
        %v3099 = vmul.f32 %v2185, %v859
        %v3100 = vmul.f32 %v2189, %v860
        %v3101 = vmul.f32 %v2193, %v861
        %v3102 = vmul.f32 %v2197, %v862
        %v3103 = vmul.f32 %v2201, %v863
        %v3104 = vmul.f32 %v2205, %v864
        %v3105 = vmul.f32 %v2209, %v865
        %v3106 = vmul.f32 %v2213, %v834
        %v3107 = vmul.f32 %v2217, %v835
        %v3108 = vmul.f32 %v2221, %v836
        %v3109 = vmul.f32 %v2225, %v837
        %v3110 = vmul.f32 %v2229, %v838
        %v3111 = vmul.f32 %v2233, %v839
        %v3112 = vmul.f32 %v2237, %v840
        %v3113 = vmul.f32 %v2241, %v841
        %v3114 = vmul.f32 %v2245, %v842
        %v3115 = vmul.f32 %v2249, %v843
        %v3116 = vmul.f32 %v2253, %v844
        %v3117 = vmul.f32 %v2257, %v845
        %v3118 = vmul.f32 %v2261, %v846
        %v3119 = vmul.f32 %v2265, %v847
        %v3120 = vmul.f32 %v2269, %v848
        %v3121 = vmul.f32 %v2273, %v849
        %v3122 = vmul.f32 %v2213, %v850
        %v3123 = vmul.f32 %v2217, %v851
        %v3124 = vmul.f32 %v2221, %v852
        %v3125 = vmul.f32 %v2225, %v853
        %v3126 = vmul.f32 %v2229, %v854
        %v3127 = vmul.f32 %v2233, %v855
        %v3128 = vmul.f32 %v2237, %v856
        %v3129 = vmul.f32 %v2241, %v857
        %v3130 = vmul.f32 %v2245, %v858
        %v3131 = vmul.f32 %v2249, %v859
        %v3132 = vmul.f32 %v2253, %v860
        %v3133 = vmul.f32 %v2257, %v861
        %v3134 = vmul.f32 %v2261, %v862
        %v3135 = vmul.f32 %v2265, %v863
        %v3136 = vmul.f32 %v2269, %v864
        %v3137 = vmul.f32 %v2273, %v865
        %v3138 = vmul.f32 %v2277, %v834
        %v3139 = vmul.f32 %v2281, %v835
        %v3140 = vmul.f32 %v2285, %v836
        %v3141 = vmul.f32 %v2289, %v837
        %v3142 = vmul.f32 %v2293, %v838
        %v3143 = vmul.f32 %v2297, %v839
        %v3144 = vmul.f32 %v2301, %v840
        %v3145 = vmul.f32 %v2305, %v841
        %v3146 = vmul.f32 %v2309, %v842
        %v3147 = vmul.f32 %v2313, %v843
        %v3148 = vmul.f32 %v2317, %v844
        %v3149 = vmul.f32 %v2321, %v845
        %v3150 = vmul.f32 %v2325, %v846
        %v3151 = vmul.f32 %v2329, %v847
        %v3152 = vmul.f32 %v2333, %v848
        %v3153 = vmul.f32 %v2337, %v849
        %v3154 = vmul.f32 %v2277, %v850
        %v3155 = vmul.f32 %v2281, %v851
        %v3156 = vmul.f32 %v2285, %v852
        %v3157 = vmul.f32 %v2289, %v853
        %v3158 = vmul.f32 %v2293, %v854
        %v3159 = vmul.f32 %v2297, %v855
        %v3160 = vmul.f32 %v2301, %v856
        %v3161 = vmul.f32 %v2305, %v857
        %v3162 = vmul.f32 %v2309, %v858
        %v3163 = vmul.f32 %v2313, %v859
        %v3164 = vmul.f32 %v2317, %v860
        %v3165 = vmul.f32 %v2321, %v861
        %v3166 = vmul.f32 %v2325, %v862
        %v3167 = vmul.f32 %v2329, %v863
        %v3168 = vmul.f32 %v2333, %v864
        %v3169 = vmul.f32 %v2337, %v865
        %v3170 = vmul.f32 %v2341, %v834
        %v3171 = vmul.f32 %v2345, %v835
        %v3172 = vmul.f32 %v2349, %v836
        %v3173 = vmul.f32 %v2353, %v837
        %v3174 = vmul.f32 %v2357, %v838
        %v3175 = vmul.f32 %v2361, %v839
        %v3176 = vmul.f32 %v2365, %v840
        %v3177 = vmul.f32 %v2369, %v841
        %v3178 = vmul.f32 %v2373, %v842
        %v3179 = vmul.f32 %v2377, %v843
        %v3180 = vmul.f32 %v2381, %v844
        %v3181 = vmul.f32 %v2385, %v845
        %v3182 = vmul.f32 %v2389, %v846
        %v3183 = vmul.f32 %v2393, %v847
        %v3184 = vmul.f32 %v2397, %v848
        %v3185 = vmul.f32 %v2401, %v849
        %v3186 = vmul.f32 %v2341, %v850
        %v3187 = vmul.f32 %v2345, %v851
        %v3188 = vmul.f32 %v2349, %v852
        %v3189 = vmul.f32 %v2353, %v853
        %v3190 = vmul.f32 %v2357, %v854
        %v3191 = vmul.f32 %v2361, %v855
        %v3192 = vmul.f32 %v2365, %v856
        %v3193 = vmul.f32 %v2369, %v857
        %v3194 = vmul.f32 %v2373, %v858
        %v3195 = vmul.f32 %v2377, %v859
        %v3196 = vmul.f32 %v2381, %v860
        %v3197 = vmul.f32 %v2385, %v861
        %v3198 = vmul.f32 %v2389, %v862
        %v3199 = vmul.f32 %v2393, %v863
        %v3200 = vmul.f32 %v2397, %v864
        %v3201 = vmul.f32 %v2401, %v865
        %v3202 = vmul.f32 %v2405, %v834
        %v3203 = vmul.f32 %v2409, %v835
        %v3204 = vmul.f32 %v2413, %v836
        %v3205 = vmul.f32 %v2417, %v837
        %v3206 = vmul.f32 %v2421, %v838
        %v3207 = vmul.f32 %v2425, %v839
        %v3208 = vmul.f32 %v2429, %v840
        %v3209 = vmul.f32 %v2433, %v841
        %v3210 = vmul.f32 %v2437, %v842
        %v3211 = vmul.f32 %v2441, %v843
        %v3212 = vmul.f32 %v2445, %v844
        %v3213 = vmul.f32 %v2449, %v845
        %v3214 = vmul.f32 %v2453, %v846
        %v3215 = vmul.f32 %v2457, %v847
        %v3216 = vmul.f32 %v2461, %v848
        %v3217 = vmul.f32 %v2465, %v849
        %v3218 = vmul.f32 %v2405, %v850
        %v3219 = vmul.f32 %v2409, %v851
        %v3220 = vmul.f32 %v2413, %v852
        %v3221 = vmul.f32 %v2417, %v853
        %v3222 = vmul.f32 %v2421, %v854
        %v3223 = vmul.f32 %v2425, %v855
        %v3224 = vmul.f32 %v2429, %v856
        %v3225 = vmul.f32 %v2433, %v857
        %v3226 = vmul.f32 %v2437, %v858
        %v3227 = vmul.f32 %v2441, %v859
        %v3228 = vmul.f32 %v2445, %v860
        %v3229 = vmul.f32 %v2449, %v861
        %v3230 = vmul.f32 %v2453, %v862
        %v3231 = vmul.f32 %v2457, %v863
        %v3232 = vmul.f32 %v2461, %v864
        %v3233 = vmul.f32 %v2465, %v865
        %v3234 = vld [vmem:[#allocation7] sm:$0xff]
        %v3235 = vld [vmem:[#allocation7 + $0x8] sm:$0xff]
        %v3236 = vld [vmem:[#allocation7 + $0x10] sm:$0xff]
        %v3237 = vld [vmem:[#allocation7 + $0x18] sm:$0xff]
        %v3238 = vld [vmem:[#allocation7 + $0x20] sm:$0xff]
        %v3239 = vld [vmem:[#allocation7 + $0x28] sm:$0xff]
        %v3240 = vld [vmem:[#allocation7 + $0x30] sm:$0xff]
        %v3241 = vld [vmem:[#allocation7 + $0x38] sm:$0xff]
        %v3242 = vld [vmem:[#allocation7 + $0x40] sm:$0xff]
        %v3243 = vld [vmem:[#allocation7 + $0x48] sm:$0xff]
        %v3244 = vld [vmem:[#allocation7 + $0x50] sm:$0xff]
        %v3245 = vld [vmem:[#allocation7 + $0x58] sm:$0xff]
        %v3246 = vld [vmem:[#allocation7 + $0x60] sm:$0xff]
        %v3247 = vld [vmem:[#allocation7 + $0x68] sm:$0xff]
        %v3248 = vld [vmem:[#allocation7 + $0x70] sm:$0xff]
        %v3249 = vld [vmem:[#allocation7 + $0x78] sm:$0xff]
        %v3250 = vld [vmem:[#allocation7 + $0x80] sm:$0xff]
        %v3251 = vld [vmem:[#allocation7 + $0x88] sm:$0xff]
        %v3252 = vld [vmem:[#allocation7 + $0x90] sm:$0xff]
        %v3253 = vld [vmem:[#allocation7 + $0x98] sm:$0xff]
        %v3254 = vld [vmem:[#allocation7 + $0xa0] sm:$0xff]
        %v3255 = vld [vmem:[#allocation7 + $0xa8] sm:$0xff]
        %v3256 = vld [vmem:[#allocation7 + $0xb0] sm:$0xff]
        %v3257 = vld [vmem:[#allocation7 + $0xb8] sm:$0xff]
        %3258 = vmatprep.subr.mxu0 %v2723
        %3259 = vmatpush1.msra.mxu0 %v2722
        %3260 = vmatprep.subr.mxu0 %v2739
        %3261 = vmatpush1.msra.mxu0 %v2738
        %3262 = vmatprep.subr.mxu0 %v2755
        %3263 = vmatpush1.msra.mxu0 %v2754
        %3264 = vmatprep.subr.mxu0 %v2771
        %3265 = vmatpush1.msra.mxu0 %v2770
        %3266 = vmatprep.subr.mxu0 %v2787
        %3267 = vmatpush1.msra.mxu0 %v2786
        %3268 = vmatprep.subr.mxu0 %v2803
        %3269 = vmatpush1.msra.mxu0 %v2802
        %3270 = vmatprep.subr.mxu0 %v2819
        %3271 = vmatpush1.msra.mxu0 %v2818
        %3272 = vmatprep.subr.mxu0 %v2835
        %3273 = vmatpush1.msra.mxu0 %v2834
        %3274 = vmatprep.subr.mxu0 %v2851
        %3275 = vmatpush1.msra.mxu0 %v2850
        %3276 = vmatprep.subr.mxu0 %v2867
        %3277 = vmatpush1.msra.mxu0 %v2866
        %3278 = vmatprep.subr.mxu0 %v2883
        %3279 = vmatpush1.msra.mxu0 %v2882
        %3280 = vmatprep.subr.mxu0 %v2899
        %3281 = vmatpush1.msra.mxu0 %v2898
        %3282 = vmatprep.subr.mxu0 %v2915
        %3283 = vmatpush1.msra.mxu0 %v2914
        %3284 = vmatprep.subr.mxu0 %v2931
        %3285 = vmatpush1.msra.mxu0 %v2930
        %3286 = vmatprep.subr.mxu0 %v2947
        %3287 = vmatpush1.msra.mxu0 %v2946
        %3288 = vmatprep.subr.mxu0 %v2963
        %3289 = vmatpush1.msra.mxu0 %v2962
        %3290 = vmatprep.subr.mxu0 %v2979
        %3291 = vmatpush1.msra.mxu0 %v2978
        %3292 = vmatprep.subr.mxu0 %v2995
        %3293 = vmatpush1.msra.mxu0 %v2994
        %3294 = vmatprep.subr.mxu0 %v3011
        %3295 = vmatpush1.msra.mxu0 %v3010
        %3296 = vmatprep.subr.mxu0 %v3027
        %3297 = vmatpush1.msra.mxu0 %v3026
        %3298 = vmatprep.subr.mxu0 %v3043
        %3299 = vmatpush1.msra.mxu0 %v3042
        %3300 = vmatprep.subr.mxu0 %v3059
        %3301 = vmatpush1.msra.mxu0 %v3058
        %3302 = vmatprep.subr.mxu0 %v3075
        %3303 = vmatpush1.msra.mxu0 %v3074
        %3304 = vmatprep.subr.mxu0 %v3091
        %3305 = vmatpush1.msra.mxu0 %v3090
        %3306 = vmatprep.subr.mxu0 %v3107
        %3307 = vmatpush1.msra.mxu0 %v3106
        %3308 = vmatprep.subr.mxu0 %v3123
        %3309 = vmatpush1.msra.mxu0 %v3122
        %3310 = vmatprep.subr.mxu0 %v3139
        %3311 = vmatpush1.msra.mxu0 %v3138
        %3312 = vmatprep.subr.mxu0 %v3155
        %3313 = vmatpush1.msra.mxu0 %v3154
        %3314 = vmatprep.subr.mxu0 %v3171
        %3315 = vmatpush1.msra.mxu0 %v3170
        %3316 = vmatprep.subr.mxu0 %v3187
        %3317 = vmatpush1.msra.mxu0 %v3186
        %3318 = vmatprep.subr.mxu0 %v3203
        %3319 = vmatpush1.msra.mxu0 %v3202
        %3320 = vmatprep.subr.mxu0 %v3219
        %3321 = vmatpush1.msra.mxu0 %v3218
        %3322 = vmatprep.mubr.f32.mxu0 %v3235
        %3323 = vmatmul.mubr.f32.gmra.mrb[0].mxu0 %v3234
        %v3324 = vpop.f32.mrb[0].mxu0
        %v3325 = vadd.f32 0.0, %v3324
        %v3326 = vpop.f32.mrb[0].mxu0
        %v3327 = vadd.f32 0.0, %v3326
        %3328 = vmatprep.mubr.f32.mxu0 %v3237
        %3329 = vmatmul.mubr.f32.gmra.mrb[0].mxu0 %v3236
        %v3330 = vpop.f32.mrb[0].mxu0
        %v3331 = vadd.f32 0.0, %v3330
        %v3332 = vpop.f32.mrb[0].mxu0
        %v3333 = vadd.f32 0.0, %v3332
        %3334 = vmatprep.mubr.f32.mxu0 %v3239
        %3335 = vmatmul.mubr.f32.gmra.mrb[0].mxu0 %v3238
        %v3336 = vpop.f32.mrb[0].mxu0
        %v3337 = vadd.f32 0.0, %v3336
        %v3338 = vpop.f32.mrb[0].mxu0
        %v3339 = vadd.f32 0.0, %v3338
        %3340 = vmatprep.mubr.f32.mxu0 %v3241
        %3341 = vmatmul.mubr.f32.gmra.mrb[0].mxu0 %v3240
        %v3342 = vpop.f32.mrb[0].mxu0
        %v3343 = vadd.f32 0.0, %v3342
        %v3344 = vpop.f32.mrb[0].mxu0
        %v3345 = vadd.f32 0.0, %v3344
        %3346 = vmatprep.mubr.f32.mxu0 %v3243
        %3347 = vmatmul.mubr.f32.gmra.mrb[0].mxu0 %v3242
        %v3348 = vpop.f32.mrb[0].mxu0
        %v3349 = vadd.f32 0.0, %v3348
        %v3350 = vpop.f32.mrb[0].mxu0
        %v3351 = vadd.f32 0.0, %v3350
        %3352 = vmatprep.mubr.f32.mxu0 %v3245
        %3353 = vmatmul.mubr.f32.gmra.mrb[0].mxu0 %v3244
        %v3354 = vpop.f32.mrb[0].mxu0
        %v3355 = vadd.f32 0.0, %v3354
        %v3356 = vpop.f32.mrb[0].mxu0
        %v3357 = vadd.f32 0.0, %v3356
        %3358 = vmatprep.mubr.f32.mxu0 %v3247
        %3359 = vmatmul.mubr.f32.gmra.mrb[0].mxu0 %v3246
        %v3360 = vpop.f32.mrb[0].mxu0
        %v3361 = vadd.f32 0.0, %v3360
        %v3362 = vpop.f32.mrb[0].mxu0
        %v3363 = vadd.f32 0.0, %v3362
        %3364 = vmatprep.mubr.f32.mxu0 %v3249
        %3365 = vmatmul.mubr.f32.gmra.mrb[0].mxu0 %v3248
        %v3366 = vpop.f32.mrb[0].mxu0
        %v3367 = vadd.f32 0.0, %v3366
        %v3368 = vpop.f32.mrb[0].mxu0
        %v3369 = vadd.f32 0.0, %v3368
        %3370 = vmatprep.mubr.f32.mxu0 %v3251
        %3371 = vmatmul.mubr.f32.gmra.mrb[0].mxu0 %v3250
        %v3372 = vpop.f32.mrb[0].mxu0
        %v3373 = vadd.f32 0.0, %v3372
        %v3374 = vpop.f32.mrb[0].mxu0
        %v3375 = vadd.f32 0.0, %v3374
        %3376 = vmatprep.mubr.f32.mxu0 %v3253
        %3377 = vmatmul.mubr.f32.gmra.mrb[0].mxu0 %v3252
        %v3378 = vpop.f32.mrb[0].mxu0
        %v3379 = vadd.f32 0.0, %v3378
        %v3380 = vpop.f32.mrb[0].mxu0
        %v3381 = vadd.f32 0.0, %v3380
        %3382 = vmatprep.mubr.f32.mxu0 %v3255
        %3383 = vmatmul.mubr.f32.gmra.mrb[0].mxu0 %v3254
        %v3384 = vpop.f32.mrb[0].mxu0
        %v3385 = vadd.f32 0.0, %v3384
        %v3386 = vpop.f32.mrb[0].mxu0
        %v3387 = vadd.f32 0.0, %v3386
        %3388 = vmatprep.mubr.f32.mxu0 %v3257
        %3389 = vmatmul.mubr.f32.gmra.mrb[0].mxu0 %v3256
        %v3390 = vpop.f32.mrb[0].mxu0
        %v3391 = vadd.f32 0.0, %v3390
        %v3392 = vpop.f32.mrb[0].mxu0
        %v3393 = vadd.f32 0.0, %v3392
        %3394 = vdwg.mxu0
        %3395 = vmatprep.subr.mxu0 %v2725
        %3396 = vmatpush1.msra.mxu0 %v2724
        %3397 = vmatprep.subr.mxu0 %v2741
        %3398 = vmatpush1.msra.mxu0 %v2740
        %3399 = vmatprep.subr.mxu0 %v2757
        %3400 = vmatpush1.msra.mxu0 %v2756
        %3401 = vmatprep.subr.mxu0 %v2773
        %3402 = vmatpush1.msra.mxu0 %v2772
        %3403 = vmatprep.subr.mxu0 %v2789
        %3404 = vmatpush1.msra.mxu0 %v2788
        %3405 = vmatprep.subr.mxu0 %v2805
        %3406 = vmatpush1.msra.mxu0 %v2804
        %3407 = vmatprep.subr.mxu0 %v2821
        %3408 = vmatpush1.msra.mxu0 %v2820
        %3409 = vmatprep.subr.mxu0 %v2837
        %3410 = vmatpush1.msra.mxu0 %v2836
        %3411 = vmatprep.subr.mxu0 %v2853
        %3412 = vmatpush1.msra.mxu0 %v2852
        %3413 = vmatprep.subr.mxu0 %v2869
        %3414 = vmatpush1.msra.mxu0 %v2868
        %3415 = vmatprep.subr.mxu0 %v2885
        %3416 = vmatpush1.msra.mxu0 %v2884
        %3417 = vmatprep.subr.mxu0 %v2901
        %3418 = vmatpush1.msra.mxu0 %v2900
        %3419 = vmatprep.subr.mxu0 %v2917
        %3420 = vmatpush1.msra.mxu0 %v2916
        %3421 = vmatprep.subr.mxu0 %v2933
        %3422 = vmatpush1.msra.mxu0 %v2932
        %3423 = vmatprep.subr.mxu0 %v2949
        %3424 = vmatpush1.msra.mxu0 %v2948
        %3425 = vmatprep.subr.mxu0 %v2965
        %3426 = vmatpush1.msra.mxu0 %v2964
        %3427 = vmatprep.subr.mxu0 %v2981
        %3428 = vmatpush1.msra.mxu0 %v2980
        %3429 = vmatprep.subr.mxu0 %v2997
        %3430 = vmatpush1.msra.mxu0 %v2996
        %3431 = vmatprep.subr.mxu0 %v3013
        %3432 = vmatpush1.msra.mxu0 %v3012
        %3433 = vmatprep.subr.mxu0 %v3029
        %3434 = vmatpush1.msra.mxu0 %v3028
        %3435 = vmatprep.subr.mxu0 %v3045
        %3436 = vmatpush1.msra.mxu0 %v3044
        %3437 = vmatprep.subr.mxu0 %v3061
        %3438 = vmatpush1.msra.mxu0 %v3060
        %3439 = vmatprep.subr.mxu0 %v3077
        %3440 = vmatpush1.msra.mxu0 %v3076
        %3441 = vmatprep.subr.mxu0 %v3093
        %3442 = vmatpush1.msra.mxu0 %v3092
        %3443 = vmatprep.subr.mxu0 %v3109
        %3444 = vmatpush1.msra.mxu0 %v3108
        %3445 = vmatprep.subr.mxu0 %v3125
        %3446 = vmatpush1.msra.mxu0 %v3124
        %3447 = vmatprep.subr.mxu0 %v3141
        %3448 = vmatpush1.msra.mxu0 %v3140
        %3449 = vmatprep.subr.mxu0 %v3157
        %3450 = vmatpush1.msra.mxu0 %v3156
        %3451 = vmatprep.subr.mxu0 %v3173
        %3452 = vmatpush1.msra.mxu0 %v3172
        %3453 = vmatprep.subr.mxu0 %v3189
        %3454 = vmatpush1.msra.mxu0 %v3188
        %3455 = vmatprep.subr.mxu0 %v3205
        %3456 = vmatpush1.msra.mxu0 %v3204
        %3457 = vmatprep.subr.mxu0 %v3221
        %3458 = vmatpush1.msra.mxu0 %v3220
        %3459 = vmatprep.mubr.f32.mxu0 %v3235
        %3460 = vmatmul.mubr.f32.gmra.mrb[0].mxu0 %v3234
        %v3461 = vpop.f32.mrb[0].mxu0
        %v3462 = vadd.f32 0.0, %v3461
        %v3463 = vpop.f32.mrb[0].mxu0
        %v3464 = vadd.f32 0.0, %v3463
        %3465 = vmatprep.mubr.f32.mxu0 %v3237
        %3466 = vmatmul.mubr.f32.gmra.mrb[0].mxu0 %v3236
        %v3467 = vpop.f32.mrb[0].mxu0
        %v3468 = vadd.f32 0.0, %v3467
        %v3469 = vpop.f32.mrb[0].mxu0
        %v3470 = vadd.f32 0.0, %v3469
        %3471 = vmatprep.mubr.f32.mxu0 %v3239
        %3472 = vmatmul.mubr.f32.gmra.mrb[0].mxu0 %v3238
        %v3473 = vpop.f32.mrb[0].mxu0
        %v3474 = vadd.f32 0.0, %v3473
        %v3475 = vpop.f32.mrb[0].mxu0
        %v3476 = vadd.f32 0.0, %v3475
        %3477 = vmatprep.mubr.f32.mxu0 %v3241
        %3478 = vmatmul.mubr.f32.gmra.mrb[0].mxu0 %v3240
        %v3479 = vpop.f32.mrb[0].mxu0
        %v3480 = vadd.f32 0.0, %v3479
        %v3481 = vpop.f32.mrb[0].mxu0
        %v3482 = vadd.f32 0.0, %v3481
        %3483 = vmatprep.mubr.f32.mxu0 %v3243
        %3484 = vmatmul.mubr.f32.gmra.mrb[0].mxu0 %v3242
        %v3485 = vpop.f32.mrb[0].mxu0
        %v3486 = vadd.f32 0.0, %v3485
        %v3487 = vpop.f32.mrb[0].mxu0
        %v3488 = vadd.f32 0.0, %v3487
        %3489 = vmatprep.mubr.f32.mxu0 %v3245
        %3490 = vmatmul.mubr.f32.gmra.mrb[0].mxu0 %v3244
        %v3491 = vpop.f32.mrb[0].mxu0
        %v3492 = vadd.f32 0.0, %v3491
        %v3493 = vpop.f32.mrb[0].mxu0
        %v3494 = vadd.f32 0.0, %v3493
        %3495 = vmatprep.mubr.f32.mxu0 %v3247
        %3496 = vmatmul.mubr.f32.gmra.mrb[0].mxu0 %v3246
        %v3497 = vpop.f32.mrb[0].mxu0
        %v3498 = vadd.f32 0.0, %v3497
        %v3499 = vpop.f32.mrb[0].mxu0
        %v3500 = vadd.f32 0.0, %v3499
        %3501 = vmatprep.mubr.f32.mxu0 %v3249
        %3502 = vmatmul.mubr.f32.gmra.mrb[0].mxu0 %v3248
        %v3503 = vpop.f32.mrb[0].mxu0
        %v3504 = vadd.f32 0.0, %v3503
        %v3505 = vpop.f32.mrb[0].mxu0
        %v3506 = vadd.f32 0.0, %v3505
        %3507 = vmatprep.mubr.f32.mxu0 %v3251
        %3508 = vmatmul.mubr.f32.gmra.mrb[0].mxu0 %v3250
        %v3509 = vpop.f32.mrb[0].mxu0
        %v3510 = vadd.f32 0.0, %v3509
        %v3511 = vpop.f32.mrb[0].mxu0
        %v3512 = vadd.f32 0.0, %v3511
        %3513 = vmatprep.mubr.f32.mxu0 %v3253
        %3514 = vmatmul.mubr.f32.gmra.mrb[0].mxu0 %v3252
        %v3515 = vpop.f32.mrb[0].mxu0
        %v3516 = vadd.f32 0.0, %v3515
        %v3517 = vpop.f32.mrb[0].mxu0
        %v3518 = vadd.f32 0.0, %v3517
        %3519 = vmatprep.mubr.f32.mxu0 %v3255
        %3520 = vmatmul.mubr.f32.gmra.mrb[0].mxu0 %v3254
        %v3521 = vpop.f32.mrb[0].mxu0
        %v3522 = vadd.f32 0.0, %v3521
        %v3523 = vpop.f32.mrb[0].mxu0
        %v3524 = vadd.f32 0.0, %v3523
        %3525 = vmatprep.mubr.f32.mxu0 %v3257
        %3526 = vmatmul.mubr.f32.gmra.mrb[0].mxu0 %v3256
        %v3527 = vpop.f32.mrb[0].mxu0
        %v3528 = vadd.f32 0.0, %v3527
        %v3529 = vpop.f32.mrb[0].mxu0
        %v3530 = vadd.f32 0.0, %v3529
        %3531 = vdwg.mxu0
        %3532 = vmatprep.subr.mxu0 %v2727
        %3533 = vmatpush1.msra.mxu0 %v2726
        %3534 = vmatprep.subr.mxu0 %v2743
        %3535 = vmatpush1.msra.mxu0 %v2742
        %3536 = vmatprep.subr.mxu0 %v2759
        %3537 = vmatpush1.msra.mxu0 %v2758
        %3538 = vmatprep.subr.mxu0 %v2775
        %3539 = vmatpush1.msra.mxu0 %v2774
        %3540 = vmatprep.subr.mxu0 %v2791
        %3541 = vmatpush1.msra.mxu0 %v2790
        %3542 = vmatprep.subr.mxu0 %v2807
        %3543 = vmatpush1.msra.mxu0 %v2806
        %3544 = vmatprep.subr.mxu0 %v2823
        %3545 = vmatpush1.msra.mxu0 %v2822
        %3546 = vmatprep.subr.mxu0 %v2839
        %3547 = vmatpush1.msra.mxu0 %v2838
        %3548 = vmatprep.subr.mxu0 %v2855
        %3549 = vmatpush1.msra.mxu0 %v2854
        %3550 = vmatprep.subr.mxu0 %v2871
        %3551 = vmatpush1.msra.mxu0 %v2870
        %3552 = vmatprep.subr.mxu0 %v2887
        %3553 = vmatpush1.msra.mxu0 %v2886
        %3554 = vmatprep.subr.mxu0 %v2903
        %3555 = vmatpush1.msra.mxu0 %v2902
        %3556 = vmatprep.subr.mxu0 %v2919
        %3557 = vmatpush1.msra.mxu0 %v2918
        %3558 = vmatprep.subr.mxu0 %v2935
        %3559 = vmatpush1.msra.mxu0 %v2934
        %3560 = vmatprep.subr.mxu0 %v2951
        %3561 = vmatpush1.msra.mxu0 %v2950
        %3562 = vmatprep.subr.mxu0 %v2967
        %3563 = vmatpush1.msra.mxu0 %v2966
        %3564 = vmatprep.subr.mxu0 %v2983
        %3565 = vmatpush1.msra.mxu0 %v2982
        %3566 = vmatprep.subr.mxu0 %v2999
        %3567 = vmatpush1.msra.mxu0 %v2998
        %3568 = vmatprep.subr.mxu0 %v3015
        %3569 = vmatpush1.msra.mxu0 %v3014
        %3570 = vmatprep.subr.mxu0 %v3031
        %3571 = vmatpush1.msra.mxu0 %v3030
        %3572 = vmatprep.subr.mxu0 %v3047
        %3573 = vmatpush1.msra.mxu0 %v3046
        %3574 = vmatprep.subr.mxu0 %v3063
        %3575 = vmatpush1.msra.mxu0 %v3062
        %3576 = vmatprep.subr.mxu0 %v3079
        %3577 = vmatpush1.msra.mxu0 %v3078
        %3578 = vmatprep.subr.mxu0 %v3095
        %3579 = vmatpush1.msra.mxu0 %v3094
        %3580 = vmatprep.subr.mxu0 %v3111
        %3581 = vmatpush1.msra.mxu0 %v3110
        %3582 = vmatprep.subr.mxu0 %v3127
        %3583 = vmatpush1.msra.mxu0 %v3126
        %3584 = vmatprep.subr.mxu0 %v3143
        %3585 = vmatpush1.msra.mxu0 %v3142
        %3586 = vmatprep.subr.mxu0 %v3159
        %3587 = vmatpush1.msra.mxu0 %v3158
        %3588 = vmatprep.subr.mxu0 %v3175
        %3589 = vmatpush1.msra.mxu0 %v3174
        %3590 = vmatprep.subr.mxu0 %v3191
        %3591 = vmatpush1.msra.mxu0 %v3190
        %3592 = vmatprep.subr.mxu0 %v3207
        %3593 = vmatpush1.msra.mxu0 %v3206
        %3594 = vmatprep.subr.mxu0 %v3223
        %3595 = vmatpush1.msra.mxu0 %v3222
        %3596 = vmatprep.mubr.f32.mxu0 %v3235
        %3597 = vmatmul.mubr.f32.gmra.mrb[0].mxu0 %v3234
        %v3598 = vpop.f32.mrb[0].mxu0
        %v3599 = vadd.f32 0.0, %v3598
        %v3600 = vpop.f32.mrb[0].mxu0
        %v3601 = vadd.f32 0.0, %v3600
        %3602 = vmatprep.mubr.f32.mxu0 %v3237
        %3603 = vmatmul.mubr.f32.gmra.mrb[0].mxu0 %v3236
        %v3604 = vpop.f32.mrb[0].mxu0
        %v3605 = vadd.f32 0.0, %v3604
        %v3606 = vpop.f32.mrb[0].mxu0
        %v3607 = vadd.f32 0.0, %v3606
        %3608 = vmatprep.mubr.f32.mxu0 %v3239
        %3609 = vmatmul.mubr.f32.gmra.mrb[0].mxu0 %v3238
        %v3610 = vpop.f32.mrb[0].mxu0
        %v3611 = vadd.f32 0.0, %v3610
        %v3612 = vpop.f32.mrb[0].mxu0
        %v3613 = vadd.f32 0.0, %v3612
        %3614 = vmatprep.mubr.f32.mxu0 %v3241
        %3615 = vmatmul.mubr.f32.gmra.mrb[0].mxu0 %v3240
        %v3616 = vpop.f32.mrb[0].mxu0
        %v3617 = vadd.f32 0.0, %v3616
        %v3618 = vpop.f32.mrb[0].mxu0
        %v3619 = vadd.f32 0.0, %v3618
        %3620 = vmatprep.mubr.f32.mxu0 %v3243
        %3621 = vmatmul.mubr.f32.gmra.mrb[0].mxu0 %v3242
        %v3622 = vpop.f32.mrb[0].mxu0
        %v3623 = vadd.f32 0.0, %v3622
        %v3624 = vpop.f32.mrb[0].mxu0
        %v3625 = vadd.f32 0.0, %v3624
        %3626 = vmatprep.mubr.f32.mxu0 %v3245
        %3627 = vmatmul.mubr.f32.gmra.mrb[0].mxu0 %v3244
        %v3628 = vpop.f32.mrb[0].mxu0
        %v3629 = vadd.f32 0.0, %v3628
        %v3630 = vpop.f32.mrb[0].mxu0
        %v3631 = vadd.f32 0.0, %v3630
        %3632 = vmatprep.mubr.f32.mxu0 %v3247
        %3633 = vmatmul.mubr.f32.gmra.mrb[0].mxu0 %v3246
        %v3634 = vpop.f32.mrb[0].mxu0
        %v3635 = vadd.f32 0.0, %v3634
        %v3636 = vpop.f32.mrb[0].mxu0
        %v3637 = vadd.f32 0.0, %v3636
        %3638 = vmatprep.mubr.f32.mxu0 %v3249
        %3639 = vmatmul.mubr.f32.gmra.mrb[0].mxu0 %v3248
        %v3640 = vpop.f32.mrb[0].mxu0
        %v3641 = vadd.f32 0.0, %v3640
        %v3642 = vpop.f32.mrb[0].mxu0
        %v3643 = vadd.f32 0.0, %v3642
        %3644 = vmatprep.mubr.f32.mxu0 %v3251
        %3645 = vmatmul.mubr.f32.gmra.mrb[0].mxu0 %v3250
        %v3646 = vpop.f32.mrb[0].mxu0
        %v3647 = vadd.f32 0.0, %v3646
        %v3648 = vpop.f32.mrb[0].mxu0
        %v3649 = vadd.f32 0.0, %v3648
        %3650 = vmatprep.mubr.f32.mxu0 %v3253
        %3651 = vmatmul.mubr.f32.gmra.mrb[0].mxu0 %v3252
        %v3652 = vpop.f32.mrb[0].mxu0
        %v3653 = vadd.f32 0.0, %v3652
        %v3654 = vpop.f32.mrb[0].mxu0
        %v3655 = vadd.f32 0.0, %v3654
        %3656 = vmatprep.mubr.f32.mxu0 %v3255
        %3657 = vmatmul.mubr.f32.gmra.mrb[0].mxu0 %v3254
        %v3658 = vpop.f32.mrb[0].mxu0
        %v3659 = vadd.f32 0.0, %v3658
        %v3660 = vpop.f32.mrb[0].mxu0
        %v3661 = vadd.f32 0.0, %v3660
        %3662 = vmatprep.mubr.f32.mxu0 %v3257
        %3663 = vmatmul.mubr.f32.gmra.mrb[0].mxu0 %v3256
        %v3664 = vpop.f32.mrb[0].mxu0
        %v3665 = vadd.f32 0.0, %v3664
        %v3666 = vpop.f32.mrb[0].mxu0
        %v3667 = vadd.f32 0.0, %v3666
        %3668 = vdwg.mxu0
        %3669 = vmatprep.subr.mxu0 %v2729
        %3670 = vmatpush1.msra.mxu0 %v2728
        %3671 = vmatprep.subr.mxu0 %v2745
        %3672 = vmatpush1.msra.mxu0 %v2744
        %3673 = vmatprep.subr.mxu0 %v2761
        %3674 = vmatpush1.msra.mxu0 %v2760
        %3675 = vmatprep.subr.mxu0 %v2777
        %3676 = vmatpush1.msra.mxu0 %v2776
        %3677 = vmatprep.subr.mxu0 %v2793
        %3678 = vmatpush1.msra.mxu0 %v2792
        %3679 = vmatprep.subr.mxu0 %v2809
        %3680 = vmatpush1.msra.mxu0 %v2808
        %3681 = vmatprep.subr.mxu0 %v2825
        %3682 = vmatpush1.msra.mxu0 %v2824
        %3683 = vmatprep.subr.mxu0 %v2841
        %3684 = vmatpush1.msra.mxu0 %v2840
        %3685 = vmatprep.subr.mxu0 %v2857
        %3686 = vmatpush1.msra.mxu0 %v2856
        %3687 = vmatprep.subr.mxu0 %v2873
        %3688 = vmatpush1.msra.mxu0 %v2872
        %3689 = vmatprep.subr.mxu0 %v2889
        %3690 = vmatpush1.msra.mxu0 %v2888
        %3691 = vmatprep.subr.mxu0 %v2905
        %3692 = vmatpush1.msra.mxu0 %v2904
        %3693 = vmatprep.subr.mxu0 %v2921
        %3694 = vmatpush1.msra.mxu0 %v2920
        %3695 = vmatprep.subr.mxu0 %v2937
        %3696 = vmatpush1.msra.mxu0 %v2936
        %3697 = vmatprep.subr.mxu0 %v2953
        %3698 = vmatpush1.msra.mxu0 %v2952
        %3699 = vmatprep.subr.mxu0 %v2969
        %3700 = vmatpush1.msra.mxu0 %v2968
        %3701 = vmatprep.subr.mxu0 %v2985
        %3702 = vmatpush1.msra.mxu0 %v2984
        %3703 = vmatprep.subr.mxu0 %v3001
        %3704 = vmatpush1.msra.mxu0 %v3000
        %3705 = vmatprep.subr.mxu0 %v3017
        %3706 = vmatpush1.msra.mxu0 %v3016
        %3707 = vmatprep.subr.mxu0 %v3033
        %3708 = vmatpush1.msra.mxu0 %v3032
        %3709 = vmatprep.subr.mxu0 %v3049
        %3710 = vmatpush1.msra.mxu0 %v3048
        %3711 = vmatprep.subr.mxu0 %v3065
        %3712 = vmatpush1.msra.mxu0 %v3064
        %3713 = vmatprep.subr.mxu0 %v3081
        %3714 = vmatpush1.msra.mxu0 %v3080
        %3715 = vmatprep.subr.mxu0 %v3097
        %3716 = vmatpush1.msra.mxu0 %v3096
        %3717 = vmatprep.subr.mxu0 %v3113
        %3718 = vmatpush1.msra.mxu0 %v3112
        %3719 = vmatprep.subr.mxu0 %v3129
        %3720 = vmatpush1.msra.mxu0 %v3128
        %3721 = vmatprep.subr.mxu0 %v3145
        %3722 = vmatpush1.msra.mxu0 %v3144
        %3723 = vmatprep.subr.mxu0 %v3161
        %3724 = vmatpush1.msra.mxu0 %v3160
        %3725 = vmatprep.subr.mxu0 %v3177
        %3726 = vmatpush1.msra.mxu0 %v3176
        %3727 = vmatprep.subr.mxu0 %v3193
        %3728 = vmatpush1.msra.mxu0 %v3192
        %3729 = vmatprep.subr.mxu0 %v3209
        %3730 = vmatpush1.msra.mxu0 %v3208
        %3731 = vmatprep.subr.mxu0 %v3225
        %3732 = vmatpush1.msra.mxu0 %v3224
        %3733 = vmatprep.mubr.f32.mxu0 %v3235
        %3734 = vmatmul.mubr.f32.gmra.mrb[0].mxu0 %v3234
        %v3735 = vpop.f32.mrb[0].mxu0
        %v3736 = vadd.f32 0.0, %v3735
        %v3737 = vpop.f32.mrb[0].mxu0
        %v3738 = vadd.f32 0.0, %v3737
        %3739 = vmatprep.mubr.f32.mxu0 %v3237
        %3740 = vmatmul.mubr.f32.gmra.mrb[0].mxu0 %v3236
        %v3741 = vpop.f32.mrb[0].mxu0
        %v3742 = vadd.f32 0.0, %v3741
        %v3743 = vpop.f32.mrb[0].mxu0
        %v3744 = vadd.f32 0.0, %v3743
        %3745 = vmatprep.mubr.f32.mxu0 %v3239
        %3746 = vmatmul.mubr.f32.gmra.mrb[0].mxu0 %v3238
        %v3747 = vpop.f32.mrb[0].mxu0
        %v3748 = vadd.f32 0.0, %v3747
        %v3749 = vpop.f32.mrb[0].mxu0
        %v3750 = vadd.f32 0.0, %v3749
        %3751 = vmatprep.mubr.f32.mxu0 %v3241
        %3752 = vmatmul.mubr.f32.gmra.mrb[0].mxu0 %v3240
        %v3753 = vpop.f32.mrb[0].mxu0
        %v3754 = vadd.f32 0.0, %v3753
        %v3755 = vpop.f32.mrb[0].mxu0
        %v3756 = vadd.f32 0.0, %v3755
        %3757 = vmatprep.mubr.f32.mxu0 %v3243
        %3758 = vmatmul.mubr.f32.gmra.mrb[0].mxu0 %v3242
        %v3759 = vpop.f32.mrb[0].mxu0
        %v3760 = vadd.f32 0.0, %v3759
        %v3761 = vpop.f32.mrb[0].mxu0
        %v3762 = vadd.f32 0.0, %v3761
        %3763 = vmatprep.mubr.f32.mxu0 %v3245
        %3764 = vmatmul.mubr.f32.gmra.mrb[0].mxu0 %v3244
        %v3765 = vpop.f32.mrb[0].mxu0
        %v3766 = vadd.f32 0.0, %v3765
        %v3767 = vpop.f32.mrb[0].mxu0
        %v3768 = vadd.f32 0.0, %v3767
        %3769 = vmatprep.mubr.f32.mxu0 %v3247
        %3770 = vmatmul.mubr.f32.gmra.mrb[0].mxu0 %v3246
        %v3771 = vpop.f32.mrb[0].mxu0
        %v3772 = vadd.f32 0.0, %v3771
        %v3773 = vpop.f32.mrb[0].mxu0
        %v3774 = vadd.f32 0.0, %v3773
        %3775 = vmatprep.mubr.f32.mxu0 %v3249
        %3776 = vmatmul.mubr.f32.gmra.mrb[0].mxu0 %v3248
        %v3777 = vpop.f32.mrb[0].mxu0
        %v3778 = vadd.f32 0.0, %v3777
        %v3779 = vpop.f32.mrb[0].mxu0
        %v3780 = vadd.f32 0.0, %v3779
        %3781 = vmatprep.mubr.f32.mxu0 %v3251
        %3782 = vmatmul.mubr.f32.gmra.mrb[0].mxu0 %v3250
        %v3783 = vpop.f32.mrb[0].mxu0
        %v3784 = vadd.f32 0.0, %v3783
        %v3785 = vpop.f32.mrb[0].mxu0
        %v3786 = vadd.f32 0.0, %v3785
        %3787 = vmatprep.mubr.f32.mxu0 %v3253
        %3788 = vmatmul.mubr.f32.gmra.mrb[0].mxu0 %v3252
        %v3789 = vpop.f32.mrb[0].mxu0
        %v3790 = vadd.f32 0.0, %v3789
        %v3791 = vpop.f32.mrb[0].mxu0
        %v3792 = vadd.f32 0.0, %v3791
        %3793 = vmatprep.mubr.f32.mxu0 %v3255
        %3794 = vmatmul.mubr.f32.gmra.mrb[0].mxu0 %v3254
        %v3795 = vpop.f32.mrb[0].mxu0
        %v3796 = vadd.f32 0.0, %v3795
        %v3797 = vpop.f32.mrb[0].mxu0
        %v3798 = vadd.f32 0.0, %v3797
        %3799 = vmatprep.mubr.f32.mxu0 %v3257
        %3800 = vmatmul.mubr.f32.gmra.mrb[0].mxu0 %v3256
        %v3801 = vpop.f32.mrb[0].mxu0
        %v3802 = vadd.f32 0.0, %v3801
        %v3803 = vpop.f32.mrb[0].mxu0
        %v3804 = vadd.f32 0.0, %v3803
        %3805 = vdwg.mxu0
        %3806 = vmatprep.subr.mxu0 %v2731
        %3807 = vmatpush1.msra.mxu0 %v2730
        %3808 = vmatprep.subr.mxu0 %v2747
        %3809 = vmatpush1.msra.mxu0 %v2746
        %3810 = vmatprep.subr.mxu0 %v2763
        %3811 = vmatpush1.msra.mxu0 %v2762
        %3812 = vmatprep.subr.mxu0 %v2779
        %3813 = vmatpush1.msra.mxu0 %v2778
        %3814 = vmatprep.subr.mxu0 %v2795
        %3815 = vmatpush1.msra.mxu0 %v2794
        %3816 = vmatprep.subr.mxu0 %v2811
        %3817 = vmatpush1.msra.mxu0 %v2810
        %3818 = vmatprep.subr.mxu0 %v2827
        %3819 = vmatpush1.msra.mxu0 %v2826
        %3820 = vmatprep.subr.mxu0 %v2843
        %3821 = vmatpush1.msra.mxu0 %v2842
        %3822 = vmatprep.subr.mxu0 %v2859
        %3823 = vmatpush1.msra.mxu0 %v2858
        %3824 = vmatprep.subr.mxu0 %v2875
        %3825 = vmatpush1.msra.mxu0 %v2874
        %3826 = vmatprep.subr.mxu0 %v2891
        %3827 = vmatpush1.msra.mxu0 %v2890
        %3828 = vmatprep.subr.mxu0 %v2907
        %3829 = vmatpush1.msra.mxu0 %v2906
        %3830 = vmatprep.subr.mxu0 %v2923
        %3831 = vmatpush1.msra.mxu0 %v2922
        %3832 = vmatprep.subr.mxu0 %v2939
        %3833 = vmatpush1.msra.mxu0 %v2938
        %3834 = vmatprep.subr.mxu0 %v2955
        %3835 = vmatpush1.msra.mxu0 %v2954
        %3836 = vmatprep.subr.mxu0 %v2971
        %3837 = vmatpush1.msra.mxu0 %v2970
        %3838 = vmatprep.subr.mxu0 %v2987
        %3839 = vmatpush1.msra.mxu0 %v2986
        %3840 = vmatprep.subr.mxu0 %v3003
        %3841 = vmatpush1.msra.mxu0 %v3002
        %3842 = vmatprep.subr.mxu0 %v3019
        %3843 = vmatpush1.msra.mxu0 %v3018
        %3844 = vmatprep.subr.mxu0 %v3035
        %3845 = vmatpush1.msra.mxu0 %v3034
        %3846 = vmatprep.subr.mxu0 %v3051
        %3847 = vmatpush1.msra.mxu0 %v3050
        %3848 = vmatprep.subr.mxu0 %v3067
        %3849 = vmatpush1.msra.mxu0 %v3066
        %3850 = vmatprep.subr.mxu0 %v3083
        %3851 = vmatpush1.msra.mxu0 %v3082
        %3852 = vmatprep.subr.mxu0 %v3099
        %3853 = vmatpush1.msra.mxu0 %v3098
        %3854 = vmatprep.subr.mxu0 %v3115
        %3855 = vmatpush1.msra.mxu0 %v3114
        %3856 = vmatprep.subr.mxu0 %v3131
        %3857 = vmatpush1.msra.mxu0 %v3130
        %3858 = vmatprep.subr.mxu0 %v3147
        %3859 = vmatpush1.msra.mxu0 %v3146
        %3860 = vmatprep.subr.mxu0 %v3163
        %3861 = vmatpush1.msra.mxu0 %v3162
        %3862 = vmatprep.subr.mxu0 %v3179
        %3863 = vmatpush1.msra.mxu0 %v3178
        %3864 = vmatprep.subr.mxu0 %v3195
        %3865 = vmatpush1.msra.mxu0 %v3194
        %3866 = vmatprep.subr.mxu0 %v3211
        %3867 = vmatpush1.msra.mxu0 %v3210
        %3868 = vmatprep.subr.mxu0 %v3227
        %3869 = vmatpush1.msra.mxu0 %v3226
        %3870 = vmatprep.mubr.f32.mxu0 %v3235
        %3871 = vmatmul.mubr.f32.gmra.mrb[0].mxu0 %v3234
        %v3872 = vpop.f32.mrb[0].mxu0
        %v3873 = vadd.f32 0.0, %v3872
        %v3874 = vpop.f32.mrb[0].mxu0
        %v3875 = vadd.f32 0.0, %v3874
        %3876 = vmatprep.mubr.f32.mxu0 %v3237
        %3877 = vmatmul.mubr.f32.gmra.mrb[0].mxu0 %v3236
        %v3878 = vpop.f32.mrb[0].mxu0
        %v3879 = vadd.f32 0.0, %v3878
        %v3880 = vpop.f32.mrb[0].mxu0
        %v3881 = vadd.f32 0.0, %v3880
        %3882 = vmatprep.mubr.f32.mxu0 %v3239
        %3883 = vmatmul.mubr.f32.gmra.mrb[0].mxu0 %v3238
        %v3884 = vpop.f32.mrb[0].mxu0
        %v3885 = vadd.f32 0.0, %v3884
        %v3886 = vpop.f32.mrb[0].mxu0
        %v3887 = vadd.f32 0.0, %v3886
        %3888 = vmatprep.mubr.f32.mxu0 %v3241
        %3889 = vmatmul.mubr.f32.gmra.mrb[0].mxu0 %v3240
        %v3890 = vpop.f32.mrb[0].mxu0
        %v3891 = vadd.f32 0.0, %v3890
        %v3892 = vpop.f32.mrb[0].mxu0
        %v3893 = vadd.f32 0.0, %v3892
        %3894 = vmatprep.mubr.f32.mxu0 %v3243
        %3895 = vmatmul.mubr.f32.gmra.mrb[0].mxu0 %v3242
        %v3896 = vpop.f32.mrb[0].mxu0
        %v3897 = vadd.f32 0.0, %v3896
        %v3898 = vpop.f32.mrb[0].mxu0
        %v3899 = vadd.f32 0.0, %v3898
        %3900 = vmatprep.mubr.f32.mxu0 %v3245
        %3901 = vmatmul.mubr.f32.gmra.mrb[0].mxu0 %v3244
        %v3902 = vpop.f32.mrb[0].mxu0
        %v3903 = vadd.f32 0.0, %v3902
        %v3904 = vpop.f32.mrb[0].mxu0
        %v3905 = vadd.f32 0.0, %v3904
        %3906 = vmatprep.mubr.f32.mxu0 %v3247
        %3907 = vmatmul.mubr.f32.gmra.mrb[0].mxu0 %v3246
        %v3908 = vpop.f32.mrb[0].mxu0
        %v3909 = vadd.f32 0.0, %v3908
        %v3910 = vpop.f32.mrb[0].mxu0
        %v3911 = vadd.f32 0.0, %v3910
        %3912 = vmatprep.mubr.f32.mxu0 %v3249
        %3913 = vmatmul.mubr.f32.gmra.mrb[0].mxu0 %v3248
        %v3914 = vpop.f32.mrb[0].mxu0
        %v3915 = vadd.f32 0.0, %v3914
        %v3916 = vpop.f32.mrb[0].mxu0
        %v3917 = vadd.f32 0.0, %v3916
        %3918 = vmatprep.mubr.f32.mxu0 %v3251
        %3919 = vmatmul.mubr.f32.gmra.mrb[0].mxu0 %v3250
        %v3920 = vpop.f32.mrb[0].mxu0
        %v3921 = vadd.f32 0.0, %v3920
        %v3922 = vpop.f32.mrb[0].mxu0
        %v3923 = vadd.f32 0.0, %v3922
        %3924 = vmatprep.mubr.f32.mxu0 %v3253
        %3925 = vmatmul.mubr.f32.gmra.mrb[0].mxu0 %v3252
        %v3926 = vpop.f32.mrb[0].mxu0
        %v3927 = vadd.f32 0.0, %v3926
        %v3928 = vpop.f32.mrb[0].mxu0
        %v3929 = vadd.f32 0.0, %v3928
        %3930 = vmatprep.mubr.f32.mxu0 %v3255
        %3931 = vmatmul.mubr.f32.gmra.mrb[0].mxu0 %v3254
        %v3932 = vpop.f32.mrb[0].mxu0
        %v3933 = vadd.f32 0.0, %v3932
        %v3934 = vpop.f32.mrb[0].mxu0
        %v3935 = vadd.f32 0.0, %v3934
        %3936 = vmatprep.mubr.f32.mxu0 %v3257
        %3937 = vmatmul.mubr.f32.gmra.mrb[0].mxu0 %v3256
        %v3938 = vpop.f32.mrb[0].mxu0
        %v3939 = vadd.f32 0.0, %v3938
        %v3940 = vpop.f32.mrb[0].mxu0
        %v3941 = vadd.f32 0.0, %v3940
        %3942 = vdwg.mxu0
        %3943 = vmatprep.subr.mxu0 %v2733
        %3944 = vmatpush1.msra.mxu0 %v2732
        %3945 = vmatprep.subr.mxu0 %v2749
        %3946 = vmatpush1.msra.mxu0 %v2748
        %3947 = vmatprep.subr.mxu0 %v2765
        %3948 = vmatpush1.msra.mxu0 %v2764
        %3949 = vmatprep.subr.mxu0 %v2781
        %3950 = vmatpush1.msra.mxu0 %v2780
        %3951 = vmatprep.subr.mxu0 %v2797
        %3952 = vmatpush1.msra.mxu0 %v2796
        %3953 = vmatprep.subr.mxu0 %v2813
        %3954 = vmatpush1.msra.mxu0 %v2812
        %3955 = vmatprep.subr.mxu0 %v2829
        %3956 = vmatpush1.msra.mxu0 %v2828
        %3957 = vmatprep.subr.mxu0 %v2845
        %3958 = vmatpush1.msra.mxu0 %v2844
        %3959 = vmatprep.subr.mxu0 %v2861
        %3960 = vmatpush1.msra.mxu0 %v2860
        %3961 = vmatprep.subr.mxu0 %v2877
        %3962 = vmatpush1.msra.mxu0 %v2876
        %3963 = vmatprep.subr.mxu0 %v2893
        %3964 = vmatpush1.msra.mxu0 %v2892
        %3965 = vmatprep.subr.mxu0 %v2909
        %3966 = vmatpush1.msra.mxu0 %v2908
        %3967 = vmatprep.subr.mxu0 %v2925
        %3968 = vmatpush1.msra.mxu0 %v2924
        %3969 = vmatprep.subr.mxu0 %v2941
        %3970 = vmatpush1.msra.mxu0 %v2940
        %3971 = vmatprep.subr.mxu0 %v2957
        %3972 = vmatpush1.msra.mxu0 %v2956
        %3973 = vmatprep.subr.mxu0 %v2973
        %3974 = vmatpush1.msra.mxu0 %v2972
        %3975 = vmatprep.subr.mxu0 %v2989
        %3976 = vmatpush1.msra.mxu0 %v2988
        %3977 = vmatprep.subr.mxu0 %v3005
        %3978 = vmatpush1.msra.mxu0 %v3004
        %3979 = vmatprep.subr.mxu0 %v3021
        %3980 = vmatpush1.msra.mxu0 %v3020
        %3981 = vmatprep.subr.mxu0 %v3037
        %3982 = vmatpush1.msra.mxu0 %v3036
        %3983 = vmatprep.subr.mxu0 %v3053
        %3984 = vmatpush1.msra.mxu0 %v3052
        %3985 = vmatprep.subr.mxu0 %v3069
        %3986 = vmatpush1.msra.mxu0 %v3068
        %3987 = vmatprep.subr.mxu0 %v3085
        %3988 = vmatpush1.msra.mxu0 %v3084
        %3989 = vmatprep.subr.mxu0 %v3101
        %3990 = vmatpush1.msra.mxu0 %v3100
        %3991 = vmatprep.subr.mxu0 %v3117
        %3992 = vmatpush1.msra.mxu0 %v3116
        %3993 = vmatprep.subr.mxu0 %v3133
        %3994 = vmatpush1.msra.mxu0 %v3132
        %3995 = vmatprep.subr.mxu0 %v3149
        %3996 = vmatpush1.msra.mxu0 %v3148
        %3997 = vmatprep.subr.mxu0 %v3165
        %3998 = vmatpush1.msra.mxu0 %v3164
        %3999 = vmatprep.subr.mxu0 %v3181
        %4000 = vmatpush1.msra.mxu0 %v3180
        %4001 = vmatprep.subr.mxu0 %v3197
        %4002 = vmatpush1.msra.mxu0 %v3196
        %4003 = vmatprep.subr.mxu0 %v3213
        %4004 = vmatpush1.msra.mxu0 %v3212
        %4005 = vmatprep.subr.mxu0 %v3229
        %4006 = vmatpush1.msra.mxu0 %v3228
        %4007 = vmatprep.mubr.f32.mxu0 %v3235
        %4008 = vmatmul.mubr.f32.gmra.mrb[0].mxu0 %v3234
        %v4009 = vpop.f32.mrb[0].mxu0
        %v4010 = vadd.f32 0.0, %v4009
        %v4011 = vpop.f32.mrb[0].mxu0
        %v4012 = vadd.f32 0.0, %v4011
        %4013 = vmatprep.mubr.f32.mxu0 %v3237
        %4014 = vmatmul.mubr.f32.gmra.mrb[0].mxu0 %v3236
        %v4015 = vpop.f32.mrb[0].mxu0
        %v4016 = vadd.f32 0.0, %v4015
        %v4017 = vpop.f32.mrb[0].mxu0
        %v4018 = vadd.f32 0.0, %v4017
        %4019 = vmatprep.mubr.f32.mxu0 %v3239
        %4020 = vmatmul.mubr.f32.gmra.mrb[0].mxu0 %v3238
        %v4021 = vpop.f32.mrb[0].mxu0
        %v4022 = vadd.f32 0.0, %v4021
        %v4023 = vpop.f32.mrb[0].mxu0
        %v4024 = vadd.f32 0.0, %v4023
        %4025 = vmatprep.mubr.f32.mxu0 %v3241
        %4026 = vmatmul.mubr.f32.gmra.mrb[0].mxu0 %v3240
        %v4027 = vpop.f32.mrb[0].mxu0
        %v4028 = vadd.f32 0.0, %v4027
        %v4029 = vpop.f32.mrb[0].mxu0
        %v4030 = vadd.f32 0.0, %v4029
        %4031 = vmatprep.mubr.f32.mxu0 %v3243
        %4032 = vmatmul.mubr.f32.gmra.mrb[0].mxu0 %v3242
        %v4033 = vpop.f32.mrb[0].mxu0
        %v4034 = vadd.f32 0.0, %v4033
        %v4035 = vpop.f32.mrb[0].mxu0
        %v4036 = vadd.f32 0.0, %v4035
        %4037 = vmatprep.mubr.f32.mxu0 %v3245
        %4038 = vmatmul.mubr.f32.gmra.mrb[0].mxu0 %v3244
        %v4039 = vpop.f32.mrb[0].mxu0
        %v4040 = vadd.f32 0.0, %v4039
        %v4041 = vpop.f32.mrb[0].mxu0
        %v4042 = vadd.f32 0.0, %v4041
        %4043 = vmatprep.mubr.f32.mxu0 %v3247
        %4044 = vmatmul.mubr.f32.gmra.mrb[0].mxu0 %v3246
        %v4045 = vpop.f32.mrb[0].mxu0
        %v4046 = vadd.f32 0.0, %v4045
        %v4047 = vpop.f32.mrb[0].mxu0
        %v4048 = vadd.f32 0.0, %v4047
        %4049 = vmatprep.mubr.f32.mxu0 %v3249
        %4050 = vmatmul.mubr.f32.gmra.mrb[0].mxu0 %v3248
        %v4051 = vpop.f32.mrb[0].mxu0
        %v4052 = vadd.f32 0.0, %v4051
        %v4053 = vpop.f32.mrb[0].mxu0
        %v4054 = vadd.f32 0.0, %v4053
        %4055 = vmatprep.mubr.f32.mxu0 %v3251
        %4056 = vmatmul.mubr.f32.gmra.mrb[0].mxu0 %v3250
        %v4057 = vpop.f32.mrb[0].mxu0
        %v4058 = vadd.f32 0.0, %v4057
        %v4059 = vpop.f32.mrb[0].mxu0
        %v4060 = vadd.f32 0.0, %v4059
        %4061 = vmatprep.mubr.f32.mxu0 %v3253
        %4062 = vmatmul.mubr.f32.gmra.mrb[0].mxu0 %v3252
        %v4063 = vpop.f32.mrb[0].mxu0
        %v4064 = vadd.f32 0.0, %v4063
        %v4065 = vpop.f32.mrb[0].mxu0
        %v4066 = vadd.f32 0.0, %v4065
        %4067 = vmatprep.mubr.f32.mxu0 %v3255
        %4068 = vmatmul.mubr.f32.gmra.mrb[0].mxu0 %v3254
        %v4069 = vpop.f32.mrb[0].mxu0
        %v4070 = vadd.f32 0.0, %v4069
        %v4071 = vpop.f32.mrb[0].mxu0
        %v4072 = vadd.f32 0.0, %v4071
        %4073 = vmatprep.mubr.f32.mxu0 %v3257
        %4074 = vmatmul.mubr.f32.gmra.mrb[0].mxu0 %v3256
        %v4075 = vpop.f32.mrb[0].mxu0
        %v4076 = vadd.f32 0.0, %v4075
        %v4077 = vpop.f32.mrb[0].mxu0
        %v4078 = vadd.f32 0.0, %v4077
        %4079 = vdwg.mxu0
        %4080 = vmatprep.subr.mxu0 %v2735
        %4081 = vmatpush1.msra.mxu0 %v2734
        %4082 = vmatprep.subr.mxu0 %v2751
        %4083 = vmatpush1.msra.mxu0 %v2750
        %4084 = vmatprep.subr.mxu0 %v2767
        %4085 = vmatpush1.msra.mxu0 %v2766
        %4086 = vmatprep.subr.mxu0 %v2783
        %4087 = vmatpush1.msra.mxu0 %v2782
        %4088 = vmatprep.subr.mxu0 %v2799
        %4089 = vmatpush1.msra.mxu0 %v2798
        %4090 = vmatprep.subr.mxu0 %v2815
        %4091 = vmatpush1.msra.mxu0 %v2814
        %4092 = vmatprep.subr.mxu0 %v2831
        %4093 = vmatpush1.msra.mxu0 %v2830
        %4094 = vmatprep.subr.mxu0 %v2847
        %4095 = vmatpush1.msra.mxu0 %v2846
        %4096 = vmatprep.subr.mxu0 %v2863
        %4097 = vmatpush1.msra.mxu0 %v2862
        %4098 = vmatprep.subr.mxu0 %v2879
        %4099 = vmatpush1.msra.mxu0 %v2878
        %4100 = vmatprep.subr.mxu0 %v2895
        %4101 = vmatpush1.msra.mxu0 %v2894
        %4102 = vmatprep.subr.mxu0 %v2911
        %4103 = vmatpush1.msra.mxu0 %v2910
        %4104 = vmatprep.subr.mxu0 %v2927
        %4105 = vmatpush1.msra.mxu0 %v2926
        %4106 = vmatprep.subr.mxu0 %v2943
        %4107 = vmatpush1.msra.mxu0 %v2942
        %4108 = vmatprep.subr.mxu0 %v2959
        %4109 = vmatpush1.msra.mxu0 %v2958
        %4110 = vmatprep.subr.mxu0 %v2975
        %4111 = vmatpush1.msra.mxu0 %v2974
        %4112 = vmatprep.subr.mxu0 %v2991
        %4113 = vmatpush1.msra.mxu0 %v2990
        %4114 = vmatprep.subr.mxu0 %v3007
        %4115 = vmatpush1.msra.mxu0 %v3006
        %4116 = vmatprep.subr.mxu0 %v3023
        %4117 = vmatpush1.msra.mxu0 %v3022
        %4118 = vmatprep.subr.mxu0 %v3039
        %4119 = vmatpush1.msra.mxu0 %v3038
        %4120 = vmatprep.subr.mxu0 %v3055
        %4121 = vmatpush1.msra.mxu0 %v3054
        %4122 = vmatprep.subr.mxu0 %v3071
        %4123 = vmatpush1.msra.mxu0 %v3070
        %4124 = vmatprep.subr.mxu0 %v3087
        %4125 = vmatpush1.msra.mxu0 %v3086
        %4126 = vmatprep.subr.mxu0 %v3103
        %4127 = vmatpush1.msra.mxu0 %v3102
        %4128 = vmatprep.subr.mxu0 %v3119
        %4129 = vmatpush1.msra.mxu0 %v3118
        %4130 = vmatprep.subr.mxu0 %v3135
        %4131 = vmatpush1.msra.mxu0 %v3134
        %4132 = vmatprep.subr.mxu0 %v3151
        %4133 = vmatpush1.msra.mxu0 %v3150
        %4134 = vmatprep.subr.mxu0 %v3167
        %4135 = vmatpush1.msra.mxu0 %v3166
        %4136 = vmatprep.subr.mxu0 %v3183
        %4137 = vmatpush1.msra.mxu0 %v3182
        %4138 = vmatprep.subr.mxu0 %v3199
        %4139 = vmatpush1.msra.mxu0 %v3198
        %4140 = vmatprep.subr.mxu0 %v3215
        %4141 = vmatpush1.msra.mxu0 %v3214
        %4142 = vmatprep.subr.mxu0 %v3231
        %4143 = vmatpush1.msra.mxu0 %v3230
        %4144 = vmatprep.mubr.f32.mxu0 %v3235
        %4145 = vmatmul.mubr.f32.gmra.mrb[0].mxu0 %v3234
        %v4146 = vpop.f32.mrb[0].mxu0
        %v4147 = vadd.f32 0.0, %v4146
        %v4148 = vpop.f32.mrb[0].mxu0
        %v4149 = vadd.f32 0.0, %v4148
        %4150 = vmatprep.mubr.f32.mxu0 %v3237
        %4151 = vmatmul.mubr.f32.gmra.mrb[0].mxu0 %v3236
        %v4152 = vpop.f32.mrb[0].mxu0
        %v4153 = vadd.f32 0.0, %v4152
        %v4154 = vpop.f32.mrb[0].mxu0
        %v4155 = vadd.f32 0.0, %v4154
        %4156 = vmatprep.mubr.f32.mxu0 %v3239
        %4157 = vmatmul.mubr.f32.gmra.mrb[0].mxu0 %v3238
        %v4158 = vpop.f32.mrb[0].mxu0
        %v4159 = vadd.f32 0.0, %v4158
        %v4160 = vpop.f32.mrb[0].mxu0
        %v4161 = vadd.f32 0.0, %v4160
        %4162 = vmatprep.mubr.f32.mxu0 %v3241
        %4163 = vmatmul.mubr.f32.gmra.mrb[0].mxu0 %v3240
        %v4164 = vpop.f32.mrb[0].mxu0
        %v4165 = vadd.f32 0.0, %v4164
        %v4166 = vpop.f32.mrb[0].mxu0
        %v4167 = vadd.f32 0.0, %v4166
        %4168 = vmatprep.mubr.f32.mxu0 %v3243
        %4169 = vmatmul.mubr.f32.gmra.mrb[0].mxu0 %v3242
        %v4170 = vpop.f32.mrb[0].mxu0
        %v4171 = vadd.f32 0.0, %v4170
        %v4172 = vpop.f32.mrb[0].mxu0
        %v4173 = vadd.f32 0.0, %v4172
        %4174 = vmatprep.mubr.f32.mxu0 %v3245
        %4175 = vmatmul.mubr.f32.gmra.mrb[0].mxu0 %v3244
        %v4176 = vpop.f32.mrb[0].mxu0
        %v4177 = vadd.f32 0.0, %v4176
        %v4178 = vpop.f32.mrb[0].mxu0
        %v4179 = vadd.f32 0.0, %v4178
        %4180 = vmatprep.mubr.f32.mxu0 %v3247
        %4181 = vmatmul.mubr.f32.gmra.mrb[0].mxu0 %v3246
        %v4182 = vpop.f32.mrb[0].mxu0
        %v4183 = vadd.f32 0.0, %v4182
        %v4184 = vpop.f32.mrb[0].mxu0
        %v4185 = vadd.f32 0.0, %v4184
        %4186 = vmatprep.mubr.f32.mxu0 %v3249
        %4187 = vmatmul.mubr.f32.gmra.mrb[0].mxu0 %v3248
        %v4188 = vpop.f32.mrb[0].mxu0
        %v4189 = vadd.f32 0.0, %v4188
        %v4190 = vpop.f32.mrb[0].mxu0
        %v4191 = vadd.f32 0.0, %v4190
        %4192 = vmatprep.mubr.f32.mxu0 %v3251
        %4193 = vmatmul.mubr.f32.gmra.mrb[0].mxu0 %v3250
        %v4194 = vpop.f32.mrb[0].mxu0
        %v4195 = vadd.f32 0.0, %v4194
        %v4196 = vpop.f32.mrb[0].mxu0
        %v4197 = vadd.f32 0.0, %v4196
        %4198 = vmatprep.mubr.f32.mxu0 %v3253
        %4199 = vmatmul.mubr.f32.gmra.mrb[0].mxu0 %v3252
        %v4200 = vpop.f32.mrb[0].mxu0
        %v4201 = vadd.f32 0.0, %v4200
        %v4202 = vpop.f32.mrb[0].mxu0
        %v4203 = vadd.f32 0.0, %v4202
        %4204 = vmatprep.mubr.f32.mxu0 %v3255
        %4205 = vmatmul.mubr.f32.gmra.mrb[0].mxu0 %v3254
        %v4206 = vpop.f32.mrb[0].mxu0
        %v4207 = vadd.f32 0.0, %v4206
        %v4208 = vpop.f32.mrb[0].mxu0
        %v4209 = vadd.f32 0.0, %v4208
        %4210 = vmatprep.mubr.f32.mxu0 %v3257
        %4211 = vmatmul.mubr.f32.gmra.mrb[0].mxu0 %v3256
        %v4212 = vpop.f32.mrb[0].mxu0
        %v4213 = vadd.f32 0.0, %v4212
        %v4214 = vpop.f32.mrb[0].mxu0
        %v4215 = vadd.f32 0.0, %v4214
        %4216 = vdwg.mxu0
        %4217 = vmatprep.subr.mxu0 %v2737
        %4218 = vmatpush1.msra.mxu0 %v2736
        %4219 = vmatprep.subr.mxu0 %v2753
        %4220 = vmatpush1.msra.mxu0 %v2752
        %4221 = vmatprep.subr.mxu0 %v2769
        %4222 = vmatpush1.msra.mxu0 %v2768
        %4223 = vmatprep.subr.mxu0 %v2785
        %4224 = vmatpush1.msra.mxu0 %v2784
        %4225 = vmatprep.subr.mxu0 %v2801
        %4226 = vmatpush1.msra.mxu0 %v2800
        %4227 = vmatprep.subr.mxu0 %v2817
        %4228 = vmatpush1.msra.mxu0 %v2816
        %4229 = vmatprep.subr.mxu0 %v2833
        %4230 = vmatpush1.msra.mxu0 %v2832
        %4231 = vmatprep.subr.mxu0 %v2849
        %4232 = vmatpush1.msra.mxu0 %v2848
        %4233 = vmatprep.subr.mxu0 %v2865
        %4234 = vmatpush1.msra.mxu0 %v2864
        %4235 = vmatprep.subr.mxu0 %v2881
        %4236 = vmatpush1.msra.mxu0 %v2880
        %4237 = vmatprep.subr.mxu0 %v2897
        %4238 = vmatpush1.msra.mxu0 %v2896
        %4239 = vmatprep.subr.mxu0 %v2913
        %4240 = vmatpush1.msra.mxu0 %v2912
        %4241 = vmatprep.subr.mxu0 %v2929
        %4242 = vmatpush1.msra.mxu0 %v2928
        %4243 = vmatprep.subr.mxu0 %v2945
        %4244 = vmatpush1.msra.mxu0 %v2944
        %4245 = vmatprep.subr.mxu0 %v2961
        %4246 = vmatpush1.msra.mxu0 %v2960
        %4247 = vmatprep.subr.mxu0 %v2977
        %4248 = vmatpush1.msra.mxu0 %v2976
        %4249 = vmatprep.subr.mxu0 %v2993
        %4250 = vmatpush1.msra.mxu0 %v2992
        %4251 = vmatprep.subr.mxu0 %v3009
        %4252 = vmatpush1.msra.mxu0 %v3008
        %4253 = vmatprep.subr.mxu0 %v3025
        %4254 = vmatpush1.msra.mxu0 %v3024
        %4255 = vmatprep.subr.mxu0 %v3041
        %4256 = vmatpush1.msra.mxu0 %v3040
        %4257 = vmatprep.subr.mxu0 %v3057
        %4258 = vmatpush1.msra.mxu0 %v3056
        %4259 = vmatprep.subr.mxu0 %v3073
        %4260 = vmatpush1.msra.mxu0 %v3072
        %4261 = vmatprep.subr.mxu0 %v3089
        %4262 = vmatpush1.msra.mxu0 %v3088
        %4263 = vmatprep.subr.mxu0 %v3105
        %4264 = vmatpush1.msra.mxu0 %v3104
        %4265 = vmatprep.subr.mxu0 %v3121
        %4266 = vmatpush1.msra.mxu0 %v3120
        %4267 = vmatprep.subr.mxu0 %v3137
        %4268 = vmatpush1.msra.mxu0 %v3136
        %4269 = vmatprep.subr.mxu0 %v3153
        %4270 = vmatpush1.msra.mxu0 %v3152
        %4271 = vmatprep.subr.mxu0 %v3169
        %4272 = vmatpush1.msra.mxu0 %v3168
        %4273 = vmatprep.subr.mxu0 %v3185
        %4274 = vmatpush1.msra.mxu0 %v3184
        %4275 = vmatprep.subr.mxu0 %v3201
        %4276 = vmatpush1.msra.mxu0 %v3200
        %4277 = vmatprep.subr.mxu0 %v3217
        %4278 = vmatpush1.msra.mxu0 %v3216
        %4279 = vmatprep.subr.mxu0 %v3233
        %4280 = vmatpush1.msra.mxu0 %v3232
        %4281 = vmatprep.mubr.f32.mxu0 %v3235
        %4282 = vmatmul.mubr.f32.gmra.mrb[0].mxu0 %v3234
        %v4283 = vpop.f32.mrb[0].mxu0
        %v4284 = vadd.f32 0.0, %v4283
        %v4285 = vpop.f32.mrb[0].mxu0
        %v4286 = vadd.f32 0.0, %v4285
        %4287 = vmatprep.mubr.f32.mxu0 %v3237
        %4288 = vmatmul.mubr.f32.gmra.mrb[0].mxu0 %v3236
        %v4289 = vpop.f32.mrb[0].mxu0
        %v4290 = vadd.f32 0.0, %v4289
        %v4291 = vpop.f32.mrb[0].mxu0
        %v4292 = vadd.f32 0.0, %v4291
        %4293 = vmatprep.mubr.f32.mxu0 %v3239
        %4294 = vmatmul.mubr.f32.gmra.mrb[0].mxu0 %v3238
        %v4295 = vpop.f32.mrb[0].mxu0
        %v4296 = vadd.f32 0.0, %v4295
        %v4297 = vpop.f32.mrb[0].mxu0
        %v4298 = vadd.f32 0.0, %v4297
        %4299 = vmatprep.mubr.f32.mxu0 %v3241
        %4300 = vmatmul.mubr.f32.gmra.mrb[0].mxu0 %v3240
        %v4301 = vpop.f32.mrb[0].mxu0
        %v4302 = vadd.f32 0.0, %v4301
        %v4303 = vpop.f32.mrb[0].mxu0
        %v4304 = vadd.f32 0.0, %v4303
        %4305 = vmatprep.mubr.f32.mxu0 %v3243
        %4306 = vmatmul.mubr.f32.gmra.mrb[0].mxu0 %v3242
        %v4307 = vpop.f32.mrb[0].mxu0
        %v4308 = vadd.f32 0.0, %v4307
        %v4309 = vpop.f32.mrb[0].mxu0
        %v4310 = vadd.f32 0.0, %v4309
        %4311 = vmatprep.mubr.f32.mxu0 %v3245
        %4312 = vmatmul.mubr.f32.gmra.mrb[0].mxu0 %v3244
        %v4313 = vpop.f32.mrb[0].mxu0
        %v4314 = vadd.f32 0.0, %v4313
        %v4315 = vpop.f32.mrb[0].mxu0
        %v4316 = vadd.f32 0.0, %v4315
        %4317 = vmatprep.mubr.f32.mxu0 %v3247
        %4318 = vmatmul.mubr.f32.gmra.mrb[0].mxu0 %v3246
        %v4319 = vpop.f32.mrb[0].mxu0
        %v4320 = vadd.f32 0.0, %v4319
        %v4321 = vpop.f32.mrb[0].mxu0
        %v4322 = vadd.f32 0.0, %v4321
        %4323 = vmatprep.mubr.f32.mxu0 %v3249
        %4324 = vmatmul.mubr.f32.gmra.mrb[0].mxu0 %v3248
        %v4325 = vpop.f32.mrb[0].mxu0
        %v4326 = vadd.f32 0.0, %v4325
        %v4327 = vpop.f32.mrb[0].mxu0
        %v4328 = vadd.f32 0.0, %v4327
        %4329 = vmatprep.mubr.f32.mxu0 %v3251
        %4330 = vmatmul.mubr.f32.gmra.mrb[0].mxu0 %v3250
        %v4331 = vpop.f32.mrb[0].mxu0
        %v4332 = vadd.f32 0.0, %v4331
        %v4333 = vpop.f32.mrb[0].mxu0
        %v4334 = vadd.f32 0.0, %v4333
        %4335 = vmatprep.mubr.f32.mxu0 %v3253
        %4336 = vmatmul.mubr.f32.gmra.mrb[0].mxu0 %v3252
        %v4337 = vpop.f32.mrb[0].mxu0
        %v4338 = vadd.f32 0.0, %v4337
        %v4339 = vpop.f32.mrb[0].mxu0
        %v4340 = vadd.f32 0.0, %v4339
        %4341 = vmatprep.mubr.f32.mxu0 %v3255
        %4342 = vmatmul.mubr.f32.gmra.mrb[0].mxu0 %v3254
        %v4343 = vpop.f32.mrb[0].mxu0
        %v4344 = vadd.f32 0.0, %v4343
        %v4345 = vpop.f32.mrb[0].mxu0
        %v4346 = vadd.f32 0.0, %v4345
        %4347 = vmatprep.mubr.f32.mxu0 %v3257
        %4348 = vmatmul.mubr.f32.gmra.mrb[0].mxu0 %v3256
        %v4349 = vpop.f32.mrb[0].mxu0
        %v4350 = vadd.f32 0.0, %v4349
        %v4351 = vpop.f32.mrb[0].mxu0
        %v4352 = vadd.f32 0.0, %v4351
        %4353 = vdwg.mxu0
        %v4362 = vlaneseq
        %v4363 = vshrl.u32 %v4362, 7
        %v4364 = vsub.s32 0, %v4363
        %v4365 = vrot.slane %v597, %v4364
        %v4366 = vlaneseq
        %v4367 = vshrl.u32 %v4366, 7
        %v4368 = vsub.s32 4, %v4367
        %v4369 = vrot.slane %v597, %v4368
        %v4370 = vlaneseq
        %v4371 = vshrl.u32 %v4370, 7
        %v4372 = vsub.s32 0, %v4371
        %v4373 = vrot.slane %v598, %v4372
        %v4374 = vlaneseq
        %v4375 = vshrl.u32 %v4374, 7
        %v4376 = vsub.s32 4, %v4375
        %v4377 = vrot.slane %v598, %v4376
        %v4378 = vlaneseq
        %v4379 = vshrl.u32 %v4378, 7
        %v4380 = vsub.s32 0, %v4379
        %v4381 = vrot.slane %v599, %v4380
        %v4382 = vlaneseq
        %v4383 = vshrl.u32 %v4382, 7
        %v4384 = vsub.s32 4, %v4383
        %v4385 = vrot.slane %v599, %v4384
        %v4386 = vlaneseq
        %v4387 = vshrl.u32 %v4386, 7
        %v4388 = vsub.s32 0, %v4387
        %v4389 = vrot.slane %v600, %v4388
        %v4390 = vlaneseq
        %v4391 = vshrl.u32 %v4390, 7
        %v4392 = vsub.s32 4, %v4391
        %v4393 = vrot.slane %v600, %v4392
        %v4394 = vlaneseq
        %v4395 = vshrl.u32 %v4394, 7
        %v4396 = vsub.s32 0, %v4395
        %v4397 = vrot.slane %v601, %v4396
        %v4398 = vlaneseq
        %v4399 = vshrl.u32 %v4398, 7
        %v4400 = vsub.s32 4, %v4399
        %v4401 = vrot.slane %v601, %v4400
        %v4402 = vlaneseq
        %v4403 = vshrl.u32 %v4402, 7
        %v4404 = vsub.s32 0, %v4403
        %v4405 = vrot.slane %v602, %v4404
        %v4406 = vlaneseq
        %v4407 = vshrl.u32 %v4406, 7
        %v4408 = vsub.s32 4, %v4407
        %v4409 = vrot.slane %v602, %v4408
        %v4410 = vlaneseq
        %v4411 = vshrl.u32 %v4410, 7
        %v4412 = vsub.s32 0, %v4411
        %v4413 = vrot.slane %v603, %v4412
        %v4414 = vlaneseq
        %v4415 = vshrl.u32 %v4414, 7
        %v4416 = vsub.s32 4, %v4415
        %v4417 = vrot.slane %v603, %v4416
        %v4418 = vlaneseq
        %v4419 = vshrl.u32 %v4418, 7
        %v4420 = vsub.s32 0, %v4419
        %v4421 = vrot.slane %v604, %v4420
        %v4422 = vlaneseq
        %v4423 = vshrl.u32 %v4422, 7
        %v4424 = vsub.s32 4, %v4423
        %v4425 = vrot.slane %v604, %v4424
        %v4442 = vlaneseq
        %v4443 = vshrl.u32 %v4442, 7
        %v4444 = vsub.s32 0, %v4443
        %v4445 = vrot.slane %v4365, %v4444
        %v4446 = vlaneseq
        %v4447 = vshrl.u32 %v4446, 7
        %v4448 = vsub.s32 0, %v4447
        %v4449 = vrot.slane %v4369, %v4448
        %v4450 = vlaneseq
        %v4451 = vshrl.u32 %v4450, 7
        %v4452 = vsub.s32 0, %v4451
        %v4453 = vrot.slane %v4373, %v4452
        %v4454 = vlaneseq
        %v4455 = vshrl.u32 %v4454, 7
        %v4456 = vsub.s32 0, %v4455
        %v4457 = vrot.slane %v4377, %v4456
        %v4458 = vlaneseq
        %v4459 = vshrl.u32 %v4458, 7
        %v4460 = vsub.s32 0, %v4459
        %v4461 = vrot.slane %v4381, %v4460
        %v4462 = vlaneseq
        %v4463 = vshrl.u32 %v4462, 7
        %v4464 = vsub.s32 0, %v4463
        %v4465 = vrot.slane %v4385, %v4464
        %v4466 = vlaneseq
        %v4467 = vshrl.u32 %v4466, 7
        %v4468 = vsub.s32 0, %v4467
        %v4469 = vrot.slane %v4389, %v4468
        %v4470 = vlaneseq
        %v4471 = vshrl.u32 %v4470, 7
        %v4472 = vsub.s32 0, %v4471
        %v4473 = vrot.slane %v4393, %v4472
        %v4474 = vlaneseq
        %v4475 = vshrl.u32 %v4474, 7
        %v4476 = vsub.s32 0, %v4475
        %v4477 = vrot.slane %v4397, %v4476
        %v4478 = vlaneseq
        %v4479 = vshrl.u32 %v4478, 7
        %v4480 = vsub.s32 0, %v4479
        %v4481 = vrot.slane %v4401, %v4480
        %v4482 = vlaneseq
        %v4483 = vshrl.u32 %v4482, 7
        %v4484 = vsub.s32 0, %v4483
        %v4485 = vrot.slane %v4405, %v4484
        %v4486 = vlaneseq
        %v4487 = vshrl.u32 %v4486, 7
        %v4488 = vsub.s32 0, %v4487
        %v4489 = vrot.slane %v4409, %v4488
        %v4490 = vlaneseq
        %v4491 = vshrl.u32 %v4490, 7
        %v4492 = vsub.s32 0, %v4491
        %v4493 = vrot.slane %v4413, %v4492
        %v4494 = vlaneseq
        %v4495 = vshrl.u32 %v4494, 7
        %v4496 = vsub.s32 0, %v4495
        %v4497 = vrot.slane %v4417, %v4496
        %v4498 = vlaneseq
        %v4499 = vshrl.u32 %v4498, 7
        %v4500 = vsub.s32 0, %v4499
        %v4501 = vrot.slane %v4421, %v4500
        %v4502 = vlaneseq
        %v4503 = vshrl.u32 %v4502, 7
        %v4504 = vsub.s32 0, %v4503
        %v4505 = vrot.slane %v4425, %v4504
        %v4506 = vsub.f32 %v608, %v4445
        %v4507 = vsub.f32 %v608, %v4449
        %v4508 = vsub.f32 %v608, %v4453
        %v4509 = vsub.f32 %v608, %v4457
        %v4510 = vsub.f32 %v608, %v4461
        %v4511 = vsub.f32 %v608, %v4465
        %v4512 = vsub.f32 %v608, %v4469
        %v4513 = vsub.f32 %v608, %v4473
        %v4514 = vsub.f32 %v608, %v4477
        %v4515 = vsub.f32 %v608, %v4481
        %v4516 = vsub.f32 %v608, %v4485
        %v4517 = vsub.f32 %v608, %v4489
        %v4518 = vsub.f32 %v608, %v4493
        %v4519 = vsub.f32 %v608, %v4497
        %v4520 = vsub.f32 %v608, %v4501
        %v4521 = vsub.f32 %v608, %v4505
        %v4522 = vand.u32 2147483647, %v4506
        %v4523 = vand.u32 2147483647, %v4507
        %v4524 = vand.u32 2147483647, %v4508
        %v4525 = vand.u32 2147483647, %v4509
        %v4526 = vand.u32 2147483647, %v4510
        %v4527 = vand.u32 2147483647, %v4511
        %v4528 = vand.u32 2147483647, %v4512
        %v4529 = vand.u32 2147483647, %v4513
        %v4530 = vand.u32 2147483647, %v4514
        %v4531 = vand.u32 2147483647, %v4515
        %v4532 = vand.u32 2147483647, %v4516
        %v4533 = vand.u32 2147483647, %v4517
        %v4534 = vand.u32 2147483647, %v4518
        %v4535 = vand.u32 2147483647, %v4519
        %v4536 = vand.u32 2147483647, %v4520
        %v4537 = vand.u32 2147483647, %v4521
        %v4538 = vsub.f32 1.0, %v4522
        %v4539 = vsub.f32 1.0, %v4523
        %v4540 = vsub.f32 1.0, %v4524
        %v4541 = vsub.f32 1.0, %v4525
        %v4542 = vsub.f32 1.0, %v4526
        %v4543 = vsub.f32 1.0, %v4527
        %v4544 = vsub.f32 1.0, %v4528
        %v4545 = vsub.f32 1.0, %v4529
        %v4546 = vsub.f32 1.0, %v4530
        %v4547 = vsub.f32 1.0, %v4531
        %v4548 = vsub.f32 1.0, %v4532
        %v4549 = vsub.f32 1.0, %v4533
        %v4550 = vsub.f32 1.0, %v4534
        %v4551 = vsub.f32 1.0, %v4535
        %v4552 = vsub.f32 1.0, %v4536
        %v4553 = vsub.f32 1.0, %v4537
        %v4554 = vmax.f32 %v4538, 0.0
        %v4555 = vmax.f32 %v4539, 0.0
        %v4556 = vmax.f32 %v4540, 0.0
        %v4557 = vmax.f32 %v4541, 0.0
        %v4558 = vmax.f32 %v4542, 0.0
        %v4559 = vmax.f32 %v4543, 0.0
        %v4560 = vmax.f32 %v4544, 0.0
        %v4561 = vmax.f32 %v4545, 0.0
        %v4562 = vmax.f32 %v4546, 0.0
        %v4563 = vmax.f32 %v4547, 0.0
        %v4564 = vmax.f32 %v4548, 0.0
        %v4565 = vmax.f32 %v4549, 0.0
        %v4566 = vmax.f32 %v4550, 0.0
        %v4567 = vmax.f32 %v4551, 0.0
        %v4568 = vmax.f32 %v4552, 0.0
        %v4569 = vmax.f32 %v4553, 0.0
        %v4570 = vmul.f32 %v3325, %v4554
        %v4571 = vmul.f32 %v3327, %v4555
        %v4572 = vmul.f32 %v3462, %v4556
        %v4573 = vmul.f32 %v3464, %v4557
        %v4574 = vmul.f32 %v3599, %v4558
        %v4575 = vmul.f32 %v3601, %v4559
        %v4576 = vmul.f32 %v3736, %v4560
        %v4577 = vmul.f32 %v3738, %v4561
        %v4578 = vmul.f32 %v3873, %v4562
        %v4579 = vmul.f32 %v3875, %v4563
        %v4580 = vmul.f32 %v4010, %v4564
        %v4581 = vmul.f32 %v4012, %v4565
        %v4582 = vmul.f32 %v4147, %v4566
        %v4583 = vmul.f32 %v4149, %v4567
        %v4584 = vmul.f32 %v4284, %v4568
        %v4585 = vmul.f32 %v4286, %v4569
        %v4586 = vrot.slane %v4570, 4
        %v4587 = vadd.f32 %v4570, %v4586
        %v4588 = vrot.slane %v4587, 2
        %v4589 = vadd.f32 %v4587, %v4588
        %v4590 = vrot.slane %v4589, 1
        %v4591 = vadd.f32 %v4589, %v4590
        %v4592 = vrot.slane %v4571, 4
        %v4593 = vadd.f32 %v4571, %v4592
        %v4594 = vrot.slane %v4593, 2
        %v4595 = vadd.f32 %v4593, %v4594
        %v4596 = vrot.slane %v4595, 1
        %v4597 = vadd.f32 %v4595, %v4596
        %v4598 = vrot.slane %v4572, 4
        %v4599 = vadd.f32 %v4572, %v4598
        %v4600 = vrot.slane %v4599, 2
        %v4601 = vadd.f32 %v4599, %v4600
        %v4602 = vrot.slane %v4601, 1
        %v4603 = vadd.f32 %v4601, %v4602
        %v4604 = vrot.slane %v4573, 4
        %v4605 = vadd.f32 %v4573, %v4604
        %v4606 = vrot.slane %v4605, 2
        %v4607 = vadd.f32 %v4605, %v4606
        %v4608 = vrot.slane %v4607, 1
        %v4609 = vadd.f32 %v4607, %v4608
        %v4610 = vrot.slane %v4574, 4
        %v4611 = vadd.f32 %v4574, %v4610
        %v4612 = vrot.slane %v4611, 2
        %v4613 = vadd.f32 %v4611, %v4612
        %v4614 = vrot.slane %v4613, 1
        %v4615 = vadd.f32 %v4613, %v4614
        %v4616 = vrot.slane %v4575, 4
        %v4617 = vadd.f32 %v4575, %v4616
        %v4618 = vrot.slane %v4617, 2
        %v4619 = vadd.f32 %v4617, %v4618
        %v4620 = vrot.slane %v4619, 1
        %v4621 = vadd.f32 %v4619, %v4620
        %v4622 = vrot.slane %v4576, 4
        %v4623 = vadd.f32 %v4576, %v4622
        %v4624 = vrot.slane %v4623, 2
        %v4625 = vadd.f32 %v4623, %v4624
        %v4626 = vrot.slane %v4625, 1
        %v4627 = vadd.f32 %v4625, %v4626
        %v4628 = vrot.slane %v4577, 4
        %v4629 = vadd.f32 %v4577, %v4628
        %v4630 = vrot.slane %v4629, 2
        %v4631 = vadd.f32 %v4629, %v4630
        %v4632 = vrot.slane %v4631, 1
        %v4633 = vadd.f32 %v4631, %v4632
        %v4634 = vrot.slane %v4578, 4
        %v4635 = vadd.f32 %v4578, %v4634
        %v4636 = vrot.slane %v4635, 2
        %v4637 = vadd.f32 %v4635, %v4636
        %v4638 = vrot.slane %v4637, 1
        %v4639 = vadd.f32 %v4637, %v4638
        %v4640 = vrot.slane %v4579, 4
        %v4641 = vadd.f32 %v4579, %v4640
        %v4642 = vrot.slane %v4641, 2
        %v4643 = vadd.f32 %v4641, %v4642
        %v4644 = vrot.slane %v4643, 1
        %v4645 = vadd.f32 %v4643, %v4644
        %v4646 = vrot.slane %v4580, 4
        %v4647 = vadd.f32 %v4580, %v4646
        %v4648 = vrot.slane %v4647, 2
        %v4649 = vadd.f32 %v4647, %v4648
        %v4650 = vrot.slane %v4649, 1
        %v4651 = vadd.f32 %v4649, %v4650
        %v4652 = vrot.slane %v4581, 4
        %v4653 = vadd.f32 %v4581, %v4652
        %v4654 = vrot.slane %v4653, 2
        %v4655 = vadd.f32 %v4653, %v4654
        %v4656 = vrot.slane %v4655, 1
        %v4657 = vadd.f32 %v4655, %v4656
        %v4658 = vrot.slane %v4582, 4
        %v4659 = vadd.f32 %v4582, %v4658
        %v4660 = vrot.slane %v4659, 2
        %v4661 = vadd.f32 %v4659, %v4660
        %v4662 = vrot.slane %v4661, 1
        %v4663 = vadd.f32 %v4661, %v4662
        %v4664 = vrot.slane %v4583, 4
        %v4665 = vadd.f32 %v4583, %v4664
        %v4666 = vrot.slane %v4665, 2
        %v4667 = vadd.f32 %v4665, %v4666
        %v4668 = vrot.slane %v4667, 1
        %v4669 = vadd.f32 %v4667, %v4668
        %v4670 = vrot.slane %v4584, 4
        %v4671 = vadd.f32 %v4584, %v4670
        %v4672 = vrot.slane %v4671, 2
        %v4673 = vadd.f32 %v4671, %v4672
        %v4674 = vrot.slane %v4673, 1
        %v4675 = vadd.f32 %v4673, %v4674
        %v4676 = vrot.slane %v4585, 4
        %v4677 = vadd.f32 %v4585, %v4676
        %v4678 = vrot.slane %v4677, 2
        %v4679 = vadd.f32 %v4677, %v4678
        %v4680 = vrot.slane %v4679, 1
        %v4681 = vadd.f32 %v4679, %v4680
        %v4682 = vmul.f32 %v3331, %v4554
        %v4683 = vmul.f32 %v3333, %v4555
        %v4684 = vmul.f32 %v3468, %v4556
        %v4685 = vmul.f32 %v3470, %v4557
        %v4686 = vmul.f32 %v3605, %v4558
        %v4687 = vmul.f32 %v3607, %v4559
        %v4688 = vmul.f32 %v3742, %v4560
        %v4689 = vmul.f32 %v3744, %v4561
        %v4690 = vmul.f32 %v3879, %v4562
        %v4691 = vmul.f32 %v3881, %v4563
        %v4692 = vmul.f32 %v4016, %v4564
        %v4693 = vmul.f32 %v4018, %v4565
        %v4694 = vmul.f32 %v4153, %v4566
        %v4695 = vmul.f32 %v4155, %v4567
        %v4696 = vmul.f32 %v4290, %v4568
        %v4697 = vmul.f32 %v4292, %v4569
        %v4698 = vrot.slane %v4682, 4
        %v4699 = vadd.f32 %v4682, %v4698
        %v4700 = vrot.slane %v4699, 2
        %v4701 = vadd.f32 %v4699, %v4700
        %v4702 = vrot.slane %v4701, 1
        %v4703 = vadd.f32 %v4701, %v4702
        %v4704 = vrot.slane %v4683, 4
        %v4705 = vadd.f32 %v4683, %v4704
        %v4706 = vrot.slane %v4705, 2
        %v4707 = vadd.f32 %v4705, %v4706
        %v4708 = vrot.slane %v4707, 1
        %v4709 = vadd.f32 %v4707, %v4708
        %v4710 = vrot.slane %v4684, 4
        %v4711 = vadd.f32 %v4684, %v4710
        %v4712 = vrot.slane %v4711, 2
        %v4713 = vadd.f32 %v4711, %v4712
        %v4714 = vrot.slane %v4713, 1
        %v4715 = vadd.f32 %v4713, %v4714
        %v4716 = vrot.slane %v4685, 4
        %v4717 = vadd.f32 %v4685, %v4716
        %v4718 = vrot.slane %v4717, 2
        %v4719 = vadd.f32 %v4717, %v4718
        %v4720 = vrot.slane %v4719, 1
        %v4721 = vadd.f32 %v4719, %v4720
        %v4722 = vrot.slane %v4686, 4
        %v4723 = vadd.f32 %v4686, %v4722
        %v4724 = vrot.slane %v4723, 2
        %v4725 = vadd.f32 %v4723, %v4724
        %v4726 = vrot.slane %v4725, 1
        %v4727 = vadd.f32 %v4725, %v4726
        %v4728 = vrot.slane %v4687, 4
        %v4729 = vadd.f32 %v4687, %v4728
        %v4730 = vrot.slane %v4729, 2
        %v4731 = vadd.f32 %v4729, %v4730
        %v4732 = vrot.slane %v4731, 1
        %v4733 = vadd.f32 %v4731, %v4732
        %v4734 = vrot.slane %v4688, 4
        %v4735 = vadd.f32 %v4688, %v4734
        %v4736 = vrot.slane %v4735, 2
        %v4737 = vadd.f32 %v4735, %v4736
        %v4738 = vrot.slane %v4737, 1
        %v4739 = vadd.f32 %v4737, %v4738
        %v4740 = vrot.slane %v4689, 4
        %v4741 = vadd.f32 %v4689, %v4740
        %v4742 = vrot.slane %v4741, 2
        %v4743 = vadd.f32 %v4741, %v4742
        %v4744 = vrot.slane %v4743, 1
        %v4745 = vadd.f32 %v4743, %v4744
        %v4746 = vrot.slane %v4690, 4
        %v4747 = vadd.f32 %v4690, %v4746
        %v4748 = vrot.slane %v4747, 2
        %v4749 = vadd.f32 %v4747, %v4748
        %v4750 = vrot.slane %v4749, 1
        %v4751 = vadd.f32 %v4749, %v4750
        %v4752 = vrot.slane %v4691, 4
        %v4753 = vadd.f32 %v4691, %v4752
        %v4754 = vrot.slane %v4753, 2
        %v4755 = vadd.f32 %v4753, %v4754
        %v4756 = vrot.slane %v4755, 1
        %v4757 = vadd.f32 %v4755, %v4756
        %v4758 = vrot.slane %v4692, 4
        %v4759 = vadd.f32 %v4692, %v4758
        %v4760 = vrot.slane %v4759, 2
        %v4761 = vadd.f32 %v4759, %v4760
        %v4762 = vrot.slane %v4761, 1
        %v4763 = vadd.f32 %v4761, %v4762
        %v4764 = vrot.slane %v4693, 4
        %v4765 = vadd.f32 %v4693, %v4764
        %v4766 = vrot.slane %v4765, 2
        %v4767 = vadd.f32 %v4765, %v4766
        %v4768 = vrot.slane %v4767, 1
        %v4769 = vadd.f32 %v4767, %v4768
        %v4770 = vrot.slane %v4694, 4
        %v4771 = vadd.f32 %v4694, %v4770
        %v4772 = vrot.slane %v4771, 2
        %v4773 = vadd.f32 %v4771, %v4772
        %v4774 = vrot.slane %v4773, 1
        %v4775 = vadd.f32 %v4773, %v4774
        %v4776 = vrot.slane %v4695, 4
        %v4777 = vadd.f32 %v4695, %v4776
        %v4778 = vrot.slane %v4777, 2
        %v4779 = vadd.f32 %v4777, %v4778
        %v4780 = vrot.slane %v4779, 1
        %v4781 = vadd.f32 %v4779, %v4780
        %v4782 = vrot.slane %v4696, 4
        %v4783 = vadd.f32 %v4696, %v4782
        %v4784 = vrot.slane %v4783, 2
        %v4785 = vadd.f32 %v4783, %v4784
        %v4786 = vrot.slane %v4785, 1
        %v4787 = vadd.f32 %v4785, %v4786
        %v4788 = vrot.slane %v4697, 4
        %v4789 = vadd.f32 %v4697, %v4788
        %v4790 = vrot.slane %v4789, 2
        %v4791 = vadd.f32 %v4789, %v4790
        %v4792 = vrot.slane %v4791, 1
        %v4793 = vadd.f32 %v4791, %v4792
        %v4794 = vmul.f32 %v3337, %v4554
        %v4795 = vmul.f32 %v3339, %v4555
        %v4796 = vmul.f32 %v3474, %v4556
        %v4797 = vmul.f32 %v3476, %v4557
        %v4798 = vmul.f32 %v3611, %v4558
        %v4799 = vmul.f32 %v3613, %v4559
        %v4800 = vmul.f32 %v3748, %v4560
        %v4801 = vmul.f32 %v3750, %v4561
        %v4802 = vmul.f32 %v3885, %v4562
        %v4803 = vmul.f32 %v3887, %v4563
        %v4804 = vmul.f32 %v4022, %v4564
        %v4805 = vmul.f32 %v4024, %v4565
        %v4806 = vmul.f32 %v4159, %v4566
        %v4807 = vmul.f32 %v4161, %v4567
        %v4808 = vmul.f32 %v4296, %v4568
        %v4809 = vmul.f32 %v4298, %v4569
        %v4810 = vrot.slane %v4794, 4
        %v4811 = vadd.f32 %v4794, %v4810
        %v4812 = vrot.slane %v4811, 2
        %v4813 = vadd.f32 %v4811, %v4812
        %v4814 = vrot.slane %v4813, 1
        %v4815 = vadd.f32 %v4813, %v4814
        %v4816 = vrot.slane %v4795, 4
        %v4817 = vadd.f32 %v4795, %v4816
        %v4818 = vrot.slane %v4817, 2
        %v4819 = vadd.f32 %v4817, %v4818
        %v4820 = vrot.slane %v4819, 1
        %v4821 = vadd.f32 %v4819, %v4820
        %v4822 = vrot.slane %v4796, 4
        %v4823 = vadd.f32 %v4796, %v4822
        %v4824 = vrot.slane %v4823, 2
        %v4825 = vadd.f32 %v4823, %v4824
        %v4826 = vrot.slane %v4825, 1
        %v4827 = vadd.f32 %v4825, %v4826
        %v4828 = vrot.slane %v4797, 4
        %v4829 = vadd.f32 %v4797, %v4828
        %v4830 = vrot.slane %v4829, 2
        %v4831 = vadd.f32 %v4829, %v4830
        %v4832 = vrot.slane %v4831, 1
        %v4833 = vadd.f32 %v4831, %v4832
        %v4834 = vrot.slane %v4798, 4
        %v4835 = vadd.f32 %v4798, %v4834
        %v4836 = vrot.slane %v4835, 2
        %v4837 = vadd.f32 %v4835, %v4836
        %v4838 = vrot.slane %v4837, 1
        %v4839 = vadd.f32 %v4837, %v4838
        %v4840 = vrot.slane %v4799, 4
        %v4841 = vadd.f32 %v4799, %v4840
        %v4842 = vrot.slane %v4841, 2
        %v4843 = vadd.f32 %v4841, %v4842
        %v4844 = vrot.slane %v4843, 1
        %v4845 = vadd.f32 %v4843, %v4844
        %v4846 = vrot.slane %v4800, 4
        %v4847 = vadd.f32 %v4800, %v4846
        %v4848 = vrot.slane %v4847, 2
        %v4849 = vadd.f32 %v4847, %v4848
        %v4850 = vrot.slane %v4849, 1
        %v4851 = vadd.f32 %v4849, %v4850
        %v4852 = vrot.slane %v4801, 4
        %v4853 = vadd.f32 %v4801, %v4852
        %v4854 = vrot.slane %v4853, 2
        %v4855 = vadd.f32 %v4853, %v4854
        %v4856 = vrot.slane %v4855, 1
        %v4857 = vadd.f32 %v4855, %v4856
        %v4858 = vrot.slane %v4802, 4
        %v4859 = vadd.f32 %v4802, %v4858
        %v4860 = vrot.slane %v4859, 2
        %v4861 = vadd.f32 %v4859, %v4860
        %v4862 = vrot.slane %v4861, 1
        %v4863 = vadd.f32 %v4861, %v4862
        %v4864 = vrot.slane %v4803, 4
        %v4865 = vadd.f32 %v4803, %v4864
        %v4866 = vrot.slane %v4865, 2
        %v4867 = vadd.f32 %v4865, %v4866
        %v4868 = vrot.slane %v4867, 1
        %v4869 = vadd.f32 %v4867, %v4868
        %v4870 = vrot.slane %v4804, 4
        %v4871 = vadd.f32 %v4804, %v4870
        %v4872 = vrot.slane %v4871, 2
        %v4873 = vadd.f32 %v4871, %v4872
        %v4874 = vrot.slane %v4873, 1
        %v4875 = vadd.f32 %v4873, %v4874
        %v4876 = vrot.slane %v4805, 4
        %v4877 = vadd.f32 %v4805, %v4876
        %v4878 = vrot.slane %v4877, 2
        %v4879 = vadd.f32 %v4877, %v4878
        %v4880 = vrot.slane %v4879, 1
        %v4881 = vadd.f32 %v4879, %v4880
        %v4882 = vrot.slane %v4806, 4
        %v4883 = vadd.f32 %v4806, %v4882
        %v4884 = vrot.slane %v4883, 2
        %v4885 = vadd.f32 %v4883, %v4884
        %v4886 = vrot.slane %v4885, 1
        %v4887 = vadd.f32 %v4885, %v4886
        %v4888 = vrot.slane %v4807, 4
        %v4889 = vadd.f32 %v4807, %v4888
        %v4890 = vrot.slane %v4889, 2
        %v4891 = vadd.f32 %v4889, %v4890
        %v4892 = vrot.slane %v4891, 1
        %v4893 = vadd.f32 %v4891, %v4892
        %v4894 = vrot.slane %v4808, 4
        %v4895 = vadd.f32 %v4808, %v4894
        %v4896 = vrot.slane %v4895, 2
        %v4897 = vadd.f32 %v4895, %v4896
        %v4898 = vrot.slane %v4897, 1
        %v4899 = vadd.f32 %v4897, %v4898
        %v4900 = vrot.slane %v4809, 4
        %v4901 = vadd.f32 %v4809, %v4900
        %v4902 = vrot.slane %v4901, 2
        %v4903 = vadd.f32 %v4901, %v4902
        %v4904 = vrot.slane %v4903, 1
        %v4905 = vadd.f32 %v4903, %v4904
        %v4906 = vmul.f32 %v3343, %v4554
        %v4907 = vmul.f32 %v3345, %v4555
        %v4908 = vmul.f32 %v3480, %v4556
        %v4909 = vmul.f32 %v3482, %v4557
        %v4910 = vmul.f32 %v3617, %v4558
        %v4911 = vmul.f32 %v3619, %v4559
        %v4912 = vmul.f32 %v3754, %v4560
        %v4913 = vmul.f32 %v3756, %v4561
        %v4914 = vmul.f32 %v3891, %v4562
        %v4915 = vmul.f32 %v3893, %v4563
        %v4916 = vmul.f32 %v4028, %v4564
        %v4917 = vmul.f32 %v4030, %v4565
        %v4918 = vmul.f32 %v4165, %v4566
        %v4919 = vmul.f32 %v4167, %v4567
        %v4920 = vmul.f32 %v4302, %v4568
        %v4921 = vmul.f32 %v4304, %v4569
        %v4922 = vrot.slane %v4906, 4
        %v4923 = vadd.f32 %v4906, %v4922
        %v4924 = vrot.slane %v4923, 2
        %v4925 = vadd.f32 %v4923, %v4924
        %v4926 = vrot.slane %v4925, 1
        %v4927 = vadd.f32 %v4925, %v4926
        %v4928 = vrot.slane %v4907, 4
        %v4929 = vadd.f32 %v4907, %v4928
        %v4930 = vrot.slane %v4929, 2
        %v4931 = vadd.f32 %v4929, %v4930
        %v4932 = vrot.slane %v4931, 1
        %v4933 = vadd.f32 %v4931, %v4932
        %v4934 = vrot.slane %v4908, 4
        %v4935 = vadd.f32 %v4908, %v4934
        %v4936 = vrot.slane %v4935, 2
        %v4937 = vadd.f32 %v4935, %v4936
        %v4938 = vrot.slane %v4937, 1
        %v4939 = vadd.f32 %v4937, %v4938
        %v4940 = vrot.slane %v4909, 4
        %v4941 = vadd.f32 %v4909, %v4940
        %v4942 = vrot.slane %v4941, 2
        %v4943 = vadd.f32 %v4941, %v4942
        %v4944 = vrot.slane %v4943, 1
        %v4945 = vadd.f32 %v4943, %v4944
        %v4946 = vrot.slane %v4910, 4
        %v4947 = vadd.f32 %v4910, %v4946
        %v4948 = vrot.slane %v4947, 2
        %v4949 = vadd.f32 %v4947, %v4948
        %v4950 = vrot.slane %v4949, 1
        %v4951 = vadd.f32 %v4949, %v4950
        %v4952 = vrot.slane %v4911, 4
        %v4953 = vadd.f32 %v4911, %v4952
        %v4954 = vrot.slane %v4953, 2
        %v4955 = vadd.f32 %v4953, %v4954
        %v4956 = vrot.slane %v4955, 1
        %v4957 = vadd.f32 %v4955, %v4956
        %v4958 = vrot.slane %v4912, 4
        %v4959 = vadd.f32 %v4912, %v4958
        %v4960 = vrot.slane %v4959, 2
        %v4961 = vadd.f32 %v4959, %v4960
        %v4962 = vrot.slane %v4961, 1
        %v4963 = vadd.f32 %v4961, %v4962
        %v4964 = vrot.slane %v4913, 4
        %v4965 = vadd.f32 %v4913, %v4964
        %v4966 = vrot.slane %v4965, 2
        %v4967 = vadd.f32 %v4965, %v4966
        %v4968 = vrot.slane %v4967, 1
        %v4969 = vadd.f32 %v4967, %v4968
        %v4970 = vrot.slane %v4914, 4
        %v4971 = vadd.f32 %v4914, %v4970
        %v4972 = vrot.slane %v4971, 2
        %v4973 = vadd.f32 %v4971, %v4972
        %v4974 = vrot.slane %v4973, 1
        %v4975 = vadd.f32 %v4973, %v4974
        %v4976 = vrot.slane %v4915, 4
        %v4977 = vadd.f32 %v4915, %v4976
        %v4978 = vrot.slane %v4977, 2
        %v4979 = vadd.f32 %v4977, %v4978
        %v4980 = vrot.slane %v4979, 1
        %v4981 = vadd.f32 %v4979, %v4980
        %v4982 = vrot.slane %v4916, 4
        %v4983 = vadd.f32 %v4916, %v4982
        %v4984 = vrot.slane %v4983, 2
        %v4985 = vadd.f32 %v4983, %v4984
        %v4986 = vrot.slane %v4985, 1
        %v4987 = vadd.f32 %v4985, %v4986
        %v4988 = vrot.slane %v4917, 4
        %v4989 = vadd.f32 %v4917, %v4988
        %v4990 = vrot.slane %v4989, 2
        %v4991 = vadd.f32 %v4989, %v4990
        %v4992 = vrot.slane %v4991, 1
        %v4993 = vadd.f32 %v4991, %v4992
        %v4994 = vrot.slane %v4918, 4
        %v4995 = vadd.f32 %v4918, %v4994
        %v4996 = vrot.slane %v4995, 2
        %v4997 = vadd.f32 %v4995, %v4996
        %v4998 = vrot.slane %v4997, 1
        %v4999 = vadd.f32 %v4997, %v4998
        %v5000 = vrot.slane %v4919, 4
        %v5001 = vadd.f32 %v4919, %v5000
        %v5002 = vrot.slane %v5001, 2
        %v5003 = vadd.f32 %v5001, %v5002
        %v5004 = vrot.slane %v5003, 1
        %v5005 = vadd.f32 %v5003, %v5004
        %v5006 = vrot.slane %v4920, 4
        %v5007 = vadd.f32 %v4920, %v5006
        %v5008 = vrot.slane %v5007, 2
        %v5009 = vadd.f32 %v5007, %v5008
        %v5010 = vrot.slane %v5009, 1
        %v5011 = vadd.f32 %v5009, %v5010
        %v5012 = vrot.slane %v4921, 4
        %v5013 = vadd.f32 %v4921, %v5012
        %v5014 = vrot.slane %v5013, 2
        %v5015 = vadd.f32 %v5013, %v5014
        %v5016 = vrot.slane %v5015, 1
        %v5017 = vadd.f32 %v5015, %v5016
        %v5018 = vmul.f32 %v3349, %v4554
        %v5019 = vmul.f32 %v3351, %v4555
        %v5020 = vmul.f32 %v3486, %v4556
        %v5021 = vmul.f32 %v3488, %v4557
        %v5022 = vmul.f32 %v3623, %v4558
        %v5023 = vmul.f32 %v3625, %v4559
        %v5024 = vmul.f32 %v3760, %v4560
        %v5025 = vmul.f32 %v3762, %v4561
        %v5026 = vmul.f32 %v3897, %v4562
        %v5027 = vmul.f32 %v3899, %v4563
        %v5028 = vmul.f32 %v4034, %v4564
        %v5029 = vmul.f32 %v4036, %v4565
        %v5030 = vmul.f32 %v4171, %v4566
        %v5031 = vmul.f32 %v4173, %v4567
        %v5032 = vmul.f32 %v4308, %v4568
        %v5033 = vmul.f32 %v4310, %v4569
        %v5034 = vrot.slane %v5018, 4
        %v5035 = vadd.f32 %v5018, %v5034
        %v5036 = vrot.slane %v5035, 2
        %v5037 = vadd.f32 %v5035, %v5036
        %v5038 = vrot.slane %v5037, 1
        %v5039 = vadd.f32 %v5037, %v5038
        %v5040 = vrot.slane %v5019, 4
        %v5041 = vadd.f32 %v5019, %v5040
        %v5042 = vrot.slane %v5041, 2
        %v5043 = vadd.f32 %v5041, %v5042
        %v5044 = vrot.slane %v5043, 1
        %v5045 = vadd.f32 %v5043, %v5044
        %v5046 = vrot.slane %v5020, 4
        %v5047 = vadd.f32 %v5020, %v5046
        %v5048 = vrot.slane %v5047, 2
        %v5049 = vadd.f32 %v5047, %v5048
        %v5050 = vrot.slane %v5049, 1
        %v5051 = vadd.f32 %v5049, %v5050
        %v5052 = vrot.slane %v5021, 4
        %v5053 = vadd.f32 %v5021, %v5052
        %v5054 = vrot.slane %v5053, 2
        %v5055 = vadd.f32 %v5053, %v5054
        %v5056 = vrot.slane %v5055, 1
        %v5057 = vadd.f32 %v5055, %v5056
        %v5058 = vrot.slane %v5022, 4
        %v5059 = vadd.f32 %v5022, %v5058
        %v5060 = vrot.slane %v5059, 2
        %v5061 = vadd.f32 %v5059, %v5060
        %v5062 = vrot.slane %v5061, 1
        %v5063 = vadd.f32 %v5061, %v5062
        %v5064 = vrot.slane %v5023, 4
        %v5065 = vadd.f32 %v5023, %v5064
        %v5066 = vrot.slane %v5065, 2
        %v5067 = vadd.f32 %v5065, %v5066
        %v5068 = vrot.slane %v5067, 1
        %v5069 = vadd.f32 %v5067, %v5068
        %v5070 = vrot.slane %v5024, 4
        %v5071 = vadd.f32 %v5024, %v5070
        %v5072 = vrot.slane %v5071, 2
        %v5073 = vadd.f32 %v5071, %v5072
        %v5074 = vrot.slane %v5073, 1
        %v5075 = vadd.f32 %v5073, %v5074
        %v5076 = vrot.slane %v5025, 4
        %v5077 = vadd.f32 %v5025, %v5076
        %v5078 = vrot.slane %v5077, 2
        %v5079 = vadd.f32 %v5077, %v5078
        %v5080 = vrot.slane %v5079, 1
        %v5081 = vadd.f32 %v5079, %v5080
        %v5082 = vrot.slane %v5026, 4
        %v5083 = vadd.f32 %v5026, %v5082
        %v5084 = vrot.slane %v5083, 2
        %v5085 = vadd.f32 %v5083, %v5084
        %v5086 = vrot.slane %v5085, 1
        %v5087 = vadd.f32 %v5085, %v5086
        %v5088 = vrot.slane %v5027, 4
        %v5089 = vadd.f32 %v5027, %v5088
        %v5090 = vrot.slane %v5089, 2
        %v5091 = vadd.f32 %v5089, %v5090
        %v5092 = vrot.slane %v5091, 1
        %v5093 = vadd.f32 %v5091, %v5092
        %v5094 = vrot.slane %v5028, 4
        %v5095 = vadd.f32 %v5028, %v5094
        %v5096 = vrot.slane %v5095, 2
        %v5097 = vadd.f32 %v5095, %v5096
        %v5098 = vrot.slane %v5097, 1
        %v5099 = vadd.f32 %v5097, %v5098
        %v5100 = vrot.slane %v5029, 4
        %v5101 = vadd.f32 %v5029, %v5100
        %v5102 = vrot.slane %v5101, 2
        %v5103 = vadd.f32 %v5101, %v5102
        %v5104 = vrot.slane %v5103, 1
        %v5105 = vadd.f32 %v5103, %v5104
        %v5106 = vrot.slane %v5030, 4
        %v5107 = vadd.f32 %v5030, %v5106
        %v5108 = vrot.slane %v5107, 2
        %v5109 = vadd.f32 %v5107, %v5108
        %v5110 = vrot.slane %v5109, 1
        %v5111 = vadd.f32 %v5109, %v5110
        %v5112 = vrot.slane %v5031, 4
        %v5113 = vadd.f32 %v5031, %v5112
        %v5114 = vrot.slane %v5113, 2
        %v5115 = vadd.f32 %v5113, %v5114
        %v5116 = vrot.slane %v5115, 1
        %v5117 = vadd.f32 %v5115, %v5116
        %v5118 = vrot.slane %v5032, 4
        %v5119 = vadd.f32 %v5032, %v5118
        %v5120 = vrot.slane %v5119, 2
        %v5121 = vadd.f32 %v5119, %v5120
        %v5122 = vrot.slane %v5121, 1
        %v5123 = vadd.f32 %v5121, %v5122
        %v5124 = vrot.slane %v5033, 4
        %v5125 = vadd.f32 %v5033, %v5124
        %v5126 = vrot.slane %v5125, 2
        %v5127 = vadd.f32 %v5125, %v5126
        %v5128 = vrot.slane %v5127, 1
        %v5129 = vadd.f32 %v5127, %v5128
        %v5130 = vmul.f32 %v3355, %v4554
        %v5131 = vmul.f32 %v3357, %v4555
        %v5132 = vmul.f32 %v3492, %v4556
        %v5133 = vmul.f32 %v3494, %v4557
        %v5134 = vmul.f32 %v3629, %v4558
        %v5135 = vmul.f32 %v3631, %v4559
        %v5136 = vmul.f32 %v3766, %v4560
        %v5137 = vmul.f32 %v3768, %v4561
        %v5138 = vmul.f32 %v3903, %v4562
        %v5139 = vmul.f32 %v3905, %v4563
        %v5140 = vmul.f32 %v4040, %v4564
        %v5141 = vmul.f32 %v4042, %v4565
        %v5142 = vmul.f32 %v4177, %v4566
        %v5143 = vmul.f32 %v4179, %v4567
        %v5144 = vmul.f32 %v4314, %v4568
        %v5145 = vmul.f32 %v4316, %v4569
        %v5146 = vrot.slane %v5130, 4
        %v5147 = vadd.f32 %v5130, %v5146
        %v5148 = vrot.slane %v5147, 2
        %v5149 = vadd.f32 %v5147, %v5148
        %v5150 = vrot.slane %v5149, 1
        %v5151 = vadd.f32 %v5149, %v5150
        %v5152 = vrot.slane %v5131, 4
        %v5153 = vadd.f32 %v5131, %v5152
        %v5154 = vrot.slane %v5153, 2
        %v5155 = vadd.f32 %v5153, %v5154
        %v5156 = vrot.slane %v5155, 1
        %v5157 = vadd.f32 %v5155, %v5156
        %v5158 = vrot.slane %v5132, 4
        %v5159 = vadd.f32 %v5132, %v5158
        %v5160 = vrot.slane %v5159, 2
        %v5161 = vadd.f32 %v5159, %v5160
        %v5162 = vrot.slane %v5161, 1
        %v5163 = vadd.f32 %v5161, %v5162
        %v5164 = vrot.slane %v5133, 4
        %v5165 = vadd.f32 %v5133, %v5164
        %v5166 = vrot.slane %v5165, 2
        %v5167 = vadd.f32 %v5165, %v5166
        %v5168 = vrot.slane %v5167, 1
        %v5169 = vadd.f32 %v5167, %v5168
        %v5170 = vrot.slane %v5134, 4
        %v5171 = vadd.f32 %v5134, %v5170
        %v5172 = vrot.slane %v5171, 2
        %v5173 = vadd.f32 %v5171, %v5172
        %v5174 = vrot.slane %v5173, 1
        %v5175 = vadd.f32 %v5173, %v5174
        %v5176 = vrot.slane %v5135, 4
        %v5177 = vadd.f32 %v5135, %v5176
        %v5178 = vrot.slane %v5177, 2
        %v5179 = vadd.f32 %v5177, %v5178
        %v5180 = vrot.slane %v5179, 1
        %v5181 = vadd.f32 %v5179, %v5180
        %v5182 = vrot.slane %v5136, 4
        %v5183 = vadd.f32 %v5136, %v5182
        %v5184 = vrot.slane %v5183, 2
        %v5185 = vadd.f32 %v5183, %v5184
        %v5186 = vrot.slane %v5185, 1
        %v5187 = vadd.f32 %v5185, %v5186
        %v5188 = vrot.slane %v5137, 4
        %v5189 = vadd.f32 %v5137, %v5188
        %v5190 = vrot.slane %v5189, 2
        %v5191 = vadd.f32 %v5189, %v5190
        %v5192 = vrot.slane %v5191, 1
        %v5193 = vadd.f32 %v5191, %v5192
        %v5194 = vrot.slane %v5138, 4
        %v5195 = vadd.f32 %v5138, %v5194
        %v5196 = vrot.slane %v5195, 2
        %v5197 = vadd.f32 %v5195, %v5196
        %v5198 = vrot.slane %v5197, 1
        %v5199 = vadd.f32 %v5197, %v5198
        %v5200 = vrot.slane %v5139, 4
        %v5201 = vadd.f32 %v5139, %v5200
        %v5202 = vrot.slane %v5201, 2
        %v5203 = vadd.f32 %v5201, %v5202
        %v5204 = vrot.slane %v5203, 1
        %v5205 = vadd.f32 %v5203, %v5204
        %v5206 = vrot.slane %v5140, 4
        %v5207 = vadd.f32 %v5140, %v5206
        %v5208 = vrot.slane %v5207, 2
        %v5209 = vadd.f32 %v5207, %v5208
        %v5210 = vrot.slane %v5209, 1
        %v5211 = vadd.f32 %v5209, %v5210
        %v5212 = vrot.slane %v5141, 4
        %v5213 = vadd.f32 %v5141, %v5212
        %v5214 = vrot.slane %v5213, 2
        %v5215 = vadd.f32 %v5213, %v5214
        %v5216 = vrot.slane %v5215, 1
        %v5217 = vadd.f32 %v5215, %v5216
        %v5218 = vrot.slane %v5142, 4
        %v5219 = vadd.f32 %v5142, %v5218
        %v5220 = vrot.slane %v5219, 2
        %v5221 = vadd.f32 %v5219, %v5220
        %v5222 = vrot.slane %v5221, 1
        %v5223 = vadd.f32 %v5221, %v5222
        %v5224 = vrot.slane %v5143, 4
        %v5225 = vadd.f32 %v5143, %v5224
        %v5226 = vrot.slane %v5225, 2
        %v5227 = vadd.f32 %v5225, %v5226
        %v5228 = vrot.slane %v5227, 1
        %v5229 = vadd.f32 %v5227, %v5228
        %v5230 = vrot.slane %v5144, 4
        %v5231 = vadd.f32 %v5144, %v5230
        %v5232 = vrot.slane %v5231, 2
        %v5233 = vadd.f32 %v5231, %v5232
        %v5234 = vrot.slane %v5233, 1
        %v5235 = vadd.f32 %v5233, %v5234
        %v5236 = vrot.slane %v5145, 4
        %v5237 = vadd.f32 %v5145, %v5236
        %v5238 = vrot.slane %v5237, 2
        %v5239 = vadd.f32 %v5237, %v5238
        %v5240 = vrot.slane %v5239, 1
        %v5241 = vadd.f32 %v5239, %v5240
        %v5242 = vmul.f32 %v3361, %v4554
        %v5243 = vmul.f32 %v3363, %v4555
        %v5244 = vmul.f32 %v3498, %v4556
        %v5245 = vmul.f32 %v3500, %v4557
        %v5246 = vmul.f32 %v3635, %v4558
        %v5247 = vmul.f32 %v3637, %v4559
        %v5248 = vmul.f32 %v3772, %v4560
        %v5249 = vmul.f32 %v3774, %v4561
        %v5250 = vmul.f32 %v3909, %v4562
        %v5251 = vmul.f32 %v3911, %v4563
        %v5252 = vmul.f32 %v4046, %v4564
        %v5253 = vmul.f32 %v4048, %v4565
        %v5254 = vmul.f32 %v4183, %v4566
        %v5255 = vmul.f32 %v4185, %v4567
        %v5256 = vmul.f32 %v4320, %v4568
        %v5257 = vmul.f32 %v4322, %v4569
        %v5258 = vrot.slane %v5242, 4
        %v5259 = vadd.f32 %v5242, %v5258
        %v5260 = vrot.slane %v5259, 2
        %v5261 = vadd.f32 %v5259, %v5260
        %v5262 = vrot.slane %v5261, 1
        %v5263 = vadd.f32 %v5261, %v5262
        %v5264 = vrot.slane %v5243, 4
        %v5265 = vadd.f32 %v5243, %v5264
        %v5266 = vrot.slane %v5265, 2
        %v5267 = vadd.f32 %v5265, %v5266
        %v5268 = vrot.slane %v5267, 1
        %v5269 = vadd.f32 %v5267, %v5268
        %v5270 = vrot.slane %v5244, 4
        %v5271 = vadd.f32 %v5244, %v5270
        %v5272 = vrot.slane %v5271, 2
        %v5273 = vadd.f32 %v5271, %v5272
        %v5274 = vrot.slane %v5273, 1
        %v5275 = vadd.f32 %v5273, %v5274
        %v5276 = vrot.slane %v5245, 4
        %v5277 = vadd.f32 %v5245, %v5276
        %v5278 = vrot.slane %v5277, 2
        %v5279 = vadd.f32 %v5277, %v5278
        %v5280 = vrot.slane %v5279, 1
        %v5281 = vadd.f32 %v5279, %v5280
        %v5282 = vrot.slane %v5246, 4
        %v5283 = vadd.f32 %v5246, %v5282
        %v5284 = vrot.slane %v5283, 2
        %v5285 = vadd.f32 %v5283, %v5284
        %v5286 = vrot.slane %v5285, 1
        %v5287 = vadd.f32 %v5285, %v5286
        %v5288 = vrot.slane %v5247, 4
        %v5289 = vadd.f32 %v5247, %v5288
        %v5290 = vrot.slane %v5289, 2
        %v5291 = vadd.f32 %v5289, %v5290
        %v5292 = vrot.slane %v5291, 1
        %v5293 = vadd.f32 %v5291, %v5292
        %v5294 = vrot.slane %v5248, 4
        %v5295 = vadd.f32 %v5248, %v5294
        %v5296 = vrot.slane %v5295, 2
        %v5297 = vadd.f32 %v5295, %v5296
        %v5298 = vrot.slane %v5297, 1
        %v5299 = vadd.f32 %v5297, %v5298
        %v5300 = vrot.slane %v5249, 4
        %v5301 = vadd.f32 %v5249, %v5300
        %v5302 = vrot.slane %v5301, 2
        %v5303 = vadd.f32 %v5301, %v5302
        %v5304 = vrot.slane %v5303, 1
        %v5305 = vadd.f32 %v5303, %v5304
        %v5306 = vrot.slane %v5250, 4
        %v5307 = vadd.f32 %v5250, %v5306
        %v5308 = vrot.slane %v5307, 2
        %v5309 = vadd.f32 %v5307, %v5308
        %v5310 = vrot.slane %v5309, 1
        %v5311 = vadd.f32 %v5309, %v5310
        %v5312 = vrot.slane %v5251, 4
        %v5313 = vadd.f32 %v5251, %v5312
        %v5314 = vrot.slane %v5313, 2
        %v5315 = vadd.f32 %v5313, %v5314
        %v5316 = vrot.slane %v5315, 1
        %v5317 = vadd.f32 %v5315, %v5316
        %v5318 = vrot.slane %v5252, 4
        %v5319 = vadd.f32 %v5252, %v5318
        %v5320 = vrot.slane %v5319, 2
        %v5321 = vadd.f32 %v5319, %v5320
        %v5322 = vrot.slane %v5321, 1
        %v5323 = vadd.f32 %v5321, %v5322
        %v5324 = vrot.slane %v5253, 4
        %v5325 = vadd.f32 %v5253, %v5324
        %v5326 = vrot.slane %v5325, 2
        %v5327 = vadd.f32 %v5325, %v5326
        %v5328 = vrot.slane %v5327, 1
        %v5329 = vadd.f32 %v5327, %v5328
        %v5330 = vrot.slane %v5254, 4
        %v5331 = vadd.f32 %v5254, %v5330
        %v5332 = vrot.slane %v5331, 2
        %v5333 = vadd.f32 %v5331, %v5332
        %v5334 = vrot.slane %v5333, 1
        %v5335 = vadd.f32 %v5333, %v5334
        %v5336 = vrot.slane %v5255, 4
        %v5337 = vadd.f32 %v5255, %v5336
        %v5338 = vrot.slane %v5337, 2
        %v5339 = vadd.f32 %v5337, %v5338
        %v5340 = vrot.slane %v5339, 1
        %v5341 = vadd.f32 %v5339, %v5340
        %v5342 = vrot.slane %v5256, 4
        %v5343 = vadd.f32 %v5256, %v5342
        %v5344 = vrot.slane %v5343, 2
        %v5345 = vadd.f32 %v5343, %v5344
        %v5346 = vrot.slane %v5345, 1
        %v5347 = vadd.f32 %v5345, %v5346
        %v5348 = vrot.slane %v5257, 4
        %v5349 = vadd.f32 %v5257, %v5348
        %v5350 = vrot.slane %v5349, 2
        %v5351 = vadd.f32 %v5349, %v5350
        %v5352 = vrot.slane %v5351, 1
        %v5353 = vadd.f32 %v5351, %v5352
        %v5354 = vmul.f32 %v3367, %v4554
        %v5355 = vmul.f32 %v3369, %v4555
        %v5356 = vmul.f32 %v3504, %v4556
        %v5357 = vmul.f32 %v3506, %v4557
        %v5358 = vmul.f32 %v3641, %v4558
        %v5359 = vmul.f32 %v3643, %v4559
        %v5360 = vmul.f32 %v3778, %v4560
        %v5361 = vmul.f32 %v3780, %v4561
        %v5362 = vmul.f32 %v3915, %v4562
        %v5363 = vmul.f32 %v3917, %v4563
        %v5364 = vmul.f32 %v4052, %v4564
        %v5365 = vmul.f32 %v4054, %v4565
        %v5366 = vmul.f32 %v4189, %v4566
        %v5367 = vmul.f32 %v4191, %v4567
        %v5368 = vmul.f32 %v4326, %v4568
        %v5369 = vmul.f32 %v4328, %v4569
        %v5370 = vrot.slane %v5354, 4
        %v5371 = vadd.f32 %v5354, %v5370
        %v5372 = vrot.slane %v5371, 2
        %v5373 = vadd.f32 %v5371, %v5372
        %v5374 = vrot.slane %v5373, 1
        %v5375 = vadd.f32 %v5373, %v5374
        %v5376 = vrot.slane %v5355, 4
        %v5377 = vadd.f32 %v5355, %v5376
        %v5378 = vrot.slane %v5377, 2
        %v5379 = vadd.f32 %v5377, %v5378
        %v5380 = vrot.slane %v5379, 1
        %v5381 = vadd.f32 %v5379, %v5380
        %v5382 = vrot.slane %v5356, 4
        %v5383 = vadd.f32 %v5356, %v5382
        %v5384 = vrot.slane %v5383, 2
        %v5385 = vadd.f32 %v5383, %v5384
        %v5386 = vrot.slane %v5385, 1
        %v5387 = vadd.f32 %v5385, %v5386
        %v5388 = vrot.slane %v5357, 4
        %v5389 = vadd.f32 %v5357, %v5388
        %v5390 = vrot.slane %v5389, 2
        %v5391 = vadd.f32 %v5389, %v5390
        %v5392 = vrot.slane %v5391, 1
        %v5393 = vadd.f32 %v5391, %v5392
        %v5394 = vrot.slane %v5358, 4
        %v5395 = vadd.f32 %v5358, %v5394
        %v5396 = vrot.slane %v5395, 2
        %v5397 = vadd.f32 %v5395, %v5396
        %v5398 = vrot.slane %v5397, 1
        %v5399 = vadd.f32 %v5397, %v5398
        %v5400 = vrot.slane %v5359, 4
        %v5401 = vadd.f32 %v5359, %v5400
        %v5402 = vrot.slane %v5401, 2
        %v5403 = vadd.f32 %v5401, %v5402
        %v5404 = vrot.slane %v5403, 1
        %v5405 = vadd.f32 %v5403, %v5404
        %v5406 = vrot.slane %v5360, 4
        %v5407 = vadd.f32 %v5360, %v5406
        %v5408 = vrot.slane %v5407, 2
        %v5409 = vadd.f32 %v5407, %v5408
        %v5410 = vrot.slane %v5409, 1
        %v5411 = vadd.f32 %v5409, %v5410
        %v5412 = vrot.slane %v5361, 4
        %v5413 = vadd.f32 %v5361, %v5412
        %v5414 = vrot.slane %v5413, 2
        %v5415 = vadd.f32 %v5413, %v5414
        %v5416 = vrot.slane %v5415, 1
        %v5417 = vadd.f32 %v5415, %v5416
        %v5418 = vrot.slane %v5362, 4
        %v5419 = vadd.f32 %v5362, %v5418
        %v5420 = vrot.slane %v5419, 2
        %v5421 = vadd.f32 %v5419, %v5420
        %v5422 = vrot.slane %v5421, 1
        %v5423 = vadd.f32 %v5421, %v5422
        %v5424 = vrot.slane %v5363, 4
        %v5425 = vadd.f32 %v5363, %v5424
        %v5426 = vrot.slane %v5425, 2
        %v5427 = vadd.f32 %v5425, %v5426
        %v5428 = vrot.slane %v5427, 1
        %v5429 = vadd.f32 %v5427, %v5428
        %v5430 = vrot.slane %v5364, 4
        %v5431 = vadd.f32 %v5364, %v5430
        %v5432 = vrot.slane %v5431, 2
        %v5433 = vadd.f32 %v5431, %v5432
        %v5434 = vrot.slane %v5433, 1
        %v5435 = vadd.f32 %v5433, %v5434
        %v5436 = vrot.slane %v5365, 4
        %v5437 = vadd.f32 %v5365, %v5436
        %v5438 = vrot.slane %v5437, 2
        %v5439 = vadd.f32 %v5437, %v5438
        %v5440 = vrot.slane %v5439, 1
        %v5441 = vadd.f32 %v5439, %v5440
        %v5442 = vrot.slane %v5366, 4
        %v5443 = vadd.f32 %v5366, %v5442
        %v5444 = vrot.slane %v5443, 2
        %v5445 = vadd.f32 %v5443, %v5444
        %v5446 = vrot.slane %v5445, 1
        %v5447 = vadd.f32 %v5445, %v5446
        %v5448 = vrot.slane %v5367, 4
        %v5449 = vadd.f32 %v5367, %v5448
        %v5450 = vrot.slane %v5449, 2
        %v5451 = vadd.f32 %v5449, %v5450
        %v5452 = vrot.slane %v5451, 1
        %v5453 = vadd.f32 %v5451, %v5452
        %v5454 = vrot.slane %v5368, 4
        %v5455 = vadd.f32 %v5368, %v5454
        %v5456 = vrot.slane %v5455, 2
        %v5457 = vadd.f32 %v5455, %v5456
        %v5458 = vrot.slane %v5457, 1
        %v5459 = vadd.f32 %v5457, %v5458
        %v5460 = vrot.slane %v5369, 4
        %v5461 = vadd.f32 %v5369, %v5460
        %v5462 = vrot.slane %v5461, 2
        %v5463 = vadd.f32 %v5461, %v5462
        %v5464 = vrot.slane %v5463, 1
        %v5465 = vadd.f32 %v5463, %v5464
        %v5466 = vmul.f32 %v3373, %v4554
        %v5467 = vmul.f32 %v3375, %v4555
        %v5468 = vmul.f32 %v3510, %v4556
        %v5469 = vmul.f32 %v3512, %v4557
        %v5470 = vmul.f32 %v3647, %v4558
        %v5471 = vmul.f32 %v3649, %v4559
        %v5472 = vmul.f32 %v3784, %v4560
        %v5473 = vmul.f32 %v3786, %v4561
        %v5474 = vmul.f32 %v3921, %v4562
        %v5475 = vmul.f32 %v3923, %v4563
        %v5476 = vmul.f32 %v4058, %v4564
        %v5477 = vmul.f32 %v4060, %v4565
        %v5478 = vmul.f32 %v4195, %v4566
        %v5479 = vmul.f32 %v4197, %v4567
        %v5480 = vmul.f32 %v4332, %v4568
        %v5481 = vmul.f32 %v4334, %v4569
        %v5482 = vrot.slane %v5466, 4
        %v5483 = vadd.f32 %v5466, %v5482
        %v5484 = vrot.slane %v5483, 2
        %v5485 = vadd.f32 %v5483, %v5484
        %v5486 = vrot.slane %v5485, 1
        %v5487 = vadd.f32 %v5485, %v5486
        %v5488 = vrot.slane %v5467, 4
        %v5489 = vadd.f32 %v5467, %v5488
        %v5490 = vrot.slane %v5489, 2
        %v5491 = vadd.f32 %v5489, %v5490
        %v5492 = vrot.slane %v5491, 1
        %v5493 = vadd.f32 %v5491, %v5492
        %v5494 = vrot.slane %v5468, 4
        %v5495 = vadd.f32 %v5468, %v5494
        %v5496 = vrot.slane %v5495, 2
        %v5497 = vadd.f32 %v5495, %v5496
        %v5498 = vrot.slane %v5497, 1
        %v5499 = vadd.f32 %v5497, %v5498
        %v5500 = vrot.slane %v5469, 4
        %v5501 = vadd.f32 %v5469, %v5500
        %v5502 = vrot.slane %v5501, 2
        %v5503 = vadd.f32 %v5501, %v5502
        %v5504 = vrot.slane %v5503, 1
        %v5505 = vadd.f32 %v5503, %v5504
        %v5506 = vrot.slane %v5470, 4
        %v5507 = vadd.f32 %v5470, %v5506
        %v5508 = vrot.slane %v5507, 2
        %v5509 = vadd.f32 %v5507, %v5508
        %v5510 = vrot.slane %v5509, 1
        %v5511 = vadd.f32 %v5509, %v5510
        %v5512 = vrot.slane %v5471, 4
        %v5513 = vadd.f32 %v5471, %v5512
        %v5514 = vrot.slane %v5513, 2
        %v5515 = vadd.f32 %v5513, %v5514
        %v5516 = vrot.slane %v5515, 1
        %v5517 = vadd.f32 %v5515, %v5516
        %v5518 = vrot.slane %v5472, 4
        %v5519 = vadd.f32 %v5472, %v5518
        %v5520 = vrot.slane %v5519, 2
        %v5521 = vadd.f32 %v5519, %v5520
        %v5522 = vrot.slane %v5521, 1
        %v5523 = vadd.f32 %v5521, %v5522
        %v5524 = vrot.slane %v5473, 4
        %v5525 = vadd.f32 %v5473, %v5524
        %v5526 = vrot.slane %v5525, 2
        %v5527 = vadd.f32 %v5525, %v5526
        %v5528 = vrot.slane %v5527, 1
        %v5529 = vadd.f32 %v5527, %v5528
        %v5530 = vrot.slane %v5474, 4
        %v5531 = vadd.f32 %v5474, %v5530
        %v5532 = vrot.slane %v5531, 2
        %v5533 = vadd.f32 %v5531, %v5532
        %v5534 = vrot.slane %v5533, 1
        %v5535 = vadd.f32 %v5533, %v5534
        %v5536 = vrot.slane %v5475, 4
        %v5537 = vadd.f32 %v5475, %v5536
        %v5538 = vrot.slane %v5537, 2
        %v5539 = vadd.f32 %v5537, %v5538
        %v5540 = vrot.slane %v5539, 1
        %v5541 = vadd.f32 %v5539, %v5540
        %v5542 = vrot.slane %v5476, 4
        %v5543 = vadd.f32 %v5476, %v5542
        %v5544 = vrot.slane %v5543, 2
        %v5545 = vadd.f32 %v5543, %v5544
        %v5546 = vrot.slane %v5545, 1
        %v5547 = vadd.f32 %v5545, %v5546
        %v5548 = vrot.slane %v5477, 4
        %v5549 = vadd.f32 %v5477, %v5548
        %v5550 = vrot.slane %v5549, 2
        %v5551 = vadd.f32 %v5549, %v5550
        %v5552 = vrot.slane %v5551, 1
        %v5553 = vadd.f32 %v5551, %v5552
        %v5554 = vrot.slane %v5478, 4
        %v5555 = vadd.f32 %v5478, %v5554
        %v5556 = vrot.slane %v5555, 2
        %v5557 = vadd.f32 %v5555, %v5556
        %v5558 = vrot.slane %v5557, 1
        %v5559 = vadd.f32 %v5557, %v5558
        %v5560 = vrot.slane %v5479, 4
        %v5561 = vadd.f32 %v5479, %v5560
        %v5562 = vrot.slane %v5561, 2
        %v5563 = vadd.f32 %v5561, %v5562
        %v5564 = vrot.slane %v5563, 1
        %v5565 = vadd.f32 %v5563, %v5564
        %v5566 = vrot.slane %v5480, 4
        %v5567 = vadd.f32 %v5480, %v5566
        %v5568 = vrot.slane %v5567, 2
        %v5569 = vadd.f32 %v5567, %v5568
        %v5570 = vrot.slane %v5569, 1
        %v5571 = vadd.f32 %v5569, %v5570
        %v5572 = vrot.slane %v5481, 4
        %v5573 = vadd.f32 %v5481, %v5572
        %v5574 = vrot.slane %v5573, 2
        %v5575 = vadd.f32 %v5573, %v5574
        %v5576 = vrot.slane %v5575, 1
        %v5577 = vadd.f32 %v5575, %v5576
        %v5578 = vmul.f32 %v3379, %v4554
        %v5579 = vmul.f32 %v3381, %v4555
        %v5580 = vmul.f32 %v3516, %v4556
        %v5581 = vmul.f32 %v3518, %v4557
        %v5582 = vmul.f32 %v3653, %v4558
        %v5583 = vmul.f32 %v3655, %v4559
        %v5584 = vmul.f32 %v3790, %v4560
        %v5585 = vmul.f32 %v3792, %v4561
        %v5586 = vmul.f32 %v3927, %v4562
        %v5587 = vmul.f32 %v3929, %v4563
        %v5588 = vmul.f32 %v4064, %v4564
        %v5589 = vmul.f32 %v4066, %v4565
        %v5590 = vmul.f32 %v4201, %v4566
        %v5591 = vmul.f32 %v4203, %v4567
        %v5592 = vmul.f32 %v4338, %v4568
        %v5593 = vmul.f32 %v4340, %v4569
        %v5594 = vrot.slane %v5578, 4
        %v5595 = vadd.f32 %v5578, %v5594
        %v5596 = vrot.slane %v5595, 2
        %v5597 = vadd.f32 %v5595, %v5596
        %v5598 = vrot.slane %v5597, 1
        %v5599 = vadd.f32 %v5597, %v5598
        %v5600 = vrot.slane %v5579, 4
        %v5601 = vadd.f32 %v5579, %v5600
        %v5602 = vrot.slane %v5601, 2
        %v5603 = vadd.f32 %v5601, %v5602
        %v5604 = vrot.slane %v5603, 1
        %v5605 = vadd.f32 %v5603, %v5604
        %v5606 = vrot.slane %v5580, 4
        %v5607 = vadd.f32 %v5580, %v5606
        %v5608 = vrot.slane %v5607, 2
        %v5609 = vadd.f32 %v5607, %v5608
        %v5610 = vrot.slane %v5609, 1
        %v5611 = vadd.f32 %v5609, %v5610
        %v5612 = vrot.slane %v5581, 4
        %v5613 = vadd.f32 %v5581, %v5612
        %v5614 = vrot.slane %v5613, 2
        %v5615 = vadd.f32 %v5613, %v5614
        %v5616 = vrot.slane %v5615, 1
        %v5617 = vadd.f32 %v5615, %v5616
        %v5618 = vrot.slane %v5582, 4
        %v5619 = vadd.f32 %v5582, %v5618
        %v5620 = vrot.slane %v5619, 2
        %v5621 = vadd.f32 %v5619, %v5620
        %v5622 = vrot.slane %v5621, 1
        %v5623 = vadd.f32 %v5621, %v5622
        %v5624 = vrot.slane %v5583, 4
        %v5625 = vadd.f32 %v5583, %v5624
        %v5626 = vrot.slane %v5625, 2
        %v5627 = vadd.f32 %v5625, %v5626
        %v5628 = vrot.slane %v5627, 1
        %v5629 = vadd.f32 %v5627, %v5628
        %v5630 = vrot.slane %v5584, 4
        %v5631 = vadd.f32 %v5584, %v5630
        %v5632 = vrot.slane %v5631, 2
        %v5633 = vadd.f32 %v5631, %v5632
        %v5634 = vrot.slane %v5633, 1
        %v5635 = vadd.f32 %v5633, %v5634
        %v5636 = vrot.slane %v5585, 4
        %v5637 = vadd.f32 %v5585, %v5636
        %v5638 = vrot.slane %v5637, 2
        %v5639 = vadd.f32 %v5637, %v5638
        %v5640 = vrot.slane %v5639, 1
        %v5641 = vadd.f32 %v5639, %v5640
        %v5642 = vrot.slane %v5586, 4
        %v5643 = vadd.f32 %v5586, %v5642
        %v5644 = vrot.slane %v5643, 2
        %v5645 = vadd.f32 %v5643, %v5644
        %v5646 = vrot.slane %v5645, 1
        %v5647 = vadd.f32 %v5645, %v5646
        %v5648 = vrot.slane %v5587, 4
        %v5649 = vadd.f32 %v5587, %v5648
        %v5650 = vrot.slane %v5649, 2
        %v5651 = vadd.f32 %v5649, %v5650
        %v5652 = vrot.slane %v5651, 1
        %v5653 = vadd.f32 %v5651, %v5652
        %v5654 = vrot.slane %v5588, 4
        %v5655 = vadd.f32 %v5588, %v5654
        %v5656 = vrot.slane %v5655, 2
        %v5657 = vadd.f32 %v5655, %v5656
        %v5658 = vrot.slane %v5657, 1
        %v5659 = vadd.f32 %v5657, %v5658
        %v5660 = vrot.slane %v5589, 4
        %v5661 = vadd.f32 %v5589, %v5660
        %v5662 = vrot.slane %v5661, 2
        %v5663 = vadd.f32 %v5661, %v5662
        %v5664 = vrot.slane %v5663, 1
        %v5665 = vadd.f32 %v5663, %v5664
        %v5666 = vrot.slane %v5590, 4
        %v5667 = vadd.f32 %v5590, %v5666
        %v5668 = vrot.slane %v5667, 2
        %v5669 = vadd.f32 %v5667, %v5668
        %v5670 = vrot.slane %v5669, 1
        %v5671 = vadd.f32 %v5669, %v5670
        %v5672 = vrot.slane %v5591, 4
        %v5673 = vadd.f32 %v5591, %v5672
        %v5674 = vrot.slane %v5673, 2
        %v5675 = vadd.f32 %v5673, %v5674
        %v5676 = vrot.slane %v5675, 1
        %v5677 = vadd.f32 %v5675, %v5676
        %v5678 = vrot.slane %v5592, 4
        %v5679 = vadd.f32 %v5592, %v5678
        %v5680 = vrot.slane %v5679, 2
        %v5681 = vadd.f32 %v5679, %v5680
        %v5682 = vrot.slane %v5681, 1
        %v5683 = vadd.f32 %v5681, %v5682
        %v5684 = vrot.slane %v5593, 4
        %v5685 = vadd.f32 %v5593, %v5684
        %v5686 = vrot.slane %v5685, 2
        %v5687 = vadd.f32 %v5685, %v5686
        %v5688 = vrot.slane %v5687, 1
        %v5689 = vadd.f32 %v5687, %v5688
        %v5690 = vmul.f32 %v3385, %v4554
        %v5691 = vmul.f32 %v3387, %v4555
        %v5692 = vmul.f32 %v3522, %v4556
        %v5693 = vmul.f32 %v3524, %v4557
        %v5694 = vmul.f32 %v3659, %v4558
        %v5695 = vmul.f32 %v3661, %v4559
        %v5696 = vmul.f32 %v3796, %v4560
        %v5697 = vmul.f32 %v3798, %v4561
        %v5698 = vmul.f32 %v3933, %v4562
        %v5699 = vmul.f32 %v3935, %v4563
        %v5700 = vmul.f32 %v4070, %v4564
        %v5701 = vmul.f32 %v4072, %v4565
        %v5702 = vmul.f32 %v4207, %v4566
        %v5703 = vmul.f32 %v4209, %v4567
        %v5704 = vmul.f32 %v4344, %v4568
        %v5705 = vmul.f32 %v4346, %v4569
        %v5706 = vrot.slane %v5690, 4
        %v5707 = vadd.f32 %v5690, %v5706
        %v5708 = vrot.slane %v5707, 2
        %v5709 = vadd.f32 %v5707, %v5708
        %v5710 = vrot.slane %v5709, 1
        %v5711 = vadd.f32 %v5709, %v5710
        %v5712 = vrot.slane %v5691, 4
        %v5713 = vadd.f32 %v5691, %v5712
        %v5714 = vrot.slane %v5713, 2
        %v5715 = vadd.f32 %v5713, %v5714
        %v5716 = vrot.slane %v5715, 1
        %v5717 = vadd.f32 %v5715, %v5716
        %v5718 = vrot.slane %v5692, 4
        %v5719 = vadd.f32 %v5692, %v5718
        %v5720 = vrot.slane %v5719, 2
        %v5721 = vadd.f32 %v5719, %v5720
        %v5722 = vrot.slane %v5721, 1
        %v5723 = vadd.f32 %v5721, %v5722
        %v5724 = vrot.slane %v5693, 4
        %v5725 = vadd.f32 %v5693, %v5724
        %v5726 = vrot.slane %v5725, 2
        %v5727 = vadd.f32 %v5725, %v5726
        %v5728 = vrot.slane %v5727, 1
        %v5729 = vadd.f32 %v5727, %v5728
        %v5730 = vrot.slane %v5694, 4
        %v5731 = vadd.f32 %v5694, %v5730
        %v5732 = vrot.slane %v5731, 2
        %v5733 = vadd.f32 %v5731, %v5732
        %v5734 = vrot.slane %v5733, 1
        %v5735 = vadd.f32 %v5733, %v5734
        %v5736 = vrot.slane %v5695, 4
        %v5737 = vadd.f32 %v5695, %v5736
        %v5738 = vrot.slane %v5737, 2
        %v5739 = vadd.f32 %v5737, %v5738
        %v5740 = vrot.slane %v5739, 1
        %v5741 = vadd.f32 %v5739, %v5740
        %v5742 = vrot.slane %v5696, 4
        %v5743 = vadd.f32 %v5696, %v5742
        %v5744 = vrot.slane %v5743, 2
        %v5745 = vadd.f32 %v5743, %v5744
        %v5746 = vrot.slane %v5745, 1
        %v5747 = vadd.f32 %v5745, %v5746
        %v5748 = vrot.slane %v5697, 4
        %v5749 = vadd.f32 %v5697, %v5748
        %v5750 = vrot.slane %v5749, 2
        %v5751 = vadd.f32 %v5749, %v5750
        %v5752 = vrot.slane %v5751, 1
        %v5753 = vadd.f32 %v5751, %v5752
        %v5754 = vrot.slane %v5698, 4
        %v5755 = vadd.f32 %v5698, %v5754
        %v5756 = vrot.slane %v5755, 2
        %v5757 = vadd.f32 %v5755, %v5756
        %v5758 = vrot.slane %v5757, 1
        %v5759 = vadd.f32 %v5757, %v5758
        %v5760 = vrot.slane %v5699, 4
        %v5761 = vadd.f32 %v5699, %v5760
        %v5762 = vrot.slane %v5761, 2
        %v5763 = vadd.f32 %v5761, %v5762
        %v5764 = vrot.slane %v5763, 1
        %v5765 = vadd.f32 %v5763, %v5764
        %v5766 = vrot.slane %v5700, 4
        %v5767 = vadd.f32 %v5700, %v5766
        %v5768 = vrot.slane %v5767, 2
        %v5769 = vadd.f32 %v5767, %v5768
        %v5770 = vrot.slane %v5769, 1
        %v5771 = vadd.f32 %v5769, %v5770
        %v5772 = vrot.slane %v5701, 4
        %v5773 = vadd.f32 %v5701, %v5772
        %v5774 = vrot.slane %v5773, 2
        %v5775 = vadd.f32 %v5773, %v5774
        %v5776 = vrot.slane %v5775, 1
        %v5777 = vadd.f32 %v5775, %v5776
        %v5778 = vrot.slane %v5702, 4
        %v5779 = vadd.f32 %v5702, %v5778
        %v5780 = vrot.slane %v5779, 2
        %v5781 = vadd.f32 %v5779, %v5780
        %v5782 = vrot.slane %v5781, 1
        %v5783 = vadd.f32 %v5781, %v5782
        %v5784 = vrot.slane %v5703, 4
        %v5785 = vadd.f32 %v5703, %v5784
        %v5786 = vrot.slane %v5785, 2
        %v5787 = vadd.f32 %v5785, %v5786
        %v5788 = vrot.slane %v5787, 1
        %v5789 = vadd.f32 %v5787, %v5788
        %v5790 = vrot.slane %v5704, 4
        %v5791 = vadd.f32 %v5704, %v5790
        %v5792 = vrot.slane %v5791, 2
        %v5793 = vadd.f32 %v5791, %v5792
        %v5794 = vrot.slane %v5793, 1
        %v5795 = vadd.f32 %v5793, %v5794
        %v5796 = vrot.slane %v5705, 4
        %v5797 = vadd.f32 %v5705, %v5796
        %v5798 = vrot.slane %v5797, 2
        %v5799 = vadd.f32 %v5797, %v5798
        %v5800 = vrot.slane %v5799, 1
        %v5801 = vadd.f32 %v5799, %v5800
        %v5802 = vmul.f32 %v3391, %v4554
        %v5803 = vmul.f32 %v3393, %v4555
        %v5804 = vmul.f32 %v3528, %v4556
        %v5805 = vmul.f32 %v3530, %v4557
        %v5806 = vmul.f32 %v3665, %v4558
        %v5807 = vmul.f32 %v3667, %v4559
        %v5808 = vmul.f32 %v3802, %v4560
        %v5809 = vmul.f32 %v3804, %v4561
        %v5810 = vmul.f32 %v3939, %v4562
        %v5811 = vmul.f32 %v3941, %v4563
        %v5812 = vmul.f32 %v4076, %v4564
        %v5813 = vmul.f32 %v4078, %v4565
        %v5814 = vmul.f32 %v4213, %v4566
        %v5815 = vmul.f32 %v4215, %v4567
        %v5816 = vmul.f32 %v4350, %v4568
        %v5817 = vmul.f32 %v4352, %v4569
        %v5818 = vrot.slane %v5802, 4
        %v5819 = vadd.f32 %v5802, %v5818
        %v5820 = vrot.slane %v5819, 2
        %v5821 = vadd.f32 %v5819, %v5820
        %v5822 = vrot.slane %v5821, 1
        %v5823 = vadd.f32 %v5821, %v5822
        %v5824 = vrot.slane %v5803, 4
        %v5825 = vadd.f32 %v5803, %v5824
        %v5826 = vrot.slane %v5825, 2
        %v5827 = vadd.f32 %v5825, %v5826
        %v5828 = vrot.slane %v5827, 1
        %v5829 = vadd.f32 %v5827, %v5828
        %v5830 = vrot.slane %v5804, 4
        %v5831 = vadd.f32 %v5804, %v5830
        %v5832 = vrot.slane %v5831, 2
        %v5833 = vadd.f32 %v5831, %v5832
        %v5834 = vrot.slane %v5833, 1
        %v5835 = vadd.f32 %v5833, %v5834
        %v5836 = vrot.slane %v5805, 4
        %v5837 = vadd.f32 %v5805, %v5836
        %v5838 = vrot.slane %v5837, 2
        %v5839 = vadd.f32 %v5837, %v5838
        %v5840 = vrot.slane %v5839, 1
        %v5841 = vadd.f32 %v5839, %v5840
        %v5842 = vrot.slane %v5806, 4
        %v5843 = vadd.f32 %v5806, %v5842
        %v5844 = vrot.slane %v5843, 2
        %v5845 = vadd.f32 %v5843, %v5844
        %v5846 = vrot.slane %v5845, 1
        %v5847 = vadd.f32 %v5845, %v5846
        %v5848 = vrot.slane %v5807, 4
        %v5849 = vadd.f32 %v5807, %v5848
        %v5850 = vrot.slane %v5849, 2
        %v5851 = vadd.f32 %v5849, %v5850
        %v5852 = vrot.slane %v5851, 1
        %v5853 = vadd.f32 %v5851, %v5852
        %v5854 = vrot.slane %v5808, 4
        %v5855 = vadd.f32 %v5808, %v5854
        %v5856 = vrot.slane %v5855, 2
        %v5857 = vadd.f32 %v5855, %v5856
        %v5858 = vrot.slane %v5857, 1
        %v5859 = vadd.f32 %v5857, %v5858
        %v5860 = vrot.slane %v5809, 4
        %v5861 = vadd.f32 %v5809, %v5860
        %v5862 = vrot.slane %v5861, 2
        %v5863 = vadd.f32 %v5861, %v5862
        %v5864 = vrot.slane %v5863, 1
        %v5865 = vadd.f32 %v5863, %v5864
        %v5866 = vrot.slane %v5810, 4
        %v5867 = vadd.f32 %v5810, %v5866
        %v5868 = vrot.slane %v5867, 2
        %v5869 = vadd.f32 %v5867, %v5868
        %v5870 = vrot.slane %v5869, 1
        %v5871 = vadd.f32 %v5869, %v5870
        %v5872 = vrot.slane %v5811, 4
        %v5873 = vadd.f32 %v5811, %v5872
        %v5874 = vrot.slane %v5873, 2
        %v5875 = vadd.f32 %v5873, %v5874
        %v5876 = vrot.slane %v5875, 1
        %v5877 = vadd.f32 %v5875, %v5876
        %v5878 = vrot.slane %v5812, 4
        %v5879 = vadd.f32 %v5812, %v5878
        %v5880 = vrot.slane %v5879, 2
        %v5881 = vadd.f32 %v5879, %v5880
        %v5882 = vrot.slane %v5881, 1
        %v5883 = vadd.f32 %v5881, %v5882
        %v5884 = vrot.slane %v5813, 4
        %v5885 = vadd.f32 %v5813, %v5884
        %v5886 = vrot.slane %v5885, 2
        %v5887 = vadd.f32 %v5885, %v5886
        %v5888 = vrot.slane %v5887, 1
        %v5889 = vadd.f32 %v5887, %v5888
        %v5890 = vrot.slane %v5814, 4
        %v5891 = vadd.f32 %v5814, %v5890
        %v5892 = vrot.slane %v5891, 2
        %v5893 = vadd.f32 %v5891, %v5892
        %v5894 = vrot.slane %v5893, 1
        %v5895 = vadd.f32 %v5893, %v5894
        %v5896 = vrot.slane %v5815, 4
        %v5897 = vadd.f32 %v5815, %v5896
        %v5898 = vrot.slane %v5897, 2
        %v5899 = vadd.f32 %v5897, %v5898
        %v5900 = vrot.slane %v5899, 1
        %v5901 = vadd.f32 %v5899, %v5900
        %v5902 = vrot.slane %v5816, 4
        %v5903 = vadd.f32 %v5816, %v5902
        %v5904 = vrot.slane %v5903, 2
        %v5905 = vadd.f32 %v5903, %v5904
        %v5906 = vrot.slane %v5905, 1
        %v5907 = vadd.f32 %v5905, %v5906
        %v5908 = vrot.slane %v5817, 4
        %v5909 = vadd.f32 %v5817, %v5908
        %v5910 = vrot.slane %v5909, 2
        %v5911 = vadd.f32 %v5909, %v5910
        %v5912 = vrot.slane %v5911, 1
        %v5913 = vadd.f32 %v5911, %v5912
        %vm5914 = vcmask 1040384
        %v5915 = vsel %vm5914, %v4591, %v4703
        %v5916 = vsel %vm5914, %v4597, %v4709
        %v5917 = vsel %vm5914, %v4603, %v4715
        %v5918 = vsel %vm5914, %v4609, %v4721
        %v5919 = vsel %vm5914, %v4615, %v4727
        %v5920 = vsel %vm5914, %v4621, %v4733
        %v5921 = vsel %vm5914, %v4627, %v4739
        %v5922 = vsel %vm5914, %v4633, %v4745
        %v5923 = vsel %vm5914, %v4639, %v4751
        %v5924 = vsel %vm5914, %v4645, %v4757
        %v5925 = vsel %vm5914, %v4651, %v4763
        %v5926 = vsel %vm5914, %v4657, %v4769
        %v5927 = vsel %vm5914, %v4663, %v4775
        %v5928 = vsel %vm5914, %v4669, %v4781
        %v5929 = vsel %vm5914, %v4675, %v4787
        %v5930 = vsel %vm5914, %v4681, %v4793
        %vm5931 = vcmask 1041408
        %v5932 = vsel %vm5931, %v5915, %v4815
        %v5933 = vsel %vm5931, %v5916, %v4821
        %v5934 = vsel %vm5931, %v5917, %v4827
        %v5935 = vsel %vm5931, %v5918, %v4833
        %v5936 = vsel %vm5931, %v5919, %v4839
        %v5937 = vsel %vm5931, %v5920, %v4845
        %v5938 = vsel %vm5931, %v5921, %v4851
        %v5939 = vsel %vm5931, %v5922, %v4857
        %v5940 = vsel %vm5931, %v5923, %v4863
        %v5941 = vsel %vm5931, %v5924, %v4869
        %v5942 = vsel %vm5931, %v5925, %v4875
        %v5943 = vsel %vm5931, %v5926, %v4881
        %v5944 = vsel %vm5931, %v5927, %v4887
        %v5945 = vsel %vm5931, %v5928, %v4893
        %v5946 = vsel %vm5931, %v5929, %v4899
        %v5947 = vsel %vm5931, %v5930, %v4905
        %vm5948 = vcmask 1042432
        %v5949 = vsel %vm5948, %v5932, %v4927
        %v5950 = vsel %vm5948, %v5933, %v4933
        %v5951 = vsel %vm5948, %v5934, %v4939
        %v5952 = vsel %vm5948, %v5935, %v4945
        %v5953 = vsel %vm5948, %v5936, %v4951
        %v5954 = vsel %vm5948, %v5937, %v4957
        %v5955 = vsel %vm5948, %v5938, %v4963
        %v5956 = vsel %vm5948, %v5939, %v4969
        %v5957 = vsel %vm5948, %v5940, %v4975
        %v5958 = vsel %vm5948, %v5941, %v4981
        %v5959 = vsel %vm5948, %v5942, %v4987
        %v5960 = vsel %vm5948, %v5943, %v4993
        %v5961 = vsel %vm5948, %v5944, %v4999
        %v5962 = vsel %vm5948, %v5945, %v5005
        %v5963 = vsel %vm5948, %v5946, %v5011
        %v5964 = vsel %vm5948, %v5947, %v5017
        %vm5965 = vcmask 1043456
        %v5966 = vsel %vm5965, %v5949, %v5039
        %v5967 = vsel %vm5965, %v5950, %v5045
        %v5968 = vsel %vm5965, %v5951, %v5051
        %v5969 = vsel %vm5965, %v5952, %v5057
        %v5970 = vsel %vm5965, %v5953, %v5063
        %v5971 = vsel %vm5965, %v5954, %v5069
        %v5972 = vsel %vm5965, %v5955, %v5075
        %v5973 = vsel %vm5965, %v5956, %v5081
        %v5974 = vsel %vm5965, %v5957, %v5087
        %v5975 = vsel %vm5965, %v5958, %v5093
        %v5976 = vsel %vm5965, %v5959, %v5099
        %v5977 = vsel %vm5965, %v5960, %v5105
        %v5978 = vsel %vm5965, %v5961, %v5111
        %v5979 = vsel %vm5965, %v5962, %v5117
        %v5980 = vsel %vm5965, %v5963, %v5123
        %v5981 = vsel %vm5965, %v5964, %v5129
        %vm5982 = vcmask 1044480
        %v5983 = vsel %vm5982, %v5966, %v5151
        %v5984 = vsel %vm5982, %v5967, %v5157
        %v5985 = vsel %vm5982, %v5968, %v5163
        %v5986 = vsel %vm5982, %v5969, %v5169
        %v5987 = vsel %vm5982, %v5970, %v5175
        %v5988 = vsel %vm5982, %v5971, %v5181
        %v5989 = vsel %vm5982, %v5972, %v5187
        %v5990 = vsel %vm5982, %v5973, %v5193
        %v5991 = vsel %vm5982, %v5974, %v5199
        %v5992 = vsel %vm5982, %v5975, %v5205
        %v5993 = vsel %vm5982, %v5976, %v5211
        %v5994 = vsel %vm5982, %v5977, %v5217
        %v5995 = vsel %vm5982, %v5978, %v5223
        %v5996 = vsel %vm5982, %v5979, %v5229
        %v5997 = vsel %vm5982, %v5980, %v5235
        %v5998 = vsel %vm5982, %v5981, %v5241
        %vm5999 = vcmask 1045504
        %v6000 = vsel %vm5999, %v5983, %v5263
        %v6001 = vsel %vm5999, %v5984, %v5269
        %v6002 = vsel %vm5999, %v5985, %v5275
        %v6003 = vsel %vm5999, %v5986, %v5281
        %v6004 = vsel %vm5999, %v5987, %v5287
        %v6005 = vsel %vm5999, %v5988, %v5293
        %v6006 = vsel %vm5999, %v5989, %v5299
        %v6007 = vsel %vm5999, %v5990, %v5305
        %v6008 = vsel %vm5999, %v5991, %v5311
        %v6009 = vsel %vm5999, %v5992, %v5317
        %v6010 = vsel %vm5999, %v5993, %v5323
        %v6011 = vsel %vm5999, %v5994, %v5329
        %v6012 = vsel %vm5999, %v5995, %v5335
        %v6013 = vsel %vm5999, %v5996, %v5341
        %v6014 = vsel %vm5999, %v5997, %v5347
        %v6015 = vsel %vm5999, %v5998, %v5353
        %vm6016 = vcmask 1046528
        %v6017 = vsel %vm6016, %v6000, %v5375
        %v6018 = vsel %vm6016, %v6001, %v5381
        %v6019 = vsel %vm6016, %v6002, %v5387
        %v6020 = vsel %vm6016, %v6003, %v5393
        %v6021 = vsel %vm6016, %v6004, %v5399
        %v6022 = vsel %vm6016, %v6005, %v5405
        %v6023 = vsel %vm6016, %v6006, %v5411
        %v6024 = vsel %vm6016, %v6007, %v5417
        %v6025 = vsel %vm6016, %v6008, %v5423
        %v6026 = vsel %vm6016, %v6009, %v5429
        %v6027 = vsel %vm6016, %v6010, %v5435
        %v6028 = vsel %vm6016, %v6011, %v5441
        %v6029 = vsel %vm6016, %v6012, %v5447
        %v6030 = vsel %vm6016, %v6013, %v5453
        %v6031 = vsel %vm6016, %v6014, %v5459
        %v6032 = vsel %vm6016, %v6015, %v5465
        %v6033 = vsel %vm5914, %v5487, %v5599
        %v6034 = vsel %vm5914, %v5493, %v5605
        %v6035 = vsel %vm5914, %v5499, %v5611
        %v6036 = vsel %vm5914, %v5505, %v5617
        %v6037 = vsel %vm5914, %v5511, %v5623
        %v6038 = vsel %vm5914, %v5517, %v5629
        %v6039 = vsel %vm5914, %v5523, %v5635
        %v6040 = vsel %vm5914, %v5529, %v5641
        %v6041 = vsel %vm5914, %v5535, %v5647
        %v6042 = vsel %vm5914, %v5541, %v5653
        %v6043 = vsel %vm5914, %v5547, %v5659
        %v6044 = vsel %vm5914, %v5553, %v5665
        %v6045 = vsel %vm5914, %v5559, %v5671
        %v6046 = vsel %vm5914, %v5565, %v5677
        %v6047 = vsel %vm5914, %v5571, %v5683
        %v6048 = vsel %vm5914, %v5577, %v5689
        %v6049 = vsel %vm5931, %v6033, %v5711
        %v6050 = vsel %vm5931, %v6034, %v5717
        %v6051 = vsel %vm5931, %v6035, %v5723
        %v6052 = vsel %vm5931, %v6036, %v5729
        %v6053 = vsel %vm5931, %v6037, %v5735
        %v6054 = vsel %vm5931, %v6038, %v5741
        %v6055 = vsel %vm5931, %v6039, %v5747
        %v6056 = vsel %vm5931, %v6040, %v5753
        %v6057 = vsel %vm5931, %v6041, %v5759
        %v6058 = vsel %vm5931, %v6042, %v5765
        %v6059 = vsel %vm5931, %v6043, %v5771
        %v6060 = vsel %vm5931, %v6044, %v5777
        %v6061 = vsel %vm5931, %v6045, %v5783
        %v6062 = vsel %vm5931, %v6046, %v5789
        %v6063 = vsel %vm5931, %v6047, %v5795
        %v6064 = vsel %vm5931, %v6048, %v5801
        %v6065 = vsel %vm5948, %v6049, %v5823
        %v6066 = vsel %vm5948, %v6050, %v5829
        %v6067 = vsel %vm5948, %v6051, %v5835
        %v6068 = vsel %vm5948, %v6052, %v5841
        %v6069 = vsel %vm5948, %v6053, %v5847
        %v6070 = vsel %vm5948, %v6054, %v5853
        %v6071 = vsel %vm5948, %v6055, %v5859
        %v6072 = vsel %vm5948, %v6056, %v5865
        %v6073 = vsel %vm5948, %v6057, %v5871
        %v6074 = vsel %vm5948, %v6058, %v5877
        %v6075 = vsel %vm5948, %v6059, %v5883
        %v6076 = vsel %vm5948, %v6060, %v5889
        %v6077 = vsel %vm5948, %v6061, %v5895
        %v6078 = vsel %vm5948, %v6062, %v5901
        %v6079 = vsel %vm5948, %v6063, %v5907
        %v6080 = vsel %vm5948, %v6064, %v5913
        %6081 = vst [vmem:[%s210] sm:$0xff] %v6017
        %6082 = vst [vmem:[%s210 + $0x8] sm:$0xff] %v6018
        %6083 = vst [vmem:[%s210 + $0x10] sm:$0xff] %v6019
        %6084 = vst [vmem:[%s210 + $0x18] sm:$0xff] %v6020
        %6085 = vst [vmem:[%s210 + $0x20] sm:$0xff] %v6021
        %6086 = vst [vmem:[%s210 + $0x28] sm:$0xff] %v6022
        %6087 = vst [vmem:[%s210 + $0x30] sm:$0xff] %v6023
        %6088 = vst [vmem:[%s210 + $0x38] sm:$0xff] %v6024
        %6089 = vst [vmem:[%s210 + $0x40] sm:$0xff] %v6025
        %6090 = vst [vmem:[%s210 + $0x48] sm:$0xff] %v6026
        %6091 = vst [vmem:[%s210 + $0x50] sm:$0xff] %v6027
        %6092 = vst [vmem:[%s210 + $0x58] sm:$0xff] %v6028
        %6093 = vst [vmem:[%s210 + $0x60] sm:$0xff] %v6029
        %6094 = vst [vmem:[%s210 + $0x68] sm:$0xff] %v6030
        %6095 = vst [vmem:[%s210 + $0x70] sm:$0xff] %v6031
        %6096 = vst [vmem:[%s210 + $0x78] sm:$0xff] %v6032
        %6097 = vst [vmem:[%s210 + $0x80] sm:$0xf] %v6065
        %6098 = vst [vmem:[%s210 + $0x88] sm:$0xf] %v6066
        %6099 = vst [vmem:[%s210 + $0x90] sm:$0xf] %v6067
        %6100 = vst [vmem:[%s210 + $0x98] sm:$0xf] %v6068
        %6101 = vst [vmem:[%s210 + $0xa0] sm:$0xf] %v6069
        %6102 = vst [vmem:[%s210 + $0xa8] sm:$0xf] %v6070
        %6103 = vst [vmem:[%s210 + $0xb0] sm:$0xf] %v6071
        %6104 = vst [vmem:[%s210 + $0xb8] sm:$0xf] %v6072
        %6105 = vst [vmem:[%s210 + $0xc0] sm:$0xf] %v6073
        %6106 = vst [vmem:[%s210 + $0xc8] sm:$0xf] %v6074
        %6107 = vst [vmem:[%s210 + $0xd0] sm:$0xf] %v6075
        %6108 = vst [vmem:[%s210 + $0xd8] sm:$0xf] %v6076
        %6109 = vst [vmem:[%s210 + $0xe0] sm:$0xf] %v6077
        %6110 = vst [vmem:[%s210 + $0xe8] sm:$0xf] %v6078
        %6111 = vst [vmem:[%s210 + $0xf0] sm:$0xf] %v6079
        %6112 = vst [vmem:[%s210 + $0xf8] sm:$0xf] %v6080
        %v6121 = vlaneseq
        %v6122 = vshrl.u32 %v6121, 7
        %v6123 = vsub.s32 0, %v6122
        %v6124 = vrot.slane %v221, %v6123
        %v6125 = vlaneseq
        %v6126 = vshrl.u32 %v6125, 7
        %v6127 = vsub.s32 4, %v6126
        %v6128 = vrot.slane %v221, %v6127
        %v6129 = vlaneseq
        %v6130 = vshrl.u32 %v6129, 7
        %v6131 = vsub.s32 0, %v6130
        %v6132 = vrot.slane %v222, %v6131
        %v6133 = vlaneseq
        %v6134 = vshrl.u32 %v6133, 7
        %v6135 = vsub.s32 4, %v6134
        %v6136 = vrot.slane %v222, %v6135
        %v6137 = vlaneseq
        %v6138 = vshrl.u32 %v6137, 7
        %v6139 = vsub.s32 0, %v6138
        %v6140 = vrot.slane %v223, %v6139
        %v6141 = vlaneseq
        %v6142 = vshrl.u32 %v6141, 7
        %v6143 = vsub.s32 4, %v6142
        %v6144 = vrot.slane %v223, %v6143
        %v6145 = vlaneseq
        %v6146 = vshrl.u32 %v6145, 7
        %v6147 = vsub.s32 0, %v6146
        %v6148 = vrot.slane %v224, %v6147
        %v6149 = vlaneseq
        %v6150 = vshrl.u32 %v6149, 7
        %v6151 = vsub.s32 4, %v6150
        %v6152 = vrot.slane %v224, %v6151
        %v6153 = vlaneseq
        %v6154 = vshrl.u32 %v6153, 7
        %v6155 = vsub.s32 0, %v6154
        %v6156 = vrot.slane %v225, %v6155
        %v6157 = vlaneseq
        %v6158 = vshrl.u32 %v6157, 7
        %v6159 = vsub.s32 4, %v6158
        %v6160 = vrot.slane %v225, %v6159
        %v6161 = vlaneseq
        %v6162 = vshrl.u32 %v6161, 7
        %v6163 = vsub.s32 0, %v6162
        %v6164 = vrot.slane %v226, %v6163
        %v6165 = vlaneseq
        %v6166 = vshrl.u32 %v6165, 7
        %v6167 = vsub.s32 4, %v6166
        %v6168 = vrot.slane %v226, %v6167
        %v6169 = vlaneseq
        %v6170 = vshrl.u32 %v6169, 7
        %v6171 = vsub.s32 0, %v6170
        %v6172 = vrot.slane %v227, %v6171
        %v6173 = vlaneseq
        %v6174 = vshrl.u32 %v6173, 7
        %v6175 = vsub.s32 4, %v6174
        %v6176 = vrot.slane %v227, %v6175
        %v6177 = vlaneseq
        %v6178 = vshrl.u32 %v6177, 7
        %v6179 = vsub.s32 0, %v6178
        %v6180 = vrot.slane %v228, %v6179
        %v6181 = vlaneseq
        %v6182 = vshrl.u32 %v6181, 7
        %v6183 = vsub.s32 4, %v6182
        %v6184 = vrot.slane %v228, %v6183
        %v6201 = vmul.f32 %v4591, %v6124
        %v6202 = vmul.f32 %v4597, %v6128
        %v6203 = vmul.f32 %v4603, %v6132
        %v6204 = vmul.f32 %v4609, %v6136
        %v6205 = vmul.f32 %v4615, %v6140
        %v6206 = vmul.f32 %v4621, %v6144
        %v6207 = vmul.f32 %v4627, %v6148
        %v6208 = vmul.f32 %v4633, %v6152
        %v6209 = vmul.f32 %v4639, %v6156
        %v6210 = vmul.f32 %v4645, %v6160
        %v6211 = vmul.f32 %v4651, %v6164
        %v6212 = vmul.f32 %v4657, %v6168
        %v6213 = vmul.f32 %v4663, %v6172
        %v6214 = vmul.f32 %v4669, %v6176
        %v6215 = vmul.f32 %v4675, %v6180
        %v6216 = vmul.f32 %v4681, %v6184
        %v6217 = vlaneseq
        %v6218 = vshrl.u32 %v6217, 7
        %v6219 = vsub.s32 1, %v6218
        %v6220 = vrot.slane %v221, %v6219
        %v6221 = vlaneseq
        %v6222 = vshrl.u32 %v6221, 7
        %v6223 = vsub.s32 5, %v6222
        %v6224 = vrot.slane %v221, %v6223
        %v6225 = vlaneseq
        %v6226 = vshrl.u32 %v6225, 7
        %v6227 = vsub.s32 1, %v6226
        %v6228 = vrot.slane %v222, %v6227
        %v6229 = vlaneseq
        %v6230 = vshrl.u32 %v6229, 7
        %v6231 = vsub.s32 5, %v6230
        %v6232 = vrot.slane %v222, %v6231
        %v6233 = vlaneseq
        %v6234 = vshrl.u32 %v6233, 7
        %v6235 = vsub.s32 1, %v6234
        %v6236 = vrot.slane %v223, %v6235
        %v6237 = vlaneseq
        %v6238 = vshrl.u32 %v6237, 7
        %v6239 = vsub.s32 5, %v6238
        %v6240 = vrot.slane %v223, %v6239
        %v6241 = vlaneseq
        %v6242 = vshrl.u32 %v6241, 7
        %v6243 = vsub.s32 1, %v6242
        %v6244 = vrot.slane %v224, %v6243
        %v6245 = vlaneseq
        %v6246 = vshrl.u32 %v6245, 7
        %v6247 = vsub.s32 5, %v6246
        %v6248 = vrot.slane %v224, %v6247
        %v6249 = vlaneseq
        %v6250 = vshrl.u32 %v6249, 7
        %v6251 = vsub.s32 1, %v6250
        %v6252 = vrot.slane %v225, %v6251
        %v6253 = vlaneseq
        %v6254 = vshrl.u32 %v6253, 7
        %v6255 = vsub.s32 5, %v6254
        %v6256 = vrot.slane %v225, %v6255
        %v6257 = vlaneseq
        %v6258 = vshrl.u32 %v6257, 7
        %v6259 = vsub.s32 1, %v6258
        %v6260 = vrot.slane %v226, %v6259
        %v6261 = vlaneseq
        %v6262 = vshrl.u32 %v6261, 7
        %v6263 = vsub.s32 5, %v6262
        %v6264 = vrot.slane %v226, %v6263
        %v6265 = vlaneseq
        %v6266 = vshrl.u32 %v6265, 7
        %v6267 = vsub.s32 1, %v6266
        %v6268 = vrot.slane %v227, %v6267
        %v6269 = vlaneseq
        %v6270 = vshrl.u32 %v6269, 7
        %v6271 = vsub.s32 5, %v6270
        %v6272 = vrot.slane %v227, %v6271
        %v6273 = vlaneseq
        %v6274 = vshrl.u32 %v6273, 7
        %v6275 = vsub.s32 1, %v6274
        %v6276 = vrot.slane %v228, %v6275
        %v6277 = vlaneseq
        %v6278 = vshrl.u32 %v6277, 7
        %v6279 = vsub.s32 5, %v6278
        %v6280 = vrot.slane %v228, %v6279
        %v6297 = vmul.f32 %v4703, %v6220
        %v6298 = vmul.f32 %v4709, %v6224
        %v6299 = vmul.f32 %v4715, %v6228
        %v6300 = vmul.f32 %v4721, %v6232
        %v6301 = vmul.f32 %v4727, %v6236
        %v6302 = vmul.f32 %v4733, %v6240
        %v6303 = vmul.f32 %v4739, %v6244
        %v6304 = vmul.f32 %v4745, %v6248
        %v6305 = vmul.f32 %v4751, %v6252
        %v6306 = vmul.f32 %v4757, %v6256
        %v6307 = vmul.f32 %v4763, %v6260
        %v6308 = vmul.f32 %v4769, %v6264
        %v6309 = vmul.f32 %v4775, %v6268
        %v6310 = vmul.f32 %v4781, %v6272
        %v6311 = vmul.f32 %v4787, %v6276
        %v6312 = vmul.f32 %v4793, %v6280
        %v6313 = vadd.f32 %v6201, %v6297
        %v6314 = vadd.f32 %v6202, %v6298
        %v6315 = vadd.f32 %v6203, %v6299
        %v6316 = vadd.f32 %v6204, %v6300
        %v6317 = vadd.f32 %v6205, %v6301
        %v6318 = vadd.f32 %v6206, %v6302
        %v6319 = vadd.f32 %v6207, %v6303
        %v6320 = vadd.f32 %v6208, %v6304
        %v6321 = vadd.f32 %v6209, %v6305
        %v6322 = vadd.f32 %v6210, %v6306
        %v6323 = vadd.f32 %v6211, %v6307
        %v6324 = vadd.f32 %v6212, %v6308
        %v6325 = vadd.f32 %v6213, %v6309
        %v6326 = vadd.f32 %v6214, %v6310
        %v6327 = vadd.f32 %v6215, %v6311
        %v6328 = vadd.f32 %v6216, %v6312
        %v6329 = vlaneseq
        %v6330 = vshrl.u32 %v6329, 7
        %v6331 = vsub.s32 2, %v6330
        %v6332 = vrot.slane %v221, %v6331
        %v6333 = vlaneseq
        %v6334 = vshrl.u32 %v6333, 7
        %v6335 = vsub.s32 6, %v6334
        %v6336 = vrot.slane %v221, %v6335
        %v6337 = vlaneseq
        %v6338 = vshrl.u32 %v6337, 7
        %v6339 = vsub.s32 2, %v6338
        %v6340 = vrot.slane %v222, %v6339
        %v6341 = vlaneseq
        %v6342 = vshrl.u32 %v6341, 7
        %v6343 = vsub.s32 6, %v6342
        %v6344 = vrot.slane %v222, %v6343
        %v6345 = vlaneseq
        %v6346 = vshrl.u32 %v6345, 7
        %v6347 = vsub.s32 2, %v6346
        %v6348 = vrot.slane %v223, %v6347
        %v6349 = vlaneseq
        %v6350 = vshrl.u32 %v6349, 7
        %v6351 = vsub.s32 6, %v6350
        %v6352 = vrot.slane %v223, %v6351
        %v6353 = vlaneseq
        %v6354 = vshrl.u32 %v6353, 7
        %v6355 = vsub.s32 2, %v6354
        %v6356 = vrot.slane %v224, %v6355
        %v6357 = vlaneseq
        %v6358 = vshrl.u32 %v6357, 7
        %v6359 = vsub.s32 6, %v6358
        %v6360 = vrot.slane %v224, %v6359
        %v6361 = vlaneseq
        %v6362 = vshrl.u32 %v6361, 7
        %v6363 = vsub.s32 2, %v6362
        %v6364 = vrot.slane %v225, %v6363
        %v6365 = vlaneseq
        %v6366 = vshrl.u32 %v6365, 7
        %v6367 = vsub.s32 6, %v6366
        %v6368 = vrot.slane %v225, %v6367
        %v6369 = vlaneseq
        %v6370 = vshrl.u32 %v6369, 7
        %v6371 = vsub.s32 2, %v6370
        %v6372 = vrot.slane %v226, %v6371
        %v6373 = vlaneseq
        %v6374 = vshrl.u32 %v6373, 7
        %v6375 = vsub.s32 6, %v6374
        %v6376 = vrot.slane %v226, %v6375
        %v6377 = vlaneseq
        %v6378 = vshrl.u32 %v6377, 7
        %v6379 = vsub.s32 2, %v6378
        %v6380 = vrot.slane %v227, %v6379
        %v6381 = vlaneseq
        %v6382 = vshrl.u32 %v6381, 7
        %v6383 = vsub.s32 6, %v6382
        %v6384 = vrot.slane %v227, %v6383
        %v6385 = vlaneseq
        %v6386 = vshrl.u32 %v6385, 7
        %v6387 = vsub.s32 2, %v6386
        %v6388 = vrot.slane %v228, %v6387
        %v6389 = vlaneseq
        %v6390 = vshrl.u32 %v6389, 7
        %v6391 = vsub.s32 6, %v6390
        %v6392 = vrot.slane %v228, %v6391
        %v6409 = vmul.f32 %v4815, %v6332
        %v6410 = vmul.f32 %v4821, %v6336
        %v6411 = vmul.f32 %v4827, %v6340
        %v6412 = vmul.f32 %v4833, %v6344
        %v6413 = vmul.f32 %v4839, %v6348
        %v6414 = vmul.f32 %v4845, %v6352
        %v6415 = vmul.f32 %v4851, %v6356
        %v6416 = vmul.f32 %v4857, %v6360
        %v6417 = vmul.f32 %v4863, %v6364
        %v6418 = vmul.f32 %v4869, %v6368
        %v6419 = vmul.f32 %v4875, %v6372
        %v6420 = vmul.f32 %v4881, %v6376
        %v6421 = vmul.f32 %v4887, %v6380
        %v6422 = vmul.f32 %v4893, %v6384
        %v6423 = vmul.f32 %v4899, %v6388
        %v6424 = vmul.f32 %v4905, %v6392
        %v6425 = vadd.f32 %v6313, %v6409
        %v6426 = vadd.f32 %v6314, %v6410
        %v6427 = vadd.f32 %v6315, %v6411
        %v6428 = vadd.f32 %v6316, %v6412
        %v6429 = vadd.f32 %v6317, %v6413
        %v6430 = vadd.f32 %v6318, %v6414
        %v6431 = vadd.f32 %v6319, %v6415
        %v6432 = vadd.f32 %v6320, %v6416
        %v6433 = vadd.f32 %v6321, %v6417
        %v6434 = vadd.f32 %v6322, %v6418
        %v6435 = vadd.f32 %v6323, %v6419
        %v6436 = vadd.f32 %v6324, %v6420
        %v6437 = vadd.f32 %v6325, %v6421
        %v6438 = vadd.f32 %v6326, %v6422
        %v6439 = vadd.f32 %v6327, %v6423
        %v6440 = vadd.f32 %v6328, %v6424
        %v6441 = vadd.f32 %v6425, %v4927
        %v6442 = vadd.f32 %v6426, %v4933
        %v6443 = vadd.f32 %v6427, %v4939
        %v6444 = vadd.f32 %v6428, %v4945
        %v6445 = vadd.f32 %v6429, %v4951
        %v6446 = vadd.f32 %v6430, %v4957
        %v6447 = vadd.f32 %v6431, %v4963
        %v6448 = vadd.f32 %v6432, %v4969
        %v6449 = vadd.f32 %v6433, %v4975
        %v6450 = vadd.f32 %v6434, %v4981
        %v6451 = vadd.f32 %v6435, %v4987
        %v6452 = vadd.f32 %v6436, %v4993
        %v6453 = vadd.f32 %v6437, %v4999
        %v6454 = vadd.f32 %v6438, %v5005
        %v6455 = vadd.f32 %v6439, %v5011
        %v6456 = vadd.f32 %v6440, %v5017
        %v6457 = vmul.f32 %v5039, %v6124
        %v6458 = vmul.f32 %v5045, %v6128
        %v6459 = vmul.f32 %v5051, %v6132
        %v6460 = vmul.f32 %v5057, %v6136
        %v6461 = vmul.f32 %v5063, %v6140
        %v6462 = vmul.f32 %v5069, %v6144
        %v6463 = vmul.f32 %v5075, %v6148
        %v6464 = vmul.f32 %v5081, %v6152
        %v6465 = vmul.f32 %v5087, %v6156
        %v6466 = vmul.f32 %v5093, %v6160
        %v6467 = vmul.f32 %v5099, %v6164
        %v6468 = vmul.f32 %v5105, %v6168
        %v6469 = vmul.f32 %v5111, %v6172
        %v6470 = vmul.f32 %v5117, %v6176
        %v6471 = vmul.f32 %v5123, %v6180
        %v6472 = vmul.f32 %v5129, %v6184
        %v6473 = vmul.f32 %v5151, %v6220
        %v6474 = vmul.f32 %v5157, %v6224
        %v6475 = vmul.f32 %v5163, %v6228
        %v6476 = vmul.f32 %v5169, %v6232
        %v6477 = vmul.f32 %v5175, %v6236
        %v6478 = vmul.f32 %v5181, %v6240
        %v6479 = vmul.f32 %v5187, %v6244
        %v6480 = vmul.f32 %v5193, %v6248
        %v6481 = vmul.f32 %v5199, %v6252
        %v6482 = vmul.f32 %v5205, %v6256
        %v6483 = vmul.f32 %v5211, %v6260
        %v6484 = vmul.f32 %v5217, %v6264
        %v6485 = vmul.f32 %v5223, %v6268
        %v6486 = vmul.f32 %v5229, %v6272
        %v6487 = vmul.f32 %v5235, %v6276
        %v6488 = vmul.f32 %v5241, %v6280
        %v6489 = vadd.f32 %v6457, %v6473
        %v6490 = vadd.f32 %v6458, %v6474
        %v6491 = vadd.f32 %v6459, %v6475
        %v6492 = vadd.f32 %v6460, %v6476
        %v6493 = vadd.f32 %v6461, %v6477
        %v6494 = vadd.f32 %v6462, %v6478
        %v6495 = vadd.f32 %v6463, %v6479
        %v6496 = vadd.f32 %v6464, %v6480
        %v6497 = vadd.f32 %v6465, %v6481
        %v6498 = vadd.f32 %v6466, %v6482
        %v6499 = vadd.f32 %v6467, %v6483
        %v6500 = vadd.f32 %v6468, %v6484
        %v6501 = vadd.f32 %v6469, %v6485
        %v6502 = vadd.f32 %v6470, %v6486
        %v6503 = vadd.f32 %v6471, %v6487
        %v6504 = vadd.f32 %v6472, %v6488
        %v6505 = vmul.f32 %v5263, %v6332
        %v6506 = vmul.f32 %v5269, %v6336
        %v6507 = vmul.f32 %v5275, %v6340
        %v6508 = vmul.f32 %v5281, %v6344
        %v6509 = vmul.f32 %v5287, %v6348
        %v6510 = vmul.f32 %v5293, %v6352
        %v6511 = vmul.f32 %v5299, %v6356
        %v6512 = vmul.f32 %v5305, %v6360
        %v6513 = vmul.f32 %v5311, %v6364
        %v6514 = vmul.f32 %v5317, %v6368
        %v6515 = vmul.f32 %v5323, %v6372
        %v6516 = vmul.f32 %v5329, %v6376
        %v6517 = vmul.f32 %v5335, %v6380
        %v6518 = vmul.f32 %v5341, %v6384
        %v6519 = vmul.f32 %v5347, %v6388
        %v6520 = vmul.f32 %v5353, %v6392
        %v6521 = vadd.f32 %v6489, %v6505
        %v6522 = vadd.f32 %v6490, %v6506
        %v6523 = vadd.f32 %v6491, %v6507
        %v6524 = vadd.f32 %v6492, %v6508
        %v6525 = vadd.f32 %v6493, %v6509
        %v6526 = vadd.f32 %v6494, %v6510
        %v6527 = vadd.f32 %v6495, %v6511
        %v6528 = vadd.f32 %v6496, %v6512
        %v6529 = vadd.f32 %v6497, %v6513
        %v6530 = vadd.f32 %v6498, %v6514
        %v6531 = vadd.f32 %v6499, %v6515
        %v6532 = vadd.f32 %v6500, %v6516
        %v6533 = vadd.f32 %v6501, %v6517
        %v6534 = vadd.f32 %v6502, %v6518
        %v6535 = vadd.f32 %v6503, %v6519
        %v6536 = vadd.f32 %v6504, %v6520
        %v6537 = vadd.f32 %v6521, %v5375
        %v6538 = vadd.f32 %v6522, %v5381
        %v6539 = vadd.f32 %v6523, %v5387
        %v6540 = vadd.f32 %v6524, %v5393
        %v6541 = vadd.f32 %v6525, %v5399
        %v6542 = vadd.f32 %v6526, %v5405
        %v6543 = vadd.f32 %v6527, %v5411
        %v6544 = vadd.f32 %v6528, %v5417
        %v6545 = vadd.f32 %v6529, %v5423
        %v6546 = vadd.f32 %v6530, %v5429
        %v6547 = vadd.f32 %v6531, %v5435
        %v6548 = vadd.f32 %v6532, %v5441
        %v6549 = vadd.f32 %v6533, %v5447
        %v6550 = vadd.f32 %v6534, %v5453
        %v6551 = vadd.f32 %v6535, %v5459
        %v6552 = vadd.f32 %v6536, %v5465
        %v6553 = vmul.f32 %v5487, %v6124
        %v6554 = vmul.f32 %v5493, %v6128
        %v6555 = vmul.f32 %v5499, %v6132
        %v6556 = vmul.f32 %v5505, %v6136
        %v6557 = vmul.f32 %v5511, %v6140
        %v6558 = vmul.f32 %v5517, %v6144
        %v6559 = vmul.f32 %v5523, %v6148
        %v6560 = vmul.f32 %v5529, %v6152
        %v6561 = vmul.f32 %v5535, %v6156
        %v6562 = vmul.f32 %v5541, %v6160
        %v6563 = vmul.f32 %v5547, %v6164
        %v6564 = vmul.f32 %v5553, %v6168
        %v6565 = vmul.f32 %v5559, %v6172
        %v6566 = vmul.f32 %v5565, %v6176
        %v6567 = vmul.f32 %v5571, %v6180
        %v6568 = vmul.f32 %v5577, %v6184
        %v6569 = vmul.f32 %v5599, %v6220
        %v6570 = vmul.f32 %v5605, %v6224
        %v6571 = vmul.f32 %v5611, %v6228
        %v6572 = vmul.f32 %v5617, %v6232
        %v6573 = vmul.f32 %v5623, %v6236
        %v6574 = vmul.f32 %v5629, %v6240
        %v6575 = vmul.f32 %v5635, %v6244
        %v6576 = vmul.f32 %v5641, %v6248
        %v6577 = vmul.f32 %v5647, %v6252
        %v6578 = vmul.f32 %v5653, %v6256
        %v6579 = vmul.f32 %v5659, %v6260
        %v6580 = vmul.f32 %v5665, %v6264
        %v6581 = vmul.f32 %v5671, %v6268
        %v6582 = vmul.f32 %v5677, %v6272
        %v6583 = vmul.f32 %v5683, %v6276
        %v6584 = vmul.f32 %v5689, %v6280
        %v6585 = vadd.f32 %v6553, %v6569
        %v6586 = vadd.f32 %v6554, %v6570
        %v6587 = vadd.f32 %v6555, %v6571
        %v6588 = vadd.f32 %v6556, %v6572
        %v6589 = vadd.f32 %v6557, %v6573
        %v6590 = vadd.f32 %v6558, %v6574
        %v6591 = vadd.f32 %v6559, %v6575
        %v6592 = vadd.f32 %v6560, %v6576
        %v6593 = vadd.f32 %v6561, %v6577
        %v6594 = vadd.f32 %v6562, %v6578
        %v6595 = vadd.f32 %v6563, %v6579
        %v6596 = vadd.f32 %v6564, %v6580
        %v6597 = vadd.f32 %v6565, %v6581
        %v6598 = vadd.f32 %v6566, %v6582
        %v6599 = vadd.f32 %v6567, %v6583
        %v6600 = vadd.f32 %v6568, %v6584
        %v6601 = vmul.f32 %v5711, %v6332
        %v6602 = vmul.f32 %v5717, %v6336
        %v6603 = vmul.f32 %v5723, %v6340
        %v6604 = vmul.f32 %v5729, %v6344
        %v6605 = vmul.f32 %v5735, %v6348
        %v6606 = vmul.f32 %v5741, %v6352
        %v6607 = vmul.f32 %v5747, %v6356
        %v6608 = vmul.f32 %v5753, %v6360
        %v6609 = vmul.f32 %v5759, %v6364
        %v6610 = vmul.f32 %v5765, %v6368
        %v6611 = vmul.f32 %v5771, %v6372
        %v6612 = vmul.f32 %v5777, %v6376
        %v6613 = vmul.f32 %v5783, %v6380
        %v6614 = vmul.f32 %v5789, %v6384
        %v6615 = vmul.f32 %v5795, %v6388
        %v6616 = vmul.f32 %v5801, %v6392
        %v6617 = vadd.f32 %v6585, %v6601
        %v6618 = vadd.f32 %v6586, %v6602
        %v6619 = vadd.f32 %v6587, %v6603
        %v6620 = vadd.f32 %v6588, %v6604
        %v6621 = vadd.f32 %v6589, %v6605
        %v6622 = vadd.f32 %v6590, %v6606
        %v6623 = vadd.f32 %v6591, %v6607
        %v6624 = vadd.f32 %v6592, %v6608
        %v6625 = vadd.f32 %v6593, %v6609
        %v6626 = vadd.f32 %v6594, %v6610
        %v6627 = vadd.f32 %v6595, %v6611
        %v6628 = vadd.f32 %v6596, %v6612
        %v6629 = vadd.f32 %v6597, %v6613
        %v6630 = vadd.f32 %v6598, %v6614
        %v6631 = vadd.f32 %v6599, %v6615
        %v6632 = vadd.f32 %v6600, %v6616
        %v6633 = vadd.f32 %v6617, %v5823
        %v6634 = vadd.f32 %v6618, %v5829
        %v6635 = vadd.f32 %v6619, %v5835
        %v6636 = vadd.f32 %v6620, %v5841
        %v6637 = vadd.f32 %v6621, %v5847
        %v6638 = vadd.f32 %v6622, %v5853
        %v6639 = vadd.f32 %v6623, %v5859
        %v6640 = vadd.f32 %v6624, %v5865
        %v6641 = vadd.f32 %v6625, %v5871
        %v6642 = vadd.f32 %v6626, %v5877
        %v6643 = vadd.f32 %v6627, %v5883
        %v6644 = vadd.f32 %v6628, %v5889
        %v6645 = vadd.f32 %v6629, %v5895
        %v6646 = vadd.f32 %v6630, %v5901
        %v6647 = vadd.f32 %v6631, %v5907
        %v6648 = vadd.f32 %v6632, %v5913
        %v6665 = vrot.slane %v6537, 7
        %v6666 = vrot.slane %v6538, 7
        %v6667 = vrot.slane %v6539, 7
        %v6668 = vrot.slane %v6540, 7
        %v6669 = vrot.slane %v6541, 7
        %v6670 = vrot.slane %v6542, 7
        %v6671 = vrot.slane %v6543, 7
        %v6672 = vrot.slane %v6544, 7
        %v6673 = vrot.slane %v6545, 7
        %v6674 = vrot.slane %v6546, 7
        %v6675 = vrot.slane %v6547, 7
        %v6676 = vrot.slane %v6548, 7
        %v6677 = vrot.slane %v6549, 7
        %v6678 = vrot.slane %v6550, 7
        %v6679 = vrot.slane %v6551, 7
        %v6680 = vrot.slane %v6552, 7
        %v6713 = vrot.slane %v6633, 6
        %v6714 = vrot.slane %v6634, 6
        %v6715 = vrot.slane %v6635, 6
        %v6716 = vrot.slane %v6636, 6
        %v6717 = vrot.slane %v6637, 6
        %v6718 = vrot.slane %v6638, 6
        %v6719 = vrot.slane %v6639, 6
        %v6720 = vrot.slane %v6640, 6
        %v6721 = vrot.slane %v6641, 6
        %v6722 = vrot.slane %v6642, 6
        %v6723 = vrot.slane %v6643, 6
        %v6724 = vrot.slane %v6644, 6
        %v6725 = vrot.slane %v6645, 6
        %v6726 = vrot.slane %v6646, 6
        %v6727 = vrot.slane %v6647, 6
        %v6728 = vrot.slane %v6648, 6
        %v6745 = vsel %vm5914, %v6441, %v6665
        %v6746 = vsel %vm5914, %v6442, %v6666
        %v6747 = vsel %vm5914, %v6443, %v6667
        %v6748 = vsel %vm5914, %v6444, %v6668
        %v6749 = vsel %vm5914, %v6445, %v6669
        %v6750 = vsel %vm5914, %v6446, %v6670
        %v6751 = vsel %vm5914, %v6447, %v6671
        %v6752 = vsel %vm5914, %v6448, %v6672
        %v6753 = vsel %vm5914, %v6449, %v6673
        %v6754 = vsel %vm5914, %v6450, %v6674
        %v6755 = vsel %vm5914, %v6451, %v6675
        %v6756 = vsel %vm5914, %v6452, %v6676
        %v6757 = vsel %vm5914, %v6453, %v6677
        %v6758 = vsel %vm5914, %v6454, %v6678
        %v6759 = vsel %vm5914, %v6455, %v6679
        %v6760 = vsel %vm5914, %v6456, %v6680
        %v6761 = vsel %vm5931, %v6745, %v6713
        %v6762 = vsel %vm5931, %v6746, %v6714
        %v6763 = vsel %vm5931, %v6747, %v6715
        %v6764 = vsel %vm5931, %v6748, %v6716
        %v6765 = vsel %vm5931, %v6749, %v6717
        %v6766 = vsel %vm5931, %v6750, %v6718
        %v6767 = vsel %vm5931, %v6751, %v6719
        %v6768 = vsel %vm5931, %v6752, %v6720
        %v6769 = vsel %vm5931, %v6753, %v6721
        %v6770 = vsel %vm5931, %v6754, %v6722
        %v6771 = vsel %vm5931, %v6755, %v6723
        %v6772 = vsel %vm5931, %v6756, %v6724
        %v6773 = vsel %vm5931, %v6757, %v6725
        %v6774 = vsel %vm5931, %v6758, %v6726
        %v6775 = vsel %vm5931, %v6759, %v6727
        %v6776 = vsel %vm5931, %v6760, %v6728
        %v6793 = vcombine.low %v6761, %v6762
        %v6794 = vcombine.low %v6763, %v6764
        %v6795 = vcombine.low %v6765, %v6766
        %v6796 = vcombine.low %v6767, %v6768
        %v6797 = vcombine.low %v6769, %v6770
        %v6798 = vcombine.low %v6771, %v6772
        %v6799 = vcombine.low %v6773, %v6774
        %v6800 = vcombine.low %v6775, %v6776
        %6809 = vst [vmem:[%s217] sm:$0x77] %v6793
        %6810 = vst [vmem:[%s217 + $0x8] sm:$0x77] %v6794
        %6811 = vst [vmem:[%s217 + $0x10] sm:$0x77] %v6795
        %6812 = vst [vmem:[%s217 + $0x18] sm:$0x77] %v6796
        %6813 = vst [vmem:[%s217 + $0x20] sm:$0x77] %v6797
        %6814 = vst [vmem:[%s217 + $0x28] sm:$0x77] %v6798
        %6815 = vst [vmem:[%s217 + $0x30] sm:$0x77] %v6799
        %6816 = vst [vmem:[%s217 + $0x38] sm:$0x77] %v6800
        %s6817 = sand.u32 %s85, 1
        %s6818 = scalar_lea.sflag [#allocation6], %s6817
        %s6819 = sand.u32 %s85, 1
        %s6820 = smul.addr %s6819, 256
        %s6821 = scalar_lea.vmem [#allocation9], %s6820
        %s6822 = sand.u32 %s111, 1
        %s6823 = scalar_lea.sflag [#allocation11], %s6822
        %s6824 = sand.u32 %s111, 1
        %s6825 = smul.addr %s6824, 64
        %s6826 = scalar_lea.vmem [#allocation10], %s6825
        // Predicated region
        $region37: #{tpu_custom_call.1} parent=27 // pred_check
          %p6827 = pneg %p95
        $region38: #{tpu_custom_call.1} parent=27 // pred_check_branch
          %6829 = sbr.rel (%p6827) target = $region40
        $region39: #{tpu_custom_call.1} parent=27 // pred_region
          %s6830 = smul.u32 16, %s30
          %s6832 = ssub.s32 4096, 4096
          %6833 = vsyncadd %s6818, %s6832
          %s6834 = smul.addr %s6830, 128
          %s6835 = scalar_lea.hbm %s3, %s6834
          %s6836 = sshll.u32 %s6821, 4
          %s6837 = int_to_ptr.vmem [resolvable:$true] %s6836
          %6842 = dma.vmem_to_hbm [thread:$0]  %s6837, 4096, %s6835, %s6818, 2048, 4096, 128
        $region40: #{tpu_custom_call.1} parent=27 // pred_fallthru
          _
        // Predicated region
        $region41: #{tpu_custom_call.1} parent=27 // pred_check
          %p6843 = pneg %p121
        $region42: #{tpu_custom_call.1} parent=27 // pred_check_branch
          %6845 = sbr.rel (%p6843) target = $region44
        $region43: #{tpu_custom_call.1} parent=27 // pred_region
          %s6846 = smul.u32 16, %s30
          %s6848 = ssub.s32 1024, 1024
          %6849 = vsyncadd %s6823, %s6848
          %s6850 = smul.addr %s6846, 64
          %s6851 = scalar_lea.hbm %s4, %s6850
          %s6853 = sshll.u32 %s6826, 4
          %s6854 = int_to_ptr.vmem [resolvable:$true] %s6853
          %6856 = dma.vmem_to_hbm [thread:$0]  %s6854, 1024, %s6851, %s6823
        $region44: #{tpu_custom_call.1} parent=27 // pred_fallthru
          _
      $region28: #{tpu_custom_call.1} parent=5 // pred_fallthru
        _
      %p6857 = scmp.le.s32.totalorder 2, %s25
      // Predicated region
      $region45: #{tpu_custom_call.1} parent=5 // pred_check
        %p6858 = pneg %p6857
      $region46: #{tpu_custom_call.1} parent=5 // pred_check_branch
        %6860 = sbr.rel (%p6858) target = $region48
      $region47: #{tpu_custom_call.1} parent=5 // pred_region
        %s6861 = ssub.s32 %s25, 2
        // Predicated region
        $region49: #{tpu_custom_call.1} parent=47 // pred_check
          %p6862 = pneg %p101
        $region50: #{tpu_custom_call.1} parent=47 // pred_check_branch
          %6864 = sbr.rel (%p6862) target = $region52
        $region51: #{tpu_custom_call.1} parent=47 // pred_region
          %s6865 = sand.u32 %s86, 1
          %s6866 = scalar_lea.sflag [#allocation6], %s6865
          %s6867 = sand.u32 %s86, 1
          %s6868 = smul.addr %s6867, 256
          %s6869 = scalar_lea.vmem [#allocation9], %s6868
          %6870 = dma.done %s6866, 4096
        $region52: #{tpu_custom_call.1} parent=47 // pred_fallthru
          _
        // Predicated region
        $region53: #{tpu_custom_call.1} parent=47 // pred_check
          %p6871 = pneg %p127
        $region54: #{tpu_custom_call.1} parent=47 // pred_check_branch
          %6873 = sbr.rel (%p6871) target = $region56
        $region55: #{tpu_custom_call.1} parent=47 // pred_region
          %s6874 = sand.u32 %s112, 1
          %s6875 = scalar_lea.sflag [#allocation11], %s6874
          %s6876 = sand.u32 %s112, 1
          %s6877 = smul.addr %s6876, 64
          %s6878 = scalar_lea.vmem [#allocation10], %s6877
          %6879 = dma.done %s6875, 1024
        $region56: #{tpu_custom_call.1} parent=47 // pred_fallthru
          _
      $region48: #{tpu_custom_call.1} parent=5 // pred_fallthru
        _
    $region6: #{tpu_custom_call.1} parent=1 // loop_footer
      %s29 = sadd.s32 1, %s25
    $region7: #{tpu_custom_call.1} parent=1 // loop_footer_branch
      %24 = sbr.rel target = $region3
    $region8: #{tpu_custom_call.1} parent=1 // loop_exit
      _
    %6880 = vsyncpa [#allocation5], 1
    %s6881 = scalar_lea.sflag [#allocation5], 1
    %6882 = vsyncpa %s6881, 1
    %6883 = vsyncpa [#allocation8], 1
    %6884 = vsyncpa [#allocation6], 1
    %s6885 = scalar_lea.sflag [#allocation6], 1
    %6886 = vsyncpa %s6885, 1
    %6887 = vsyncpa [#allocation11], 1
    %s6888 = scalar_lea.sflag [#allocation11], 1
    %6889 = vsyncpa %s6888, 1

</llo_original>
